<compile_context>
chip_gen: v7x
topology: tpu7x:2x2x1
jax: 0.10.0
libtpu: 0.0.40
codegen_flags: <defaults>
</compile_context>

<pallas_src>
import functools

import jax
import jax.numpy as jnp
from jax import lax
from jax.experimental import pallas as pl
from jax.experimental.pallas import tpu as pltpu


# --------------------------------------------------------------------------
# Kernel 1: RMSNorm1 + Q/K/V projection (Q pre-scaled), bf16 outputs to HBM.
# --------------------------------------------------------------------------
def qkv_kernel(x_ref, g1_ref, wq_ref, wk_ref, wv_ref,
               q_ref, k_ref, v_ref, *, scale):
    f32 = jnp.float32
    bf16 = jnp.bfloat16
    eps = 1e-6

    x = x_ref[0]                                            # (TS, H) f32
    var = jnp.mean(x * x, axis=-1, keepdims=True)
    xn = (x * lax.rsqrt(var + eps) * g1_ref[...]).astype(bf16)

    q = jnp.dot(xn, wq_ref[...], preferred_element_type=f32) * scale
    q_ref[0] = q.astype(bf16)
    k_ref[0] = jnp.dot(xn, wk_ref[...], preferred_element_type=f32).astype(bf16)
    v_ref[0] = jnp.dot(xn, wv_ref[...], preferred_element_type=f32).astype(bf16)


# --------------------------------------------------------------------------
# Kernel 2: causal flash attention (KV streamed on grid axis 2) + residual + Wo.
# --------------------------------------------------------------------------
def attn_kernel(q_ref, k_ref, v_ref, xres_ref, wo_ref,
                o_ref, m_ref, l_ref, acc_ref, *, tq, tk):
    f32 = jnp.float32
    bf16 = jnp.bfloat16

    qi = pl.program_id(1)
    kv = pl.program_id(2)
    q_start = qi * tq
    k_off = kv * tk

    @pl.when(kv == 0)
    def _init():
        m_ref[...] = jnp.full_like(m_ref, -1e30)
        l_ref[...] = jnp.zeros_like(l_ref)
        acc_ref[...] = jnp.zeros_like(acc_ref)

    # Tile visibility under the causal mask.
    visible = k_off <= q_start + tq - 1          # has >= 1 visible column
    needs_mask = k_off + tk - 1 > q_start        # straddles the diagonal

    def update(masked):
        q = q_ref[0]                             # (tq, H)  bf16, pre-scaled
        kt = k_ref[0]                            # (tk, H)  bf16
        vt = v_ref[0]                            # (tk, H)  bf16
        # q @ k^T without an explicit transpose: contract on H.
        s = lax.dot_general(q, kt, (((1,), (1,)), ((), ())),
                            preferred_element_type=f32)      # (tq, tk)
        if masked:                               # only on the diagonal tile
            row = q_start + lax.broadcasted_iota(jnp.int32, (tq, tk), 0)
            col = k_off + lax.broadcasted_iota(jnp.int32, (tq, tk), 1)
            s = jnp.where(col <= row, s, -1e30)
        m_prev = m_ref[...]
        m_new = jnp.maximum(m_prev, jnp.max(s, axis=-1, keepdims=True))
        alpha = jnp.exp(m_prev - m_new)
        p = jnp.exp(s - m_new)
        l_ref[...] = alpha * l_ref[...] + jnp.sum(p, axis=-1, keepdims=True)
        acc_ref[...] = alpha * acc_ref[...] + jnp.dot(
            p.astype(bf16), vt, preferred_element_type=f32)
        m_ref[...] = m_new

    @pl.when(jnp.logical_and(visible, jnp.logical_not(needs_mask)))
    def _interior():                             # fully visible: no mask math
        update(masked=False)

    @pl.when(jnp.logical_and(visible, needs_mask))
    def _diagonal():
        update(masked=True)

    @pl.when(kv == pl.num_programs(2) - 1)
    def _finalize():
        inv_l = pl.reciprocal(l_ref[...], approx=True)       # EUP slot
        attn = (acc_ref[...] * inv_l).astype(bf16)           # (tq, H)
        o = jnp.dot(attn, wo_ref[...], preferred_element_type=f32)
        o_ref[0] = xres_ref[0] + o                           # residual, f32


# --------------------------------------------------------------------------
# Kernel 3: RMSNorm2 + GELU MLP, F streamed on grid axis 2, residual seed.
# --------------------------------------------------------------------------
def mlp_kernel(x1_ref, g2_ref, w1_ref, w2_ref,
               o_ref, xn_ref, acc_ref):
    f32 = jnp.float32
    bf16 = jnp.bfloat16
    eps = 1e-6
    fi = pl.program_id(2)

    @pl.when(fi == 0)
    def _init():
        x1 = x1_ref[0]                                       # (TS, H) f32
        var = jnp.mean(x1 * x1, axis=-1, keepdims=True)
        xn_ref[...] = (x1 * lax.rsqrt(var + eps) * g2_ref[...]).astype(bf16)
        acc_ref[...] = x1                                    # residual seed

    h = jnp.dot(xn_ref[...], w1_ref[...], preferred_element_type=f32)
    # TODO(synk): PyTorch nn.GELU defaults to exact erf; tanh approx used here.
    h = jax.nn.gelu(h, approximate=True)
    acc_ref[...] += jnp.dot(h.astype(bf16), w2_ref[...],
                            preferred_element_type=f32)

    @pl.when(fi == pl.num_programs(2) - 1)
    def _finalize():
        o_ref[0] = acc_ref[...]


# --------------------------------------------------------------------------
# Host-side wiring.
# --------------------------------------------------------------------------
def _pick_tile(total, preferred, align):
    """Largest align-multiple divisor of total that is <= preferred, else total."""
    if total <= preferred:
        return total
    t = (preferred // align) * align
    while t >= align:
        if total % t == 0:
            return t
        t -= align
    return total


def _vmem_limit_bytes():
    # ~40 MiB target on v7x (64 MiB phys), ~80-100 MiB on v5e/v6e (128 MiB).
    try:
        cap = pltpu.get_tpu_info().vmem_capacity_bytes
        return max(32 * 1024 * 1024, min(int(cap * 0.64), 100 * 1024 * 1024))
    except Exception:
        return 48 * 1024 * 1024


def make_forward(B, S, H, F, *, single_buffer_weights=True):
    f32 = jnp.float32
    bf16 = jnp.bfloat16

    # Tiles: sequence tiles 16-sublane aligned (bf16 vreg packing on v5e),
    # F tiles lane-dense multiples of 128. Small demo shapes fall back to the
    # full dimension.
    TS = _pick_tile(S, 256, 16)      # projection / MLP sequence tile
    TQ = _pick_tile(S, 256, 16)      # attention query tile
    TK = _pick_tile(S, 256, 16)      # attention KV tile
    TF = _pick_tile(F, 512, 128)     # MLP hidden tile
    assert S % TS == 0 and S % TQ == 0 and S % TK == 0 and F % TF == 0
    NS, NQ, NKV, NF = S // TS, S // TQ, S // TK, F // TF

    vmem_limit = _vmem_limit_bytes()

    def const_spec(shape, ngrid):
        zeros = (0,) * len(shape)
        imap = (lambda b, i: zeros) if ngrid == 2 else (lambda b, i, j: zeros)
        if single_buffer_weights:
            # Constant-index weights never change across the grid; single-buffer
            # them to halve their VMEM footprint.
            return pl.BlockSpec(shape, imap, pipeline_mode=pl.Buffered(1))
        return pl.BlockSpec(shape, imap)

    # ---- kernel 1: QKV projection -------------------------------------------
    qkv_call = pl.pallas_call(
        functools.partial(qkv_kernel, scale=1.0 / float(H) ** 0.5),
        out_shape=(jax.ShapeDtypeStruct((B, S, H), bf16),   # q (pre-scaled)
                   jax.ShapeDtypeStruct((B, S, H), bf16),   # k
                   jax.ShapeDtypeStruct((B, S, H), bf16)),  # v
        grid_spec=pltpu.PrefetchScalarGridSpec(
            num_scalar_prefetch=0,
            grid=(B, NS),
            in_specs=[
                pl.BlockSpec((1, TS, H), lambda b, si: (b, si, 0)),   # x
                const_spec((1, H), 2),                                # g1
                const_spec((H, H), 2),                                # wq
                const_spec((H, H), 2),                                # wk
                const_spec((H, H), 2),                                # wv
            ],
            out_specs=(pl.BlockSpec((1, TS, H), lambda b, si: (b, si, 0)),
                       pl.BlockSpec((1, TS, H), lambda b, si: (b, si, 0)),
                       pl.BlockSpec((1, TS, H), lambda b, si: (b, si, 0))),
        ),
        compiler_params=pltpu.CompilerParams(
            dimension_semantics=("parallel", "parallel"),
            vmem_limit_bytes=vmem_limit),
        cost_estimate=pl.CostEstimate(
            flops=6 * B * S * H * H,
            transcendentals=B * S,
            bytes_accessed=4 * B * S * H + 6 * B * S * H + 6 * H * H + 4 * H),
    )

    # ---- kernel 2: causal flash attention + residual + Wo -------------------
    attn_call = pl.pallas_call(
        functools.partial(attn_kernel, tq=TQ, tk=TK),
        out_shape=jax.ShapeDtypeStruct((B, S, H), f32),
        grid_spec=pltpu.PrefetchScalarGridSpec(
            num_scalar_prefetch=0,
            grid=(B, NQ, NKV),
            in_specs=[
                pl.BlockSpec((1, TQ, H), lambda b, qi, kv: (b, qi, 0)),  # q
                pl.BlockSpec((1, TK, H), lambda b, qi, kv: (b, kv, 0)),  # k
                pl.BlockSpec((1, TK, H), lambda b, qi, kv: (b, kv, 0)),  # v
                pl.BlockSpec((1, TQ, H), lambda b, qi, kv: (b, qi, 0)),  # x residual
                const_spec((H, H), 3),                                   # wo
            ],
            out_specs=pl.BlockSpec((1, TQ, H), lambda b, qi, kv: (b, qi, 0)),
            scratch_shapes=[
                pltpu.VMEM((TQ, 1), f32),    # running max   (persists over kv)
                pltpu.VMEM((TQ, 1), f32),    # running sum
                pltpu.VMEM((TQ, H), f32),    # attention accumulator
            ],
        ),
        compiler_params=pltpu.CompilerParams(
            dimension_semantics=("parallel", "parallel", "arbitrary"),
            vmem_limit_bytes=vmem_limit),
        cost_estimate=pl.CostEstimate(
            flops=B * (2 * S * S * H + 2 * S * H * H),
            transcendentals=B * S * S // 2,
            bytes_accessed=(B * S * H * (2 + 4 + 4)
                            + NQ * 4 * B * S * H + 2 * H * H)),
    )

    # ---- kernel 3: RMSNorm2 + GELU MLP (F streamed) + residual ---------------
    mlp_call = pl.pallas_call(
        mlp_kernel,
        out_shape=jax.ShapeDtypeStruct((B, S, H), f32),
        grid_spec=pltpu.PrefetchScalarGridSpec(
            num_scalar_prefetch=0,
            grid=(B, NS, NF),
            in_specs=[
                pl.BlockSpec((1, TS, H), lambda b, si, fi: (b, si, 0)),  # x1
                const_spec((1, H), 3),                                   # g2
                pl.BlockSpec((H, TF), lambda b, si, fi: (0, fi)),        # w1 tile
                pl.BlockSpec((TF, H), lambda b, si, fi: (fi, 0)),        # w2 tile
            ],
            out_specs=pl.BlockSpec((1, TS, H), lambda b, si, fi: (b, si, 0)),
            scratch_shapes=[
                pltpu.VMEM((TS, H), bf16),   # xn2 (computed once at fi==0)
                pltpu.VMEM((TS, H), f32),    # MLP accumulator (residual seed)
            ],
        ),
        compiler_params=pltpu.CompilerParams(
            dimension_semantics=("parallel", "parallel", "arbitrary"),
            vmem_limit_bytes=vmem_limit),
        cost_estimate=pl.CostEstimate(
            flops=4 * B * S * H * F,
            transcendentals=B * S * F,
            bytes_accessed=8 * B * S * H + 4 * H * F + 4 * H),
    )

    @jax.jit
    def forward(x, wq, wk, wv, wo, g1, g2, w1, w2):
        bf = jnp.bfloat16
        q, k, v = qkv_call(x, g1,
                           wq.astype(bf), wk.astype(bf), wv.astype(bf))
        x1 = attn_call(q, k, v, x, wo.astype(bf))
        return mlp_call(x1, g2, w1.astype(bf), w2.astype(bf))

    return forward


# --------------------------------------------------------------------------
# Pure-JAX f32 reference for numerical sanity checking.
# --------------------------------------------------------------------------
def reference_forward(x, wq, wk, wv, wo, g1, g2, w1, w2):
    eps = 1e-6
    H = x.shape[-1]
    S = x.shape[1]
    var = jnp.mean(x * x, axis=-1, keepdims=True)
    xn = x * lax.rsqrt(var + eps) * g1
    q = xn @ wq
    k = xn @ wk
    v = xn @ wv
    s = jnp.einsum("bqh,bkh->bqk", q, k) / (float(H) ** 0.5)
    mask = jnp.tril(jnp.ones((S, S), bool))
    s = jnp.where(mask, s, -1e30)
    p = jax.nn.softmax(s, axis=-1)
    o = jnp.einsum("bqk,bkh->bqh", p, v) @ wo
    x1 = x + o
    var2 = jnp.mean(x1 * x1, axis=-1, keepdims=True)
    xn2 = x1 * lax.rsqrt(var2 + eps) * g2
    h = jax.nn.gelu(xn2 @ w1, approximate=True)
    return x1 + h @ w2


def init_params(key, H, F):
    ks = jax.random.split(key, 6)
    scale = 0.02
    wq = scale * jax.random.normal(ks[0], (H, H), jnp.float32)
    wk = scale * jax.random.normal(ks[1], (H, H), jnp.float32)
    wv = scale * jax.random.normal(ks[2], (H, H), jnp.float32)
    wo = scale * jax.random.normal(ks[3], (H, H), jnp.float32)
    w1 = scale * jax.random.normal(ks[4], (H, F), jnp.float32)
    w2 = scale * jax.random.normal(ks[5], (F, H), jnp.float32)
    g1 = jnp.ones((1, H), jnp.float32)
    g2 = jnp.ones((1, H), jnp.float32)
    return wq, wk, wv, wo, g1, g2, w1, w2


if __name__ == "__main__":
    B, S, H, F = 2, 8, 32, 64
    key = jax.random.PRNGKey(0)
    kx, kp = jax.random.split(key)
    x = jax.random.normal(kx, (B, S, H), jnp.float32)
    params = init_params(kp, H, F)

    try:
        fwd = make_forward(B, S, H, F, single_buffer_weights=True)
        out = jax.block_until_ready(fwd(x, *params))
    except Exception:
        # pl.Buffered(1) single-buffering not accepted on this jax/Mosaic
        # version; fall back to default double-buffered weight specs.
        fwd = make_forward(B, S, H, F, single_buffer_weights=False)
        out = jax.block_until_ready(fwd(x, *params))

    assert out.shape == (B, S, H) and out.dtype == jnp.float32
    assert bool(jnp.isfinite(out).all())
    ref = reference_forward(x, *params)
    max_err = float(jnp.max(jnp.abs(out - ref)))
    assert max_err < 5e-2, f"kernel mismatch vs reference: {max_err}"
    print("KERNEL_OK")
</pallas_src>

<mosaic_0001>
module attributes {stable_mosaic.version = 11 : i64} {
  func.func @qkv_kernel(%arg0: i32, %arg1: i32, %arg2: memref<1x8x32xf32, #tpu.memory_space<vmem>>, %arg3: memref<1x32xf32, #tpu.memory_space<vmem>>, %arg4: memref<32x32xbf16, #tpu.memory_space<vmem>>, %arg5: memref<32x32xbf16, #tpu.memory_space<vmem>>, %arg6: memref<32x32xbf16, #tpu.memory_space<vmem>>, %arg7: memref<1x8x32xbf16, #tpu.memory_space<vmem>>, %arg8: memref<1x8x32xbf16, #tpu.memory_space<vmem>>, %arg9: memref<1x8x32xbf16, #tpu.memory_space<vmem>>) attributes {dimension_semantics = [#tpu.dimension_semantics<parallel>, #tpu.dimension_semantics<parallel>], iteration_bounds = array<i64: 2, 1>, scalar_prefetch = 0 : i64, scratch_operands = 0 : i64, tpu.core_type = #tpu.core_type<tc>, window_params = [{transform_indices = @transform_0, window_bounds = array<i64: 1, 8, 32>}, {pipeline_mode = #tpu.pipeline_mode<synchronous>, transform_indices = @transform_1, window_bounds = array<i64: 1, 32>}, {pipeline_mode = #tpu.pipeline_mode<synchronous>, transform_indices = @transform_2, window_bounds = array<i64: 32, 32>}, {pipeline_mode = #tpu.pipeline_mode<synchronous>, transform_indices = @transform_3, window_bounds = array<i64: 32, 32>}, {pipeline_mode = #tpu.pipeline_mode<synchronous>, transform_indices = @transform_4, window_bounds = array<i64: 32, 32>}, {transform_indices = @transform_5, window_bounds = array<i64: 1, 8, 32>}, {transform_indices = @transform_6, window_bounds = array<i64: 1, 8, 32>}, {transform_indices = @transform_7, window_bounds = array<i64: 1, 8, 32>}]} {
    %c0 = arith.constant 0 : index
    %c0_0 = arith.constant 0 : index
    %c0_1 = arith.constant 0 : index
    %0 = vector.load %arg2[%c0, %c0_0, %c0_1] : memref<1x8x32xf32, #tpu.memory_space<vmem>>, vector<1x8x32xf32>
    %1 = vector.shape_cast %0 : vector<1x8x32xf32> to vector<8x32xf32>
    %2 = arith.mulf %1, %1 : vector<8x32xf32>
    %cst = arith.constant dense<0.000000e+00> : vector<8xf32>
    %3 = vector.multi_reduction <add>, %2, %cst [1] : vector<8x32xf32> to vector<8xf32>
    %4 = vector.shape_cast %3 : vector<8xf32> to vector<8x1xf32>
    %cst_2 = arith.constant 3.200000e+01 : f32
    %5 = vector.broadcast %cst_2 : f32 to vector<8x1xf32>
    %6 = arith.divf %4, %5 : vector<8x1xf32>
    %cst_3 = arith.constant 9.99999997E-7 : f32
    %7 = vector.broadcast %cst_3 : f32 to vector<8x1xf32>
    %8 = arith.addf %6, %7 : vector<8x1xf32>
    %9 = math.rsqrt %8 : vector<8x1xf32>
    %10 = vector.broadcast %9 : vector<8x1xf32> to vector<8x32xf32>
    %11 = arith.mulf %1, %10 : vector<8x32xf32>
    %c0_4 = arith.constant 0 : index
    %c0_5 = arith.constant 0 : index
    %12 = vector.load %arg3[%c0_4, %c0_5] : memref<1x32xf32, #tpu.memory_space<vmem>>, vector<1x32xf32>
    %13 = vector.broadcast %12 : vector<1x32xf32> to vector<8x32xf32>
    %14 = arith.mulf %11, %13 : vector<8x32xf32>
    %15 = arith.truncf %14 : vector<8x32xf32> to vector<8x32xbf16>
    %c0_6 = arith.constant 0 : index
    %c0_7 = arith.constant 0 : index
    %16 = vector.load %arg4[%c0_6, %c0_7] : memref<32x32xbf16, #tpu.memory_space<vmem>>, vector<32x32xbf16>
    %cst_8 = arith.constant dense<0.000000e+00> : vector<8x32xf32>
    %17 = tpu.matmul %15, %16, %cst_8 {dimension_numbers = #tpu.dot_dimension_numbers<[1], [0], [0], [1], [0, 0, 1, 1], [], []>} : vector<8x32xbf16>, vector<32x32xbf16>, vector<8x32xf32> -> vector<8x32xf32>
    %cst_9 = arith.constant 0.176776692 : f32
    %18 = vector.broadcast %cst_9 : f32 to vector<8x32xf32>
    %19 = arith.mulf %17, %18 : vector<8x32xf32>
    %20 = arith.truncf %19 : vector<8x32xf32> to vector<8x32xbf16>
    %c0_10 = arith.constant 0 : index
    %c0_11 = arith.constant 0 : index
    %c0_12 = arith.constant 0 : index
    %21 = vector.load %arg7[%c0_10, %c0_11, %c0_12] : memref<1x8x32xbf16, #tpu.memory_space<vmem>>, vector<1x8x32xbf16>
    %22 = vector.shape_cast %21 : vector<1x8x32xbf16> to vector<8x32xbf16>
    %23 = vector.shape_cast %20 : vector<8x32xbf16> to vector<1x8x32xbf16>
    tpu.vector_store %arg7[%c0_10, %c0_11, %c0_12], %23 {strides = array<i32>} : memref<1x8x32xbf16, #tpu.memory_space<vmem>>, vector<1x8x32xbf16>,
    %c0_13 = arith.constant 0 : index
    %c0_14 = arith.constant 0 : index
    %24 = vector.load %arg5[%c0_13, %c0_14] : memref<32x32xbf16, #tpu.memory_space<vmem>>, vector<32x32xbf16>
    %cst_15 = arith.constant dense<0.000000e+00> : vector<8x32xf32>
    %25 = tpu.matmul %15, %24, %cst_15 {dimension_numbers = #tpu.dot_dimension_numbers<[1], [0], [0], [1], [0, 0, 1, 1], [], []>} : vector<8x32xbf16>, vector<32x32xbf16>, vector<8x32xf32> -> vector<8x32xf32>
    %26 = arith.truncf %25 : vector<8x32xf32> to vector<8x32xbf16>
    %c0_16 = arith.constant 0 : index
    %c0_17 = arith.constant 0 : index
    %c0_18 = arith.constant 0 : index
    %27 = vector.load %arg8[%c0_16, %c0_17, %c0_18] : memref<1x8x32xbf16, #tpu.memory_space<vmem>>, vector<1x8x32xbf16>
    %28 = vector.shape_cast %27 : vector<1x8x32xbf16> to vector<8x32xbf16>
    %29 = vector.shape_cast %26 : vector<8x32xbf16> to vector<1x8x32xbf16>
    tpu.vector_store %arg8[%c0_16, %c0_17, %c0_18], %29 {strides = array<i32>} : memref<1x8x32xbf16, #tpu.memory_space<vmem>>, vector<1x8x32xbf16>,
    %c0_19 = arith.constant 0 : index
    %c0_20 = arith.constant 0 : index
    %30 = vector.load %arg6[%c0_19, %c0_20] : memref<32x32xbf16, #tpu.memory_space<vmem>>, vector<32x32xbf16>
    %cst_21 = arith.constant dense<0.000000e+00> : vector<8x32xf32>
    %31 = tpu.matmul %15, %30, %cst_21 {dimension_numbers = #tpu.dot_dimension_numbers<[1], [0], [0], [1], [0, 0, 1, 1], [], []>} : vector<8x32xbf16>, vector<32x32xbf16>, vector<8x32xf32> -> vector<8x32xf32>
    %32 = arith.truncf %31 : vector<8x32xf32> to vector<8x32xbf16>
    %c0_22 = arith.constant 0 : index
    %c0_23 = arith.constant 0 : index
    %c0_24 = arith.constant 0 : index
    %33 = vector.load %arg9[%c0_22, %c0_23, %c0_24] : memref<1x8x32xbf16, #tpu.memory_space<vmem>>, vector<1x8x32xbf16>
    %34 = vector.shape_cast %33 : vector<1x8x32xbf16> to vector<8x32xbf16>
    %35 = vector.shape_cast %32 : vector<8x32xbf16> to vector<1x8x32xbf16>
    tpu.vector_store %arg9[%c0_22, %c0_23, %c0_24], %35 {strides = array<i32>} : memref<1x8x32xbf16, #tpu.memory_space<vmem>>, vector<1x8x32xbf16>,
    return
  }
  func.func @transform_0(%arg0: i32, %arg1: i32) -> (i32, i32, i32) {
    %c0_i32 = arith.constant 0 : i32
    %c0_i32_0 = arith.constant 0 : i32
    return %arg0, %arg1, %c0_i32 : i32, i32, i32
  }
  func.func @transform_1(%arg0: i32, %arg1: i32) -> (i32, i32) {
    %c0_i32 = arith.constant 0 : i32
    %c0_i32_0 = arith.constant 0 : i32
    %c0_i32_1 = arith.constant 0 : i32
    return %c0_i32, %c0_i32_0 : i32, i32
  }
  func.func @transform_2(%arg0: i32, %arg1: i32) -> (i32, i32) {
    %c0_i32 = arith.constant 0 : i32
    %c0_i32_0 = arith.constant 0 : i32
    %c0_i32_1 = arith.constant 0 : i32
    return %c0_i32, %c0_i32_0 : i32, i32
  }
  func.func @transform_3(%arg0: i32, %arg1: i32) -> (i32, i32) {
    %c0_i32 = arith.constant 0 : i32
    %c0_i32_0 = arith.constant 0 : i32
    %c0_i32_1 = arith.constant 0 : i32
    return %c0_i32, %c0_i32_0 : i32, i32
  }
  func.func @transform_4(%arg0: i32, %arg1: i32) -> (i32, i32) {
    %c0_i32 = arith.constant 0 : i32
    %c0_i32_0 = arith.constant 0 : i32
    %c0_i32_1 = arith.constant 0 : i32
    return %c0_i32, %c0_i32_0 : i32, i32
  }
  func.func @transform_5(%arg0: i32, %arg1: i32) -> (i32, i32, i32) {
    %c0_i32 = arith.constant 0 : i32
    %c0_i32_0 = arith.constant 0 : i32
    return %arg0, %arg1, %c0_i32 : i32, i32, i32
  }
  func.func @transform_6(%arg0: i32, %arg1: i32) -> (i32, i32, i32) {
    %c0_i32 = arith.constant 0 : i32
    %c0_i32_0 = arith.constant 0 : i32
    return %arg0, %arg1, %c0_i32 : i32, i32, i32
  }
  func.func @transform_7(%arg0: i32, %arg1: i32) -> (i32, i32, i32) {
    %c0_i32 = arith.constant 0 : i32
    %c0_i32_0 = arith.constant 0 : i32
    return %arg0, %arg1, %c0_i32 : i32, i32, i32
  }
}

module attributes {stable_mosaic.version = 11 : i64} {
  func.func @attn_kernel(%arg0: i32, %arg1: i32, %arg2: i32, %arg3: memref<1x8x32xbf16, #tpu.memory_space<vmem>>, %arg4: memref<1x8x32xbf16, #tpu.memory_space<vmem>>, %arg5: memref<1x8x32xbf16, #tpu.memory_space<vmem>>, %arg6: memref<1x8x32xf32, #tpu.memory_space<vmem>>, %arg7: memref<32x32xbf16, #tpu.memory_space<vmem>>, %arg8: memref<1x8x32xf32, #tpu.memory_space<vmem>>, %arg9: memref<8x1xf32, #tpu.memory_space<vmem>>, %arg10: memref<8x1xf32, #tpu.memory_space<vmem>>, %arg11: memref<8x32xf32, #tpu.memory_space<vmem>>) attributes {dimension_semantics = [#tpu.dimension_semantics<parallel>, #tpu.dimension_semantics<parallel>, #tpu.dimension_semantics<arbitrary>], iteration_bounds = array<i64: 2, 1, 1>, scalar_prefetch = 0 : i64, scratch_operands = 3 : i64, tpu.core_type = #tpu.core_type<tc>, window_params = [{transform_indices = @transform_0, window_bounds = array<i64: 1, 8, 32>}, {transform_indices = @transform_1, window_bounds = array<i64: 1, 8, 32>}, {transform_indices = @transform_2, window_bounds = array<i64: 1, 8, 32>}, {transform_indices = @transform_3, window_bounds = array<i64: 1, 8, 32>}, {pipeline_mode = #tpu.pipeline_mode<synchronous>, transform_indices = @transform_4, window_bounds = array<i64: 32, 32>}, {transform_indices = @transform_5, window_bounds = array<i64: 1, 8, 32>}]} {
    %c8_i32 = arith.constant 8 : i32
    %0 = arith.muli %arg1, %c8_i32 : i32
    %c8_i32_0 = arith.constant 8 : i32
    %1 = arith.muli %arg2, %c8_i32_0 : i32
    %c0_i32 = arith.constant 0 : i32
    %2 = arith.cmpi eq, %arg2, %c0_i32 : i32
    %3 = arith.extui %2 : i1 to i32
    %c0_i32_1 = arith.constant 0 : i32
    %4 = arith.cmpi ne, %3, %c0_i32_1 : i32
    scf.if %4 {
      %cst = arith.constant -1.000000e+30 : f32
      %21 = vector.broadcast %cst : f32 to vector<8x1xf32>
      %c0 = arith.constant 0 : index
      %c0_9 = arith.constant 0 : index
      %22 = vector.load %arg9[%c0, %c0_9] : memref<8x1xf32, #tpu.memory_space<vmem>>, vector<8x1xf32>
      tpu.vector_store %arg9[%c0, %c0_9], %21 {strides = array<i32>} : memref<8x1xf32, #tpu.memory_space<vmem>>, vector<8x1xf32>,
      %cst_10 = arith.constant 0.000000e+00 : f32
      %23 = vector.broadcast %cst_10 : f32 to vector<8x1xf32>
      %c0_11 = arith.constant 0 : index
      %c0_12 = arith.constant 0 : index
      %24 = vector.load %arg10[%c0_11, %c0_12] : memref<8x1xf32, #tpu.memory_space<vmem>>, vector<8x1xf32>
      tpu.vector_store %arg10[%c0_11, %c0_12], %23 {strides = array<i32>} : memref<8x1xf32, #tpu.memory_space<vmem>>, vector<8x1xf32>,
      %cst_13 = arith.constant 0.000000e+00 : f32
      %25 = vector.broadcast %cst_13 : f32 to vector<8x32xf32>
      %c0_14 = arith.constant 0 : index
      %c0_15 = arith.constant 0 : index
      %26 = vector.load %arg11[%c0_14, %c0_15] : memref<8x32xf32, #tpu.memory_space<vmem>>, vector<8x32xf32>
      tpu.vector_store %arg11[%c0_14, %c0_15], %25 {strides = array<i32>} : memref<8x32xf32, #tpu.memory_space<vmem>>, vector<8x32xf32>,
    } else {
    }
    %c8_i32_2 = arith.constant 8 : i32
    %5 = arith.addi %0, %c8_i32_2 : i32
    %c1_i32 = arith.constant 1 : i32
    %6 = arith.subi %5, %c1_i32 : i32
    %7 = arith.cmpi sle, %1, %6 : i32
    %c8_i32_3 = arith.constant 8 : i32
    %8 = arith.addi %1, %c8_i32_3 : i32
    %c1_i32_4 = arith.constant 1 : i32
    %9 = arith.subi %8, %c1_i32_4 : i32
    %10 = arith.cmpi sgt, %9, %0 : i32
    %true = arith.constant true
    %11 = arith.xori %10, %true : i1
    %12 = arith.andi %7, %11 : i1
    %13 = arith.extui %12 : i1 to i32
    %c0_i32_5 = arith.constant 0 : i32
    %14 = arith.cmpi ne, %13, %c0_i32_5 : i32
    scf.if %14 {
      %c0 = arith.constant 0 : index
      %c0_9 = arith.constant 0 : index
      %c0_10 = arith.constant 0 : index
      %21 = vector.load %arg3[%c0, %c0_9, %c0_10] : memref<1x8x32xbf16, #tpu.memory_space<vmem>>, vector<1x8x32xbf16>
      %22 = vector.shape_cast %21 : vector<1x8x32xbf16> to vector<8x32xbf16>
      %c0_11 = arith.constant 0 : index
      %c0_12 = arith.constant 0 : index
      %c0_13 = arith.constant 0 : index
      %23 = vector.load %arg4[%c0_11, %c0_12, %c0_13] : memref<1x8x32xbf16, #tpu.memory_space<vmem>>, vector<1x8x32xbf16>
      %24 = vector.shape_cast %23 : vector<1x8x32xbf16> to vector<8x32xbf16>
      %c0_14 = arith.constant 0 : index
      %c0_15 = arith.constant 0 : index
      %c0_16 = arith.constant 0 : index
      %25 = vector.load %arg5[%c0_14, %c0_15, %c0_16] : memref<1x8x32xbf16, #tpu.memory_space<vmem>>, vector<1x8x32xbf16>
      %26 = vector.shape_cast %25 : vector<1x8x32xbf16> to vector<8x32xbf16>
      %cst = arith.constant dense<0.000000e+00> : vector<8x8xf32>
      %27 = tpu.matmul %22, %24, %cst {dimension_numbers = #tpu.dot_dimension_numbers<[1], [1], [0], [0], [0, 0, 1, 0], [], []>} : vector<8x32xbf16>, vector<8x32xbf16>, vector<8x8xf32> -> vector<8x8xf32>
      %c0_17 = arith.constant 0 : index
      %c0_18 = arith.constant 0 : index
      %28 = vector.load %arg9[%c0_17, %c0_18] : memref<8x1xf32, #tpu.memory_space<vmem>>, vector<8x1xf32>
      %cst_19 = arith.constant dense<0xFF800000> : vector<8xf32>
      %29 = vector.multi_reduction <maximumf>, %27, %cst_19 [1] : vector<8x8xf32> to vector<8xf32>
      %30 = vector.shape_cast %29 : vector<8xf32> to vector<8x1xf32>
      %31 = arith.maximumf %28, %30 : vector<8x1xf32>
      %32 = arith.subf %28, %31 : vector<8x1xf32>
      %33 = math.exp %32 : vector<8x1xf32>
      %34 = vector.broadcast %31 : vector<8x1xf32> to vector<8x8xf32>
      %35 = arith.subf %27, %34 : vector<8x8xf32>
      %36 = math.exp %35 : vector<8x8xf32>
      %c0_20 = arith.constant 0 : index
      %c0_21 = arith.constant 0 : index
      %37 = vector.load %arg10[%c0_20, %c0_21] : memref<8x1xf32, #tpu.memory_space<vmem>>, vector<8x1xf32>
      %38 = arith.mulf %33, %37 : vector<8x1xf32>
      %cst_22 = arith.constant dense<0.000000e+00> : vector<8xf32>
      %39 = vector.multi_reduction <add>, %36, %cst_22 [1] : vector<8x8xf32> to vector<8xf32>
      %40 = vector.shape_cast %39 : vector<8xf32> to vector<8x1xf32>
      %41 = arith.addf %38, %40 : vector<8x1xf32>
      %c0_23 = arith.constant 0 : index
      %c0_24 = arith.constant 0 : index
      %42 = vector.load %arg10[%c0_23, %c0_24] : memref<8x1xf32, #tpu.memory_space<vmem>>, vector<8x1xf32>
      tpu.vector_store %arg10[%c0_23, %c0_24], %41 {strides = array<i32>} : memref<8x1xf32, #tpu.memory_space<vmem>>, vector<8x1xf32>,
      %c0_25 = arith.constant 0 : index
      %c0_26 = arith.constant 0 : index
      %43 = vector.load %arg11[%c0_25, %c0_26] : memref<8x32xf32, #tpu.memory_space<vmem>>, vector<8x32xf32>
      %44 = vector.broadcast %33 : vector<8x1xf32> to vector<8x32xf32>
      %45 = arith.mulf %44, %43 : vector<8x32xf32>
      %46 = arith.truncf %36 : vector<8x8xf32> to vector<8x8xbf16>
      %cst_27 = arith.constant dense<0.000000e+00> : vector<8x32xf32>
      %47 = tpu.matmul %46, %26, %cst_27 {dimension_numbers = #tpu.dot_dimension_numbers<[1], [0], [0], [1], [0, 0, 1, 1], [], []>} : vector<8x8xbf16>, vector<8x32xbf16>, vector<8x32xf32> -> vector<8x32xf32>
      %48 = arith.addf %45, %47 : vector<8x32xf32>
      %c0_28 = arith.constant 0 : index
      %c0_29 = arith.constant 0 : index
      %49 = vector.load %arg11[%c0_28, %c0_29] : memref<8x32xf32, #tpu.memory_space<vmem>>, vector<8x32xf32>
      tpu.vector_store %arg11[%c0_28, %c0_29], %48 {strides = array<i32>} : memref<8x32xf32, #tpu.memory_space<vmem>>, vector<8x32xf32>,
      %c0_30 = arith.constant 0 : index
      %c0_31 = arith.constant 0 : index
      %50 = vector.load %arg9[%c0_30, %c0_31] : memref<8x1xf32, #tpu.memory_space<vmem>>, vector<8x1xf32>
      tpu.vector_store %arg9[%c0_30, %c0_31], %31 {strides = array<i32>} : memref<8x1xf32, #tpu.memory_space<vmem>>, vector<8x1xf32>,
    } else {
    }
    %15 = arith.andi %7, %10 : i1
    %16 = arith.extui %15 : i1 to i32
    %c0_i32_6 = arith.constant 0 : i32
    %17 = arith.cmpi ne, %16, %c0_i32_6 : i32
    scf.if %17 {
      %c0 = arith.constant 0 : index
      %c0_9 = arith.constant 0 : index
      %c0_10 = arith.constant 0 : index
      %21 = vector.load %arg3[%c0, %c0_9, %c0_10] : memref<1x8x32xbf16, #tpu.memory_space<vmem>>, vector<1x8x32xbf16>
      %22 = vector.shape_cast %21 : vector<1x8x32xbf16> to vector<8x32xbf16>
      %c0_11 = arith.constant 0 : index
      %c0_12 = arith.constant 0 : index
      %c0_13 = arith.constant 0 : index
      %23 = vector.load %arg4[%c0_11, %c0_12, %c0_13] : memref<1x8x32xbf16, #tpu.memory_space<vmem>>, vector<1x8x32xbf16>
      %24 = vector.shape_cast %23 : vector<1x8x32xbf16> to vector<8x32xbf16>
      %c0_14 = arith.constant 0 : index
      %c0_15 = arith.constant 0 : index
      %c0_16 = arith.constant 0 : index
      %25 = vector.load %arg5[%c0_14, %c0_15, %c0_16] : memref<1x8x32xbf16, #tpu.memory_space<vmem>>, vector<1x8x32xbf16>
      %26 = vector.shape_cast %25 : vector<1x8x32xbf16> to vector<8x32xbf16>
      %cst = arith.constant dense<0.000000e+00> : vector<8x8xf32>
      %27 = tpu.matmul %22, %24, %cst {dimension_numbers = #tpu.dot_dimension_numbers<[1], [1], [0], [0], [0, 0, 1, 0], [], []>} : vector<8x32xbf16>, vector<8x32xbf16>, vector<8x8xf32> -> vector<8x8xf32>
      %28 = tpu.iota {dimensions = array<i32: 0>} : vector<8x8xi32>
      %29 = vector.broadcast %0 : i32 to vector<8x8xi32>
      %30 = arith.addi %29, %28 : vector<8x8xi32>
      %31 = tpu.iota {dimensions = array<i32: 1>} : vector<8x8xi32>
      %32 = vector.broadcast %1 : i32 to vector<8x8xi32>
      %33 = arith.addi %32, %31 : vector<8x8xi32>
      %34 = arith.cmpi sle, %33, %30 : vector<8x8xi32>
      %cst_17 = arith.constant -1.000000e+30 : f32
      %35 = vector.broadcast %cst_17 : f32 to vector<8x8xf32>
      %36 = arith.select %34, %27, %35 : vector<8x8xi1>, vector<8x8xf32>
      %c0_18 = arith.constant 0 : index
      %c0_19 = arith.constant 0 : index
      %37 = vector.load %arg9[%c0_18, %c0_19] : memref<8x1xf32, #tpu.memory_space<vmem>>, vector<8x1xf32>
      %cst_20 = arith.constant dense<0xFF800000> : vector<8xf32>
      %38 = vector.multi_reduction <maximumf>, %36, %cst_20 [1] : vector<8x8xf32> to vector<8xf32>
      %39 = vector.shape_cast %38 : vector<8xf32> to vector<8x1xf32>
      %40 = arith.maximumf %37, %39 : vector<8x1xf32>
      %41 = arith.subf %37, %40 : vector<8x1xf32>
      %42 = math.exp %41 : vector<8x1xf32>
      %43 = vector.broadcast %40 : vector<8x1xf32> to vector<8x8xf32>
      %44 = arith.subf %36, %43 : vector<8x8xf32>
      %45 = math.exp %44 : vector<8x8xf32>
      %c0_21 = arith.constant 0 : index
      %c0_22 = arith.constant 0 : index
      %46 = vector.load %arg10[%c0_21, %c0_22] : memref<8x1xf32, #tpu.memory_space<vmem>>, vector<8x1xf32>
      %47 = arith.mulf %42, %46 : vector<8x1xf32>
      %cst_23 = arith.constant dense<0.000000e+00> : vector<8xf32>
      %48 = vector.multi_reduction <add>, %45, %cst_23 [1] : vector<8x8xf32> to vector<8xf32>
      %49 = vector.shape_cast %48 : vector<8xf32> to vector<8x1xf32>
      %50 = arith.addf %47, %49 : vector<8x1xf32>
      %c0_24 = arith.constant 0 : index
      %c0_25 = arith.constant 0 : index
      %51 = vector.load %arg10[%c0_24, %c0_25] : memref<8x1xf32, #tpu.memory_space<vmem>>, vector<8x1xf32>
      tpu.vector_store %arg10[%c0_24, %c0_25], %50 {strides = array<i32>} : memref<8x1xf32, #tpu.memory_space<vmem>>, vector<8x1xf32>,
      %c0_26 = arith.constant 0 : index
      %c0_27 = arith.constant 0 : index
      %52 = vector.load %arg11[%c0_26, %c0_27] : memref<8x32xf32, #tpu.memory_space<vmem>>, vector<8x32xf32>
      %53 = vector.broadcast %42 : vector<8x1xf32> to vector<8x32xf32>
      %54 = arith.mulf %53, %52 : vector<8x32xf32>
      %55 = arith.truncf %45 : vector<8x8xf32> to vector<8x8xbf16>
      %cst_28 = arith.constant dense<0.000000e+00> : vector<8x32xf32>
      %56 = tpu.matmul %55, %26, %cst_28 {dimension_numbers = #tpu.dot_dimension_numbers<[1], [0], [0], [1], [0, 0, 1, 1], [], []>} : vector<8x8xbf16>, vector<8x32xbf16>, vector<8x32xf32> -> vector<8x32xf32>
      %57 = arith.addf %54, %56 : vector<8x32xf32>
      %c0_29 = arith.constant 0 : index
      %c0_30 = arith.constant 0 : index
      %58 = vector.load %arg11[%c0_29, %c0_30] : memref<8x32xf32, #tpu.memory_space<vmem>>, vector<8x32xf32>
      tpu.vector_store %arg11[%c0_29, %c0_30], %57 {strides = array<i32>} : memref<8x32xf32, #tpu.memory_space<vmem>>, vector<8x32xf32>,
      %c0_31 = arith.constant 0 : index
      %c0_32 = arith.constant 0 : index
      %59 = vector.load %arg9[%c0_31, %c0_32] : memref<8x1xf32, #tpu.memory_space<vmem>>, vector<8x1xf32>
      tpu.vector_store %arg9[%c0_31, %c0_32], %40 {strides = array<i32>} : memref<8x1xf32, #tpu.memory_space<vmem>>, vector<8x1xf32>,
    } else {
    }
    %c0_i32_7 = arith.constant 0 : i32
    %18 = arith.cmpi eq, %arg2, %c0_i32_7 : i32
    %19 = arith.extui %18 : i1 to i32
    %c0_i32_8 = arith.constant 0 : i32
    %20 = arith.cmpi ne, %19, %c0_i32_8 : i32
    scf.if %20 {
      %c0 = arith.constant 0 : index
      %c0_9 = arith.constant 0 : index
      %21 = vector.load %arg10[%c0, %c0_9] : memref<8x1xf32, #tpu.memory_space<vmem>>, vector<8x1xf32>
      %22 = tpu.reciprocal %21 {approx = true} : vector<8x1xf32> -> vector<8x1xf32>
      %c0_10 = arith.constant 0 : index
      %c0_11 = arith.constant 0 : index
      %23 = vector.load %arg11[%c0_10, %c0_11] : memref<8x32xf32, #tpu.memory_space<vmem>>, vector<8x32xf32>
      %24 = vector.broadcast %22 : vector<8x1xf32> to vector<8x32xf32>
      %25 = arith.mulf %23, %24 : vector<8x32xf32>
      %26 = arith.truncf %25 : vector<8x32xf32> to vector<8x32xbf16>
      %c0_12 = arith.constant 0 : index
      %c0_13 = arith.constant 0 : index
      %27 = vector.load %arg7[%c0_12, %c0_13] : memref<32x32xbf16, #tpu.memory_space<vmem>>, vector<32x32xbf16>
      %cst = arith.constant dense<0.000000e+00> : vector<8x32xf32>
      %28 = tpu.matmul %26, %27, %cst {dimension_numbers = #tpu.dot_dimension_numbers<[1], [0], [0], [1], [0, 0, 1, 1], [], []>} : vector<8x32xbf16>, vector<32x32xbf16>, vector<8x32xf32> -> vector<8x32xf32>
      %c0_14 = arith.constant 0 : index
      %c0_15 = arith.constant 0 : index
      %c0_16 = arith.constant 0 : index
      %29 = vector.load %arg6[%c0_14, %c0_15, %c0_16] : memref<1x8x32xf32, #tpu.memory_space<vmem>>, vector<1x8x32xf32>
      %30 = vector.shape_cast %29 : vector<1x8x32xf32> to vector<8x32xf32>
      %31 = arith.addf %30, %28 : vector<8x32xf32>
      %c0_17 = arith.constant 0 : index
      %c0_18 = arith.constant 0 : index
      %c0_19 = arith.constant 0 : index
      %32 = vector.load %arg8[%c0_17, %c0_18, %c0_19] : memref<1x8x32xf32, #tpu.memory_space<vmem>>, vector<1x8x32xf32>
      %33 = vector.shape_cast %32 : vector<1x8x32xf32> to vector<8x32xf32>
      %34 = vector.shape_cast %31 : vector<8x32xf32> to vector<1x8x32xf32>
      tpu.vector_store %arg8[%c0_17, %c0_18, %c0_19], %34 {strides = array<i32>} : memref<1x8x32xf32, #tpu.memory_space<vmem>>, vector<1x8x32xf32>,
    } else {
    }
    return
  }
  func.func @transform_0(%arg0: i32, %arg1: i32, %arg2: i32) -> (i32, i32, i32) {
    %c0_i32 = arith.constant 0 : i32
    %c0_i32_0 = arith.constant 0 : i32
    return %arg0, %arg1, %c0_i32 : i32, i32, i32
  }
  func.func @transform_1(%arg0: i32, %arg1: i32, %arg2: i32) -> (i32, i32, i32) {
    %c0_i32 = arith.constant 0 : i32
    %c0_i32_0 = arith.constant 0 : i32
    return %arg0, %arg2, %c0_i32 : i32, i32, i32
  }
  func.func @transform_2(%arg0: i32, %arg1: i32, %arg2: i32) -> (i32, i32, i32) {
    %c0_i32 = arith.constant 0 : i32
    %c0_i32_0 = arith.constant 0 : i32
    return %arg0, %arg2, %c0_i32 : i32, i32, i32
  }
  func.func @transform_3(%arg0: i32, %arg1: i32, %arg2: i32) -> (i32, i32, i32) {
    %c0_i32 = arith.constant 0 : i32
    %c0_i32_0 = arith.constant 0 : i32
    return %arg0, %arg1, %c0_i32 : i32, i32, i32
  }
  func.func @transform_4(%arg0: i32, %arg1: i32, %arg2: i32) -> (i32, i32) {
    %c0_i32 = arith.constant 0 : i32
    %c0_i32_0 = arith.constant 0 : i32
    %c0_i32_1 = arith.constant 0 : i32
    return %c0_i32, %c0_i32_0 : i32, i32
  }
  func.func @transform_5(%arg0: i32, %arg1: i32, %arg2: i32) -> (i32, i32, i32) {
    %c0_i32 = arith.constant 0 : i32
    %c0_i32_0 = arith.constant 0 : i32
    return %arg0, %arg1, %c0_i32 : i32, i32, i32
  }
}

module attributes {stable_mosaic.version = 11 : i64} {
  func.func @mlp_kernel(%arg0: i32, %arg1: i32, %arg2: i32, %arg3: memref<1x8x32xf32, #tpu.memory_space<vmem>>, %arg4: memref<1x32xf32, #tpu.memory_space<vmem>>, %arg5: memref<32x64xbf16, #tpu.memory_space<vmem>>, %arg6: memref<64x32xbf16, #tpu.memory_space<vmem>>, %arg7: memref<1x8x32xf32, #tpu.memory_space<vmem>>, %arg8: memref<8x32xbf16, #tpu.memory_space<vmem>>, %arg9: memref<8x32xf32, #tpu.memory_space<vmem>>) attributes {dimension_semantics = [#tpu.dimension_semantics<parallel>, #tpu.dimension_semantics<parallel>, #tpu.dimension_semantics<arbitrary>], iteration_bounds = array<i64: 2, 1, 1>, scalar_prefetch = 0 : i64, scratch_operands = 2 : i64, tpu.core_type = #tpu.core_type<tc>, window_params = [{transform_indices = @transform_0, window_bounds = array<i64: 1, 8, 32>}, {pipeline_mode = #tpu.pipeline_mode<synchronous>, transform_indices = @transform_1, window_bounds = array<i64: 1, 32>}, {transform_indices = @transform_2, window_bounds = array<i64: 32, 64>}, {transform_indices = @transform_3, window_bounds = array<i64: 64, 32>}, {transform_indices = @transform_4, window_bounds = array<i64: 1, 8, 32>}]} {
    %c0_i32 = arith.constant 0 : i32
    %0 = arith.cmpi eq, %arg2, %c0_i32 : i32
    %1 = arith.extui %0 : i1 to i32
    %c0_i32_0 = arith.constant 0 : i32
    %2 = arith.cmpi ne, %1, %c0_i32_0 : i32
    scf.if %2 {
      %c0_17 = arith.constant 0 : index
      %c0_18 = arith.constant 0 : index
      %c0_19 = arith.constant 0 : index
      %28 = vector.load %arg3[%c0_17, %c0_18, %c0_19] : memref<1x8x32xf32, #tpu.memory_space<vmem>>, vector<1x8x32xf32>
      %29 = vector.shape_cast %28 : vector<1x8x32xf32> to vector<8x32xf32>
      %30 = arith.mulf %29, %29 : vector<8x32xf32>
      %cst_20 = arith.constant dense<0.000000e+00> : vector<8xf32>
      %31 = vector.multi_reduction <add>, %30, %cst_20 [1] : vector<8x32xf32> to vector<8xf32>
      %32 = vector.shape_cast %31 : vector<8xf32> to vector<8x1xf32>
      %cst_21 = arith.constant 3.200000e+01 : f32
      %33 = vector.broadcast %cst_21 : f32 to vector<8x1xf32>
      %34 = arith.divf %32, %33 : vector<8x1xf32>
      %cst_22 = arith.constant 9.99999997E-7 : f32
      %35 = vector.broadcast %cst_22 : f32 to vector<8x1xf32>
      %36 = arith.addf %34, %35 : vector<8x1xf32>
      %37 = math.rsqrt %36 : vector<8x1xf32>
      %38 = vector.broadcast %37 : vector<8x1xf32> to vector<8x32xf32>
      %39 = arith.mulf %29, %38 : vector<8x32xf32>
      %c0_23 = arith.constant 0 : index
      %c0_24 = arith.constant 0 : index
      %40 = vector.load %arg4[%c0_23, %c0_24] : memref<1x32xf32, #tpu.memory_space<vmem>>, vector<1x32xf32>
      %41 = vector.broadcast %40 : vector<1x32xf32> to vector<8x32xf32>
      %42 = arith.mulf %39, %41 : vector<8x32xf32>
      %43 = arith.truncf %42 : vector<8x32xf32> to vector<8x32xbf16>
      %c0_25 = arith.constant 0 : index
      %c0_26 = arith.constant 0 : index
      %44 = vector.load %arg8[%c0_25, %c0_26] : memref<8x32xbf16, #tpu.memory_space<vmem>>, vector<8x32xbf16>
      tpu.vector_store %arg8[%c0_25, %c0_26], %43 {strides = array<i32>} : memref<8x32xbf16, #tpu.memory_space<vmem>>, vector<8x32xbf16>,
      %c0_27 = arith.constant 0 : index
      %c0_28 = arith.constant 0 : index
      %45 = vector.load %arg9[%c0_27, %c0_28] : memref<8x32xf32, #tpu.memory_space<vmem>>, vector<8x32xf32>
      tpu.vector_store %arg9[%c0_27, %c0_28], %29 {strides = array<i32>} : memref<8x32xf32, #tpu.memory_space<vmem>>, vector<8x32xf32>,
    } else {
    }
    %c0 = arith.constant 0 : index
    %c0_1 = arith.constant 0 : index
    %3 = vector.load %arg8[%c0, %c0_1] : memref<8x32xbf16, #tpu.memory_space<vmem>>, vector<8x32xbf16>
    %c0_2 = arith.constant 0 : index
    %c0_3 = arith.constant 0 : index
    %4 = vector.load %arg5[%c0_2, %c0_3] : memref<32x64xbf16, #tpu.memory_space<vmem>>, vector<32x64xbf16>
    %cst = arith.constant dense<0.000000e+00> : vector<8x64xf32>
    %5 = tpu.matmul %3, %4, %cst {dimension_numbers = #tpu.dot_dimension_numbers<[1], [0], [0], [1], [0, 0, 1, 1], [], []>} : vector<8x32xbf16>, vector<32x64xbf16>, vector<8x64xf32> -> vector<8x64xf32>
    %6 = arith.mulf %5, %5 : vector<8x64xf32>
    %7 = arith.mulf %5, %6 : vector<8x64xf32>
    %cst_4 = arith.constant 4.471500e-02 : f32
    %8 = vector.broadcast %cst_4 : f32 to vector<8x64xf32>
    %9 = arith.mulf %8, %7 : vector<8x64xf32>
    %10 = arith.addf %5, %9 : vector<8x64xf32>
    %cst_5 = arith.constant 0.797884583 : f32
    %11 = vector.broadcast %cst_5 : f32 to vector<8x64xf32>
    %12 = arith.mulf %11, %10 : vector<8x64xf32>
    %13 = math.tanh %12 : vector<8x64xf32>
    %cst_6 = arith.constant 1.000000e+00 : f32
    %14 = vector.broadcast %cst_6 : f32 to vector<8x64xf32>
    %15 = arith.addf %14, %13 : vector<8x64xf32>
    %cst_7 = arith.constant 5.000000e-01 : f32
    %16 = vector.broadcast %cst_7 : f32 to vector<8x64xf32>
    %17 = arith.mulf %16, %15 : vector<8x64xf32>
    %18 = arith.mulf %5, %17 : vector<8x64xf32>
    %c0_8 = arith.constant 0 : index
    %c0_9 = arith.constant 0 : index
    %19 = vector.load %arg9[%c0_8, %c0_9] : memref<8x32xf32, #tpu.memory_space<vmem>>, vector<8x32xf32>
    %20 = arith.truncf %18 : vector<8x64xf32> to vector<8x64xbf16>
    %c0_10 = arith.constant 0 : index
    %c0_11 = arith.constant 0 : index
    %21 = vector.load %arg6[%c0_10, %c0_11] : memref<64x32xbf16, #tpu.memory_space<vmem>>, vector<64x32xbf16>
    %cst_12 = arith.constant dense<0.000000e+00> : vector<8x32xf32>
    %22 = tpu.matmul %20, %21, %cst_12 {dimension_numbers = #tpu.dot_dimension_numbers<[1], [0], [0], [1], [0, 0, 1, 1], [], []>} : vector<8x64xbf16>, vector<64x32xbf16>, vector<8x32xf32> -> vector<8x32xf32>
    %23 = arith.addf %19, %22 : vector<8x32xf32>
    %c0_13 = arith.constant 0 : index
    %c0_14 = arith.constant 0 : index
    %24 = vector.load %arg9[%c0_13, %c0_14] : memref<8x32xf32, #tpu.memory_space<vmem>>, vector<8x32xf32>
    tpu.vector_store %arg9[%c0_13, %c0_14], %23 {strides = array<i32>} : memref<8x32xf32, #tpu.memory_space<vmem>>, vector<8x32xf32>,
    %c0_i32_15 = arith.constant 0 : i32
    %25 = arith.cmpi eq, %arg2, %c0_i32_15 : i32
    %26 = arith.extui %25 : i1 to i32
    %c0_i32_16 = arith.constant 0 : i32
    %27 = arith.cmpi ne, %26, %c0_i32_16 : i32
    scf.if %27 {
      %c0_17 = arith.constant 0 : index
      %c0_18 = arith.constant 0 : index
      %28 = vector.load %arg9[%c0_17, %c0_18] : memref<8x32xf32, #tpu.memory_space<vmem>>, vector<8x32xf32>
      %c0_19 = arith.constant 0 : index
      %c0_20 = arith.constant 0 : index
      %c0_21 = arith.constant 0 : index
      %29 = vector.load %arg7[%c0_19, %c0_20, %c0_21] : memref<1x8x32xf32, #tpu.memory_space<vmem>>, vector<1x8x32xf32>
      %30 = vector.shape_cast %29 : vector<1x8x32xf32> to vector<8x32xf32>
      %31 = vector.shape_cast %28 : vector<8x32xf32> to vector<1x8x32xf32>
      tpu.vector_store %arg7[%c0_19, %c0_20, %c0_21], %31 {strides = array<i32>} : memref<1x8x32xf32, #tpu.memory_space<vmem>>, vector<1x8x32xf32>,
    } else {
    }
    return
  }
  func.func @transform_0(%arg0: i32, %arg1: i32, %arg2: i32) -> (i32, i32, i32) {
    %c0_i32 = arith.constant 0 : i32
    %c0_i32_0 = arith.constant 0 : i32
    return %arg0, %arg1, %c0_i32 : i32, i32, i32
  }
  func.func @transform_1(%arg0: i32, %arg1: i32, %arg2: i32) -> (i32, i32) {
    %c0_i32 = arith.constant 0 : i32
    %c0_i32_0 = arith.constant 0 : i32
    %c0_i32_1 = arith.constant 0 : i32
    return %c0_i32, %c0_i32_0 : i32, i32
  }
  func.func @transform_2(%arg0: i32, %arg1: i32, %arg2: i32) -> (i32, i32) {
    %c0_i32 = arith.constant 0 : i32
    %c0_i32_0 = arith.constant 0 : i32
    return %c0_i32, %arg2 : i32, i32
  }
  func.func @transform_3(%arg0: i32, %arg1: i32, %arg2: i32) -> (i32, i32) {
    %c0_i32 = arith.constant 0 : i32
    %c0_i32_0 = arith.constant 0 : i32
    return %arg2, %c0_i32 : i32, i32
  }
  func.func @transform_4(%arg0: i32, %arg1: i32, %arg2: i32) -> (i32, i32, i32) {
    %c0_i32 = arith.constant 0 : i32
    %c0_i32_0 = arith.constant 0 : i32
    return %arg0, %arg1, %c0_i32 : i32, i32, i32
  }
}

module attributes {stable_mosaic.version = 11 : i64} {
  func.func @attn_kernel(%arg0: i32, %arg1: i32, %arg2: i32, %arg3: memref<1x8x32xbf16, #tpu.memory_space<vmem>>, %arg4: memref<1x8x32xbf16, #tpu.memory_space<vmem>>, %arg5: memref<1x8x32xbf16, #tpu.memory_space<vmem>>, %arg6: memref<1x8x32xf32, #tpu.memory_space<vmem>>, %arg7: memref<32x32xbf16, #tpu.memory_space<vmem>>, %arg8: memref<1x8x32xf32, #tpu.memory_space<vmem>>, %arg9: memref<8x1xf32, #tpu.memory_space<vmem>>, %arg10: memref<8x1xf32, #tpu.memory_space<vmem>>, %arg11: memref<8x32xf32, #tpu.memory_space<vmem>>) attributes {dimension_semantics = [#tpu.dimension_semantics<parallel>, #tpu.dimension_semantics<parallel>, #tpu.dimension_semantics<arbitrary>], iteration_bounds = array<i64: 2, 1, 1>, scalar_prefetch = 0 : i64, scratch_operands = 3 : i64, tpu.core_type = #tpu.core_type<tc>, window_params = [{transform_indices = @transform_0, window_bounds = array<i64: 1, 8, 32>}, {transform_indices = @transform_1, window_bounds = array<i64: 1, 8, 32>}, {transform_indices = @transform_2, window_bounds = array<i64: 1, 8, 32>}, {transform_indices = @transform_3, window_bounds = array<i64: 1, 8, 32>}, {pipeline_mode = #tpu.pipeline_mode<synchronous>, transform_indices = @transform_4, window_bounds = array<i64: 32, 32>}, {transform_indices = @transform_5, window_bounds = array<i64: 1, 8, 32>}]} {
    %c8_i32 = arith.constant 8 : i32
    %0 = arith.muli %arg1, %c8_i32 : i32
    %c8_i32_0 = arith.constant 8 : i32
    %1 = arith.muli %arg2, %c8_i32_0 : i32
    %c0_i32 = arith.constant 0 : i32
    %2 = arith.cmpi eq, %arg2, %c0_i32 : i32
    %3 = arith.extui %2 : i1 to i32
    %c0_i32_1 = arith.constant 0 : i32
    %4 = arith.cmpi ne, %3, %c0_i32_1 : i32
    scf.if %4 {
      %cst = arith.constant -1.000000e+30 : f32
      %21 = vector.broadcast %cst : f32 to vector<8x1xf32>
      %c0 = arith.constant 0 : index
      %c0_9 = arith.constant 0 : index
      %22 = vector.load %arg9[%c0, %c0_9] : memref<8x1xf32, #tpu.memory_space<vmem>>, vector<8x1xf32>
      tpu.vector_store %arg9[%c0, %c0_9], %21 {strides = array<i32>} : memref<8x1xf32, #tpu.memory_space<vmem>>, vector<8x1xf32>,
      %cst_10 = arith.constant 0.000000e+00 : f32
      %23 = vector.broadcast %cst_10 : f32 to vector<8x1xf32>
      %c0_11 = arith.constant 0 : index
      %c0_12 = arith.constant 0 : index
      %24 = vector.load %arg10[%c0_11, %c0_12] : memref<8x1xf32, #tpu.memory_space<vmem>>, vector<8x1xf32>
      tpu.vector_store %arg10[%c0_11, %c0_12], %23 {strides = array<i32>} : memref<8x1xf32, #tpu.memory_space<vmem>>, vector<8x1xf32>,
      %cst_13 = arith.constant 0.000000e+00 : f32
      %25 = vector.broadcast %cst_13 : f32 to vector<8x32xf32>
      %c0_14 = arith.constant 0 : index
      %c0_15 = arith.constant 0 : index
      %26 = vector.load %arg11[%c0_14, %c0_15] : memref<8x32xf32, #tpu.memory_space<vmem>>, vector<8x32xf32>
      tpu.vector_store %arg11[%c0_14, %c0_15], %25 {strides = array<i32>} : memref<8x32xf32, #tpu.memory_space<vmem>>, vector<8x32xf32>,
    } else {
    }
    %c8_i32_2 = arith.constant 8 : i32
    %5 = arith.addi %0, %c8_i32_2 : i32
    %c1_i32 = arith.constant 1 : i32
    %6 = arith.subi %5, %c1_i32 : i32
    %7 = arith.cmpi sle, %1, %6 : i32
    %c8_i32_3 = arith.constant 8 : i32
    %8 = arith.addi %1, %c8_i32_3 : i32
    %c1_i32_4 = arith.constant 1 : i32
    %9 = arith.subi %8, %c1_i32_4 : i32
    %10 = arith.cmpi sgt, %9, %0 : i32
    %true = arith.constant true
    %11 = arith.xori %10, %true : i1
    %12 = arith.andi %7, %11 : i1
    %13 = arith.extui %12 : i1 to i32
    %c0_i32_5 = arith.constant 0 : i32
    %14 = arith.cmpi ne, %13, %c0_i32_5 : i32
    scf.if %14 {
      %c0 = arith.constant 0 : index
      %c0_9 = arith.constant 0 : index
      %c0_10 = arith.constant 0 : index
      %21 = vector.load %arg3[%c0, %c0_9, %c0_10] : memref<1x8x32xbf16, #tpu.memory_space<vmem>>, vector<1x8x32xbf16>
      %22 = vector.shape_cast %21 : vector<1x8x32xbf16> to vector<8x32xbf16>
      %c0_11 = arith.constant 0 : index
      %c0_12 = arith.constant 0 : index
      %c0_13 = arith.constant 0 : index
      %23 = vector.load %arg4[%c0_11, %c0_12, %c0_13] : memref<1x8x32xbf16, #tpu.memory_space<vmem>>, vector<1x8x32xbf16>
      %24 = vector.shape_cast %23 : vector<1x8x32xbf16> to vector<8x32xbf16>
      %c0_14 = arith.constant 0 : index
      %c0_15 = arith.constant 0 : index
      %c0_16 = arith.constant 0 : index
      %25 = vector.load %arg5[%c0_14, %c0_15, %c0_16] : memref<1x8x32xbf16, #tpu.memory_space<vmem>>, vector<1x8x32xbf16>
      %26 = vector.shape_cast %25 : vector<1x8x32xbf16> to vector<8x32xbf16>
      %cst = arith.constant dense<0.000000e+00> : vector<8x8xf32>
      %27 = tpu.matmul %22, %24, %cst {dimension_numbers = #tpu.dot_dimension_numbers<[1], [1], [0], [0], [0, 0, 1, 0], [], []>} : vector<8x32xbf16>, vector<8x32xbf16>, vector<8x8xf32> -> vector<8x8xf32>
      %c0_17 = arith.constant 0 : index
      %c0_18 = arith.constant 0 : index
      %28 = vector.load %arg9[%c0_17, %c0_18] : memref<8x1xf32, #tpu.memory_space<vmem>>, vector<8x1xf32>
      %cst_19 = arith.constant dense<0xFF800000> : vector<8xf32>
      %29 = vector.multi_reduction <maximumf>, %27, %cst_19 [1] : vector<8x8xf32> to vector<8xf32>
      %30 = vector.shape_cast %29 : vector<8xf32> to vector<8x1xf32>
      %31 = arith.maximumf %28, %30 : vector<8x1xf32>
      %32 = arith.subf %28, %31 : vector<8x1xf32>
      %33 = math.exp %32 : vector<8x1xf32>
      %34 = vector.broadcast %31 : vector<8x1xf32> to vector<8x8xf32>
      %35 = arith.subf %27, %34 : vector<8x8xf32>
      %36 = math.exp %35 : vector<8x8xf32>
      %c0_20 = arith.constant 0 : index
      %c0_21 = arith.constant 0 : index
      %37 = vector.load %arg10[%c0_20, %c0_21] : memref<8x1xf32, #tpu.memory_space<vmem>>, vector<8x1xf32>
      %38 = arith.mulf %33, %37 : vector<8x1xf32>
      %cst_22 = arith.constant dense<0.000000e+00> : vector<8xf32>
      %39 = vector.multi_reduction <add>, %36, %cst_22 [1] : vector<8x8xf32> to vector<8xf32>
      %40 = vector.shape_cast %39 : vector<8xf32> to vector<8x1xf32>
      %41 = arith.addf %38, %40 : vector<8x1xf32>
      %c0_23 = arith.constant 0 : index
      %c0_24 = arith.constant 0 : index
      %42 = vector.load %arg10[%c0_23, %c0_24] : memref<8x1xf32, #tpu.memory_space<vmem>>, vector<8x1xf32>
      tpu.vector_store %arg10[%c0_23, %c0_24], %41 {strides = array<i32>} : memref<8x1xf32, #tpu.memory_space<vmem>>, vector<8x1xf32>,
      %c0_25 = arith.constant 0 : index
      %c0_26 = arith.constant 0 : index
      %43 = vector.load %arg11[%c0_25, %c0_26] : memref<8x32xf32, #tpu.memory_space<vmem>>, vector<8x32xf32>
      %44 = vector.broadcast %33 : vector<8x1xf32> to vector<8x32xf32>
      %45 = arith.mulf %44, %43 : vector<8x32xf32>
      %46 = arith.truncf %36 : vector<8x8xf32> to vector<8x8xbf16>
      %cst_27 = arith.constant dense<0.000000e+00> : vector<8x32xf32>
      %47 = tpu.matmul %46, %26, %cst_27 {dimension_numbers = #tpu.dot_dimension_numbers<[1], [0], [0], [1], [0, 0, 1, 1], [], []>} : vector<8x8xbf16>, vector<8x32xbf16>, vector<8x32xf32> -> vector<8x32xf32>
      %48 = arith.addf %45, %47 : vector<8x32xf32>
      %c0_28 = arith.constant 0 : index
      %c0_29 = arith.constant 0 : index
      %49 = vector.load %arg11[%c0_28, %c0_29] : memref<8x32xf32, #tpu.memory_space<vmem>>, vector<8x32xf32>
      tpu.vector_store %arg11[%c0_28, %c0_29], %48 {strides = array<i32>} : memref<8x32xf32, #tpu.memory_space<vmem>>, vector<8x32xf32>,
      %c0_30 = arith.constant 0 : index
      %c0_31 = arith.constant 0 : index
      %50 = vector.load %arg9[%c0_30, %c0_31] : memref<8x1xf32, #tpu.memory_space<vmem>>, vector<8x1xf32>
      tpu.vector_store %arg9[%c0_30, %c0_31], %31 {strides = array<i32>} : memref<8x1xf32, #tpu.memory_space<vmem>>, vector<8x1xf32>,
    } else {
    }
    %15 = arith.andi %7, %10 : i1
    %16 = arith.extui %15 : i1 to i32
    %c0_i32_6 = arith.constant 0 : i32
    %17 = arith.cmpi ne, %16, %c0_i32_6 : i32
    scf.if %17 {
      %c0 = arith.constant 0 : index
      %c0_9 = arith.constant 0 : index
      %c0_10 = arith.constant 0 : index
      %21 = vector.load %arg3[%c0, %c0_9, %c0_10] : memref<1x8x32xbf16, #tpu.memory_space<vmem>>, vector<1x8x32xbf16>
      %22 = vector.shape_cast %21 : vector<1x8x32xbf16> to vector<8x32xbf16>
      %c0_11 = arith.constant 0 : index
      %c0_12 = arith.constant 0 : index
      %c0_13 = arith.constant 0 : index
      %23 = vector.load %arg4[%c0_11, %c0_12, %c0_13] : memref<1x8x32xbf16, #tpu.memory_space<vmem>>, vector<1x8x32xbf16>
      %24 = vector.shape_cast %23 : vector<1x8x32xbf16> to vector<8x32xbf16>
      %c0_14 = arith.constant 0 : index
      %c0_15 = arith.constant 0 : index
      %c0_16 = arith.constant 0 : index
      %25 = vector.load %arg5[%c0_14, %c0_15, %c0_16] : memref<1x8x32xbf16, #tpu.memory_space<vmem>>, vector<1x8x32xbf16>
      %26 = vector.shape_cast %25 : vector<1x8x32xbf16> to vector<8x32xbf16>
      %cst = arith.constant dense<0.000000e+00> : vector<8x8xf32>
      %27 = tpu.matmul %22, %24, %cst {dimension_numbers = #tpu.dot_dimension_numbers<[1], [1], [0], [0], [0, 0, 1, 0], [], []>} : vector<8x32xbf16>, vector<8x32xbf16>, vector<8x8xf32> -> vector<8x8xf32>
      %28 = tpu.iota {dimensions = array<i32: 0>} : vector<8x8xi32>
      %29 = vector.broadcast %0 : i32 to vector<8x8xi32>
      %30 = arith.addi %29, %28 : vector<8x8xi32>
      %31 = tpu.iota {dimensions = array<i32: 1>} : vector<8x8xi32>
      %32 = vector.broadcast %1 : i32 to vector<8x8xi32>
      %33 = arith.addi %32, %31 : vector<8x8xi32>
      %34 = arith.cmpi sle, %33, %30 : vector<8x8xi32>
      %cst_17 = arith.constant -1.000000e+30 : f32
      %35 = vector.broadcast %cst_17 : f32 to vector<8x8xf32>
      %36 = arith.select %34, %27, %35 : vector<8x8xi1>, vector<8x8xf32>
      %c0_18 = arith.constant 0 : index
      %c0_19 = arith.constant 0 : index
      %37 = vector.load %arg9[%c0_18, %c0_19] : memref<8x1xf32, #tpu.memory_space<vmem>>, vector<8x1xf32>
      %cst_20 = arith.constant dense<0xFF800000> : vector<8xf32>
      %38 = vector.multi_reduction <maximumf>, %36, %cst_20 [1] : vector<8x8xf32> to vector<8xf32>
      %39 = vector.shape_cast %38 : vector<8xf32> to vector<8x1xf32>
      %40 = arith.maximumf %37, %39 : vector<8x1xf32>
      %41 = arith.subf %37, %40 : vector<8x1xf32>
      %42 = math.exp %41 : vector<8x1xf32>
      %43 = vector.broadcast %40 : vector<8x1xf32> to vector<8x8xf32>
      %44 = arith.subf %36, %43 : vector<8x8xf32>
      %45 = math.exp %44 : vector<8x8xf32>
      %c0_21 = arith.constant 0 : index
      %c0_22 = arith.constant 0 : index
      %46 = vector.load %arg10[%c0_21, %c0_22] : memref<8x1xf32, #tpu.memory_space<vmem>>, vector<8x1xf32>
      %47 = arith.mulf %42, %46 : vector<8x1xf32>
      %cst_23 = arith.constant dense<0.000000e+00> : vector<8xf32>
      %48 = vector.multi_reduction <add>, %45, %cst_23 [1] : vector<8x8xf32> to vector<8xf32>
      %49 = vector.shape_cast %48 : vector<8xf32> to vector<8x1xf32>
      %50 = arith.addf %47, %49 : vector<8x1xf32>
      %c0_24 = arith.constant 0 : index
      %c0_25 = arith.constant 0 : index
      %51 = vector.load %arg10[%c0_24, %c0_25] : memref<8x1xf32, #tpu.memory_space<vmem>>, vector<8x1xf32>
      tpu.vector_store %arg10[%c0_24, %c0_25], %50 {strides = array<i32>} : memref<8x1xf32, #tpu.memory_space<vmem>>, vector<8x1xf32>,
      %c0_26 = arith.constant 0 : index
      %c0_27 = arith.constant 0 : index
      %52 = vector.load %arg11[%c0_26, %c0_27] : memref<8x32xf32, #tpu.memory_space<vmem>>, vector<8x32xf32>
      %53 = vector.broadcast %42 : vector<8x1xf32> to vector<8x32xf32>
      %54 = arith.mulf %53, %52 : vector<8x32xf32>
      %55 = arith.truncf %45 : vector<8x8xf32> to vector<8x8xbf16>
      %cst_28 = arith.constant dense<0.000000e+00> : vector<8x32xf32>
      %56 = tpu.matmul %55, %26, %cst_28 {dimension_numbers = #tpu.dot_dimension_numbers<[1], [0], [0], [1], [0, 0, 1, 1], [], []>} : vector<8x8xbf16>, vector<8x32xbf16>, vector<8x32xf32> -> vector<8x32xf32>
      %57 = arith.addf %54, %56 : vector<8x32xf32>
      %c0_29 = arith.constant 0 : index
      %c0_30 = arith.constant 0 : index
      %58 = vector.load %arg11[%c0_29, %c0_30] : memref<8x32xf32, #tpu.memory_space<vmem>>, vector<8x32xf32>
      tpu.vector_store %arg11[%c0_29, %c0_30], %57 {strides = array<i32>} : memref<8x32xf32, #tpu.memory_space<vmem>>, vector<8x32xf32>,
      %c0_31 = arith.constant 0 : index
      %c0_32 = arith.constant 0 : index
      %59 = vector.load %arg9[%c0_31, %c0_32] : memref<8x1xf32, #tpu.memory_space<vmem>>, vector<8x1xf32>
      tpu.vector_store %arg9[%c0_31, %c0_32], %40 {strides = array<i32>} : memref<8x1xf32, #tpu.memory_space<vmem>>, vector<8x1xf32>,
    } else {
    }
    %c0_i32_7 = arith.constant 0 : i32
    %18 = arith.cmpi eq, %arg2, %c0_i32_7 : i32
    %19 = arith.extui %18 : i1 to i32
    %c0_i32_8 = arith.constant 0 : i32
    %20 = arith.cmpi ne, %19, %c0_i32_8 : i32
    scf.if %20 {
      %c0 = arith.constant 0 : index
      %c0_9 = arith.constant 0 : index
      %21 = vector.load %arg10[%c0, %c0_9] : memref<8x1xf32, #tpu.memory_space<vmem>>, vector<8x1xf32>
      %22 = tpu.reciprocal %21 {approx = true} : vector<8x1xf32> -> vector<8x1xf32>
      %c0_10 = arith.constant 0 : index
      %c0_11 = arith.constant 0 : index
      %23 = vector.load %arg11[%c0_10, %c0_11] : memref<8x32xf32, #tpu.memory_space<vmem>>, vector<8x32xf32>
      %24 = vector.broadcast %22 : vector<8x1xf32> to vector<8x32xf32>
      %25 = arith.mulf %23, %24 : vector<8x32xf32>
      %26 = arith.truncf %25 : vector<8x32xf32> to vector<8x32xbf16>
      %c0_12 = arith.constant 0 : index
      %c0_13 = arith.constant 0 : index
      %27 = vector.load %arg7[%c0_12, %c0_13] : memref<32x32xbf16, #tpu.memory_space<vmem>>, vector<32x32xbf16>
      %cst = arith.constant dense<0.000000e+00> : vector<8x32xf32>
      %28 = tpu.matmul %26, %27, %cst {dimension_numbers = #tpu.dot_dimension_numbers<[1], [0], [0], [1], [0, 0, 1, 1], [], []>} : vector<8x32xbf16>, vector<32x32xbf16>, vector<8x32xf32> -> vector<8x32xf32>
      %c0_14 = arith.constant 0 : index
      %c0_15 = arith.constant 0 : index
      %c0_16 = arith.constant 0 : index
      %29 = vector.load %arg6[%c0_14, %c0_15, %c0_16] : memref<1x8x32xf32, #tpu.memory_space<vmem>>, vector<1x8x32xf32>
      %30 = vector.shape_cast %29 : vector<1x8x32xf32> to vector<8x32xf32>
      %31 = arith.addf %30, %28 : vector<8x32xf32>
      %c0_17 = arith.constant 0 : index
      %c0_18 = arith.constant 0 : index
      %c0_19 = arith.constant 0 : index
      %32 = vector.load %arg8[%c0_17, %c0_18, %c0_19] : memref<1x8x32xf32, #tpu.memory_space<vmem>>, vector<1x8x32xf32>
      %33 = vector.shape_cast %32 : vector<1x8x32xf32> to vector<8x32xf32>
      %34 = vector.shape_cast %31 : vector<8x32xf32> to vector<1x8x32xf32>
      tpu.vector_store %arg8[%c0_17, %c0_18, %c0_19], %34 {strides = array<i32>} : memref<1x8x32xf32, #tpu.memory_space<vmem>>, vector<1x8x32xf32>,
    } else {
    }
    return
  }
  func.func @transform_0(%arg0: i32, %arg1: i32, %arg2: i32) -> (i32, i32, i32) {
    %c0_i32 = arith.constant 0 : i32
    %c0_i32_0 = arith.constant 0 : i32
    return %arg0, %arg1, %c0_i32 : i32, i32, i32
  }
  func.func @transform_1(%arg0: i32, %arg1: i32, %arg2: i32) -> (i32, i32, i32) {
    %c0_i32 = arith.constant 0 : i32
    %c0_i32_0 = arith.constant 0 : i32
    return %arg0, %arg2, %c0_i32 : i32, i32, i32
  }
  func.func @transform_2(%arg0: i32, %arg1: i32, %arg2: i32) -> (i32, i32, i32) {
    %c0_i32 = arith.constant 0 : i32
    %c0_i32_0 = arith.constant 0 : i32
    return %arg0, %arg2, %c0_i32 : i32, i32, i32
  }
  func.func @transform_3(%arg0: i32, %arg1: i32, %arg2: i32) -> (i32, i32, i32) {
    %c0_i32 = arith.constant 0 : i32
    %c0_i32_0 = arith.constant 0 : i32
    return %arg0, %arg1, %c0_i32 : i32, i32, i32
  }
  func.func @transform_4(%arg0: i32, %arg1: i32, %arg2: i32) -> (i32, i32) {
    %c0_i32 = arith.constant 0 : i32
    %c0_i32_0 = arith.constant 0 : i32
    %c0_i32_1 = arith.constant 0 : i32
    return %c0_i32, %c0_i32_0 : i32, i32
  }
  func.func @transform_5(%arg0: i32, %arg1: i32, %arg2: i32) -> (i32, i32, i32) {
    %c0_i32 = arith.constant 0 : i32
    %c0_i32_0 = arith.constant 0 : i32
    return %arg0, %arg1, %c0_i32 : i32, i32, i32
  }
}

module attributes {stable_mosaic.version = 11 : i64} {
  func.func @mlp_kernel(%arg0: i32, %arg1: i32, %arg2: i32, %arg3: memref<1x8x32xf32, #tpu.memory_space<vmem>>, %arg4: memref<1x32xf32, #tpu.memory_space<vmem>>, %arg5: memref<32x64xbf16, #tpu.memory_space<vmem>>, %arg6: memref<64x32xbf16, #tpu.memory_space<vmem>>, %arg7: memref<1x8x32xf32, #tpu.memory_space<vmem>>, %arg8: memref<8x32xbf16, #tpu.memory_space<vmem>>, %arg9: memref<8x32xf32, #tpu.memory_space<vmem>>) attributes {dimension_semantics = [#tpu.dimension_semantics<parallel>, #tpu.dimension_semantics<parallel>, #tpu.dimension_semantics<arbitrary>], iteration_bounds = array<i64: 2, 1, 1>, scalar_prefetch = 0 : i64, scratch_operands = 2 : i64, tpu.core_type = #tpu.core_type<tc>, window_params = [{transform_indices = @transform_0, window_bounds = array<i64: 1, 8, 32>}, {pipeline_mode = #tpu.pipeline_mode<synchronous>, transform_indices = @transform_1, window_bounds = array<i64: 1, 32>}, {transform_indices = @transform_2, window_bounds = array<i64: 32, 64>}, {transform_indices = @transform_3, window_bounds = array<i64: 64, 32>}, {transform_indices = @transform_4, window_bounds = array<i64: 1, 8, 32>}]} {
    %c0_i32 = arith.constant 0 : i32
    %0 = arith.cmpi eq, %arg2, %c0_i32 : i32
    %1 = arith.extui %0 : i1 to i32
    %c0_i32_0 = arith.constant 0 : i32
    %2 = arith.cmpi ne, %1, %c0_i32_0 : i32
    scf.if %2 {
      %c0_17 = arith.constant 0 : index
      %c0_18 = arith.constant 0 : index
      %c0_19 = arith.constant 0 : index
      %28 = vector.load %arg3[%c0_17, %c0_18, %c0_19] : memref<1x8x32xf32, #tpu.memory_space<vmem>>, vector<1x8x32xf32>
      %29 = vector.shape_cast %28 : vector<1x8x32xf32> to vector<8x32xf32>
      %30 = arith.mulf %29, %29 : vector<8x32xf32>
      %cst_20 = arith.constant dense<0.000000e+00> : vector<8xf32>
      %31 = vector.multi_reduction <add>, %30, %cst_20 [1] : vector<8x32xf32> to vector<8xf32>
      %32 = vector.shape_cast %31 : vector<8xf32> to vector<8x1xf32>
      %cst_21 = arith.constant 3.200000e+01 : f32
      %33 = vector.broadcast %cst_21 : f32 to vector<8x1xf32>
      %34 = arith.divf %32, %33 : vector<8x1xf32>
      %cst_22 = arith.constant 9.99999997E-7 : f32
      %35 = vector.broadcast %cst_22 : f32 to vector<8x1xf32>
      %36 = arith.addf %34, %35 : vector<8x1xf32>
      %37 = math.rsqrt %36 : vector<8x1xf32>
      %38 = vector.broadcast %37 : vector<8x1xf32> to vector<8x32xf32>
      %39 = arith.mulf %29, %38 : vector<8x32xf32>
      %c0_23 = arith.constant 0 : index
      %c0_24 = arith.constant 0 : index
      %40 = vector.load %arg4[%c0_23, %c0_24] : memref<1x32xf32, #tpu.memory_space<vmem>>, vector<1x32xf32>
      %41 = vector.broadcast %40 : vector<1x32xf32> to vector<8x32xf32>
      %42 = arith.mulf %39, %41 : vector<8x32xf32>
      %43 = arith.truncf %42 : vector<8x32xf32> to vector<8x32xbf16>
      %c0_25 = arith.constant 0 : index
      %c0_26 = arith.constant 0 : index
      %44 = vector.load %arg8[%c0_25, %c0_26] : memref<8x32xbf16, #tpu.memory_space<vmem>>, vector<8x32xbf16>
      tpu.vector_store %arg8[%c0_25, %c0_26], %43 {strides = array<i32>} : memref<8x32xbf16, #tpu.memory_space<vmem>>, vector<8x32xbf16>,
      %c0_27 = arith.constant 0 : index
      %c0_28 = arith.constant 0 : index
      %45 = vector.load %arg9[%c0_27, %c0_28] : memref<8x32xf32, #tpu.memory_space<vmem>>, vector<8x32xf32>
      tpu.vector_store %arg9[%c0_27, %c0_28], %29 {strides = array<i32>} : memref<8x32xf32, #tpu.memory_space<vmem>>, vector<8x32xf32>,
    } else {
    }
    %c0 = arith.constant 0 : index
    %c0_1 = arith.constant 0 : index
    %3 = vector.load %arg8[%c0, %c0_1] : memref<8x32xbf16, #tpu.memory_space<vmem>>, vector<8x32xbf16>
    %c0_2 = arith.constant 0 : index
    %c0_3 = arith.constant 0 : index
    %4 = vector.load %arg5[%c0_2, %c0_3] : memref<32x64xbf16, #tpu.memory_space<vmem>>, vector<32x64xbf16>
    %cst = arith.constant dense<0.000000e+00> : vector<8x64xf32>
    %5 = tpu.matmul %3, %4, %cst {dimension_numbers = #tpu.dot_dimension_numbers<[1], [0], [0], [1], [0, 0, 1, 1], [], []>} : vector<8x32xbf16>, vector<32x64xbf16>, vector<8x64xf32> -> vector<8x64xf32>
    %6 = arith.mulf %5, %5 : vector<8x64xf32>
    %7 = arith.mulf %5, %6 : vector<8x64xf32>
    %cst_4 = arith.constant 4.471500e-02 : f32
    %8 = vector.broadcast %cst_4 : f32 to vector<8x64xf32>
    %9 = arith.mulf %8, %7 : vector<8x64xf32>
    %10 = arith.addf %5, %9 : vector<8x64xf32>
    %cst_5 = arith.constant 0.797884583 : f32
    %11 = vector.broadcast %cst_5 : f32 to vector<8x64xf32>
    %12 = arith.mulf %11, %10 : vector<8x64xf32>
    %13 = math.tanh %12 : vector<8x64xf32>
    %cst_6 = arith.constant 1.000000e+00 : f32
    %14 = vector.broadcast %cst_6 : f32 to vector<8x64xf32>
    %15 = arith.addf %14, %13 : vector<8x64xf32>
    %cst_7 = arith.constant 5.000000e-01 : f32
    %16 = vector.broadcast %cst_7 : f32 to vector<8x64xf32>
    %17 = arith.mulf %16, %15 : vector<8x64xf32>
    %18 = arith.mulf %5, %17 : vector<8x64xf32>
    %c0_8 = arith.constant 0 : index
    %c0_9 = arith.constant 0 : index
    %19 = vector.load %arg9[%c0_8, %c0_9] : memref<8x32xf32, #tpu.memory_space<vmem>>, vector<8x32xf32>
    %20 = arith.truncf %18 : vector<8x64xf32> to vector<8x64xbf16>
    %c0_10 = arith.constant 0 : index
    %c0_11 = arith.constant 0 : index
    %21 = vector.load %arg6[%c0_10, %c0_11] : memref<64x32xbf16, #tpu.memory_space<vmem>>, vector<64x32xbf16>
    %cst_12 = arith.constant dense<0.000000e+00> : vector<8x32xf32>
    %22 = tpu.matmul %20, %21, %cst_12 {dimension_numbers = #tpu.dot_dimension_numbers<[1], [0], [0], [1], [0, 0, 1, 1], [], []>} : vector<8x64xbf16>, vector<64x32xbf16>, vector<8x32xf32> -> vector<8x32xf32>
    %23 = arith.addf %19, %22 : vector<8x32xf32>
    %c0_13 = arith.constant 0 : index
    %c0_14 = arith.constant 0 : index
    %24 = vector.load %arg9[%c0_13, %c0_14] : memref<8x32xf32, #tpu.memory_space<vmem>>, vector<8x32xf32>
    tpu.vector_store %arg9[%c0_13, %c0_14], %23 {strides = array<i32>} : memref<8x32xf32, #tpu.memory_space<vmem>>, vector<8x32xf32>,
    %c0_i32_15 = arith.constant 0 : i32
    %25 = arith.cmpi eq, %arg2, %c0_i32_15 : i32
    %26 = arith.extui %25 : i1 to i32
    %c0_i32_16 = arith.constant 0 : i32
    %27 = arith.cmpi ne, %26, %c0_i32_16 : i32
    scf.if %27 {
      %c0_17 = arith.constant 0 : index
      %c0_18 = arith.constant 0 : index
      %28 = vector.load %arg9[%c0_17, %c0_18] : memref<8x32xf32, #tpu.memory_space<vmem>>, vector<8x32xf32>
      %c0_19 = arith.constant 0 : index
      %c0_20 = arith.constant 0 : index
      %c0_21 = arith.constant 0 : index
      %29 = vector.load %arg7[%c0_19, %c0_20, %c0_21] : memref<1x8x32xf32, #tpu.memory_space<vmem>>, vector<1x8x32xf32>
      %30 = vector.shape_cast %29 : vector<1x8x32xf32> to vector<8x32xf32>
      %31 = vector.shape_cast %28 : vector<8x32xf32> to vector<1x8x32xf32>
      tpu.vector_store %arg7[%c0_19, %c0_20, %c0_21], %31 {strides = array<i32>} : memref<1x8x32xf32, #tpu.memory_space<vmem>>, vector<1x8x32xf32>,
    } else {
    }
    return
  }
  func.func @transform_0(%arg0: i32, %arg1: i32, %arg2: i32) -> (i32, i32, i32) {
    %c0_i32 = arith.constant 0 : i32
    %c0_i32_0 = arith.constant 0 : i32
    return %arg0, %arg1, %c0_i32 : i32, i32, i32
  }
  func.func @transform_1(%arg0: i32, %arg1: i32, %arg2: i32) -> (i32, i32) {
    %c0_i32 = arith.constant 0 : i32
    %c0_i32_0 = arith.constant 0 : i32
    %c0_i32_1 = arith.constant 0 : i32
    return %c0_i32, %c0_i32_0 : i32, i32
  }
  func.func @transform_2(%arg0: i32, %arg1: i32, %arg2: i32) -> (i32, i32) {
    %c0_i32 = arith.constant 0 : i32
    %c0_i32_0 = arith.constant 0 : i32
    return %c0_i32, %arg2 : i32, i32
  }
  func.func @transform_3(%arg0: i32, %arg1: i32, %arg2: i32) -> (i32, i32) {
    %c0_i32 = arith.constant 0 : i32
    %c0_i32_0 = arith.constant 0 : i32
    return %arg2, %c0_i32 : i32, i32
  }
  func.func @transform_4(%arg0: i32, %arg1: i32, %arg2: i32) -> (i32, i32, i32) {
    %c0_i32 = arith.constant 0 : i32
    %c0_i32_0 = arith.constant 0 : i32
    return %arg0, %arg1, %c0_i32 : i32, i32, i32
  }
}

module attributes {stable_mosaic.version = 11 : i64} {
  func.func @qkv_kernel(%arg0: i32, %arg1: i32, %arg2: memref<1x8x32xf32, #tpu.memory_space<vmem>>, %arg3: memref<1x32xf32, #tpu.memory_space<vmem>>, %arg4: memref<32x32xbf16, #tpu.memory_space<vmem>>, %arg5: memref<32x32xbf16, #tpu.memory_space<vmem>>, %arg6: memref<32x32xbf16, #tpu.memory_space<vmem>>, %arg7: memref<1x8x32xbf16, #tpu.memory_space<vmem>>, %arg8: memref<1x8x32xbf16, #tpu.memory_space<vmem>>, %arg9: memref<1x8x32xbf16, #tpu.memory_space<vmem>>) attributes {dimension_semantics = [#tpu.dimension_semantics<parallel>, #tpu.dimension_semantics<parallel>], iteration_bounds = array<i64: 2, 1>, scalar_prefetch = 0 : i64, scratch_operands = 0 : i64, tpu.core_type = #tpu.core_type<tc>, window_params = [{transform_indices = @transform_0, window_bounds = array<i64: 1, 8, 32>}, {pipeline_mode = #tpu.pipeline_mode<synchronous>, transform_indices = @transform_1, window_bounds = array<i64: 1, 32>}, {pipeline_mode = #tpu.pipeline_mode<synchronous>, transform_indices = @transform_2, window_bounds = array<i64: 32, 32>}, {pipeline_mode = #tpu.pipeline_mode<synchronous>, transform_indices = @transform_3, window_bounds = array<i64: 32, 32>}, {pipeline_mode = #tpu.pipeline_mode<synchronous>, transform_indices = @transform_4, window_bounds = array<i64: 32, 32>}, {transform_indices = @transform_5, window_bounds = array<i64: 1, 8, 32>}, {transform_indices = @transform_6, window_bounds = array<i64: 1, 8, 32>}, {transform_indices = @transform_7, window_bounds = array<i64: 1, 8, 32>}]} {
    %c0 = arith.constant 0 : index
    %c0_0 = arith.constant 0 : index
    %c0_1 = arith.constant 0 : index
    %0 = vector.load %arg2[%c0, %c0_0, %c0_1] : memref<1x8x32xf32, #tpu.memory_space<vmem>>, vector<1x8x32xf32>
    %1 = vector.shape_cast %0 : vector<1x8x32xf32> to vector<8x32xf32>
    %2 = arith.mulf %1, %1 : vector<8x32xf32>
    %cst = arith.constant dense<0.000000e+00> : vector<8xf32>
    %3 = vector.multi_reduction <add>, %2, %cst [1] : vector<8x32xf32> to vector<8xf32>
    %4 = vector.shape_cast %3 : vector<8xf32> to vector<8x1xf32>
    %cst_2 = arith.constant 3.200000e+01 : f32
    %5 = vector.broadcast %cst_2 : f32 to vector<8x1xf32>
    %6 = arith.divf %4, %5 : vector<8x1xf32>
    %cst_3 = arith.constant 9.99999997E-7 : f32
    %7 = vector.broadcast %cst_3 : f32 to vector<8x1xf32>
    %8 = arith.addf %6, %7 : vector<8x1xf32>
    %9 = math.rsqrt %8 : vector<8x1xf32>
    %10 = vector.broadcast %9 : vector<8x1xf32> to vector<8x32xf32>
    %11 = arith.mulf %1, %10 : vector<8x32xf32>
    %c0_4 = arith.constant 0 : index
    %c0_5 = arith.constant 0 : index
    %12 = vector.load %arg3[%c0_4, %c0_5] : memref<1x32xf32, #tpu.memory_space<vmem>>, vector<1x32xf32>
    %13 = vector.broadcast %12 : vector<1x32xf32> to vector<8x32xf32>
    %14 = arith.mulf %11, %13 : vector<8x32xf32>
    %15 = arith.truncf %14 : vector<8x32xf32> to vector<8x32xbf16>
    %c0_6 = arith.constant 0 : index
    %c0_7 = arith.constant 0 : index
    %16 = vector.load %arg4[%c0_6, %c0_7] : memref<32x32xbf16, #tpu.memory_space<vmem>>, vector<32x32xbf16>
    %cst_8 = arith.constant dense<0.000000e+00> : vector<8x32xf32>
    %17 = tpu.matmul %15, %16, %cst_8 {dimension_numbers = #tpu.dot_dimension_numbers<[1], [0], [0], [1], [0, 0, 1, 1], [], []>} : vector<8x32xbf16>, vector<32x32xbf16>, vector<8x32xf32> -> vector<8x32xf32>
    %cst_9 = arith.constant 0.176776692 : f32
    %18 = vector.broadcast %cst_9 : f32 to vector<8x32xf32>
    %19 = arith.mulf %17, %18 : vector<8x32xf32>
    %20 = arith.truncf %19 : vector<8x32xf32> to vector<8x32xbf16>
    %c0_10 = arith.constant 0 : index
    %c0_11 = arith.constant 0 : index
    %c0_12 = arith.constant 0 : index
    %21 = vector.load %arg7[%c0_10, %c0_11, %c0_12] : memref<1x8x32xbf16, #tpu.memory_space<vmem>>, vector<1x8x32xbf16>
    %22 = vector.shape_cast %21 : vector<1x8x32xbf16> to vector<8x32xbf16>
    %23 = vector.shape_cast %20 : vector<8x32xbf16> to vector<1x8x32xbf16>
    tpu.vector_store %arg7[%c0_10, %c0_11, %c0_12], %23 {strides = array<i32>} : memref<1x8x32xbf16, #tpu.memory_space<vmem>>, vector<1x8x32xbf16>,
    %c0_13 = arith.constant 0 : index
    %c0_14 = arith.constant 0 : index
    %24 = vector.load %arg5[%c0_13, %c0_14] : memref<32x32xbf16, #tpu.memory_space<vmem>>, vector<32x32xbf16>
    %cst_15 = arith.constant dense<0.000000e+00> : vector<8x32xf32>
    %25 = tpu.matmul %15, %24, %cst_15 {dimension_numbers = #tpu.dot_dimension_numbers<[1], [0], [0], [1], [0, 0, 1, 1], [], []>} : vector<8x32xbf16>, vector<32x32xbf16>, vector<8x32xf32> -> vector<8x32xf32>
    %26 = arith.truncf %25 : vector<8x32xf32> to vector<8x32xbf16>
    %c0_16 = arith.constant 0 : index
    %c0_17 = arith.constant 0 : index
    %c0_18 = arith.constant 0 : index
    %27 = vector.load %arg8[%c0_16, %c0_17, %c0_18] : memref<1x8x32xbf16, #tpu.memory_space<vmem>>, vector<1x8x32xbf16>
    %28 = vector.shape_cast %27 : vector<1x8x32xbf16> to vector<8x32xbf16>
    %29 = vector.shape_cast %26 : vector<8x32xbf16> to vector<1x8x32xbf16>
    tpu.vector_store %arg8[%c0_16, %c0_17, %c0_18], %29 {strides = array<i32>} : memref<1x8x32xbf16, #tpu.memory_space<vmem>>, vector<1x8x32xbf16>,
    %c0_19 = arith.constant 0 : index
    %c0_20 = arith.constant 0 : index
    %30 = vector.load %arg6[%c0_19, %c0_20] : memref<32x32xbf16, #tpu.memory_space<vmem>>, vector<32x32xbf16>
    %cst_21 = arith.constant dense<0.000000e+00> : vector<8x32xf32>
    %31 = tpu.matmul %15, %30, %cst_21 {dimension_numbers = #tpu.dot_dimension_numbers<[1], [0], [0], [1], [0, 0, 1, 1], [], []>} : vector<8x32xbf16>, vector<32x32xbf16>, vector<8x32xf32> -> vector<8x32xf32>
    %32 = arith.truncf %31 : vector<8x32xf32> to vector<8x32xbf16>
    %c0_22 = arith.constant 0 : index
    %c0_23 = arith.constant 0 : index
    %c0_24 = arith.constant 0 : index
    %33 = vector.load %arg9[%c0_22, %c0_23, %c0_24] : memref<1x8x32xbf16, #tpu.memory_space<vmem>>, vector<1x8x32xbf16>
    %34 = vector.shape_cast %33 : vector<1x8x32xbf16> to vector<8x32xbf16>
    %35 = vector.shape_cast %32 : vector<8x32xbf16> to vector<1x8x32xbf16>
    tpu.vector_store %arg9[%c0_22, %c0_23, %c0_24], %35 {strides = array<i32>} : memref<1x8x32xbf16, #tpu.memory_space<vmem>>, vector<1x8x32xbf16>,
    return
  }
  func.func @transform_0(%arg0: i32, %arg1: i32) -> (i32, i32, i32) {
    %c0_i32 = arith.constant 0 : i32
    %c0_i32_0 = arith.constant 0 : i32
    return %arg0, %arg1, %c0_i32 : i32, i32, i32
  }
  func.func @transform_1(%arg0: i32, %arg1: i32) -> (i32, i32) {
    %c0_i32 = arith.constant 0 : i32
    %c0_i32_0 = arith.constant 0 : i32
    %c0_i32_1 = arith.constant 0 : i32
    return %c0_i32, %c0_i32_0 : i32, i32
  }
  func.func @transform_2(%arg0: i32, %arg1: i32) -> (i32, i32) {
    %c0_i32 = arith.constant 0 : i32
    %c0_i32_0 = arith.constant 0 : i32
    %c0_i32_1 = arith.constant 0 : i32
    return %c0_i32, %c0_i32_0 : i32, i32
  }
  func.func @transform_3(%arg0: i32, %arg1: i32) -> (i32, i32) {
    %c0_i32 = arith.constant 0 : i32
    %c0_i32_0 = arith.constant 0 : i32
    %c0_i32_1 = arith.constant 0 : i32
    return %c0_i32, %c0_i32_0 : i32, i32
  }
  func.func @transform_4(%arg0: i32, %arg1: i32) -> (i32, i32) {
    %c0_i32 = arith.constant 0 : i32
    %c0_i32_0 = arith.constant 0 : i32
    %c0_i32_1 = arith.constant 0 : i32
    return %c0_i32, %c0_i32_0 : i32, i32
  }
  func.func @transform_5(%arg0: i32, %arg1: i32) -> (i32, i32, i32) {
    %c0_i32 = arith.constant 0 : i32
    %c0_i32_0 = arith.constant 0 : i32
    return %arg0, %arg1, %c0_i32 : i32, i32, i32
  }
  func.func @transform_6(%arg0: i32, %arg1: i32) -> (i32, i32, i32) {
    %c0_i32 = arith.constant 0 : i32
    %c0_i32_0 = arith.constant 0 : i32
    return %arg0, %arg1, %c0_i32 : i32, i32, i32
  }
  func.func @transform_7(%arg0: i32, %arg1: i32) -> (i32, i32, i32) {
    %c0_i32 = arith.constant 0 : i32
    %c0_i32_0 = arith.constant 0 : i32
    return %arg0, %arg1, %c0_i32 : i32, i32, i32
  }
}

</mosaic_0001>

<llo_original>
// kernel: forward.4
$region0: #{forward.4}
  #allocation0 [shape = 'u32[]', space=smem, size = 0x4, offset = 0x4, fixed_abs, tag = 'smem constant byte address 0x4 - core index']
  #allocation1 [shape = 'u32[144,128]{1,0:T(1,128)}', space=vmem, size = 0x12000, scoped, tag = 'internal scratch']
  #allocation2 [shape = 'f32[8,1]{1,0:T(8,128)}', space=vmem, size = 0x1000, scoped, tag = 'scratch operand']
  #allocation3 [shape = 'f32[8,1]{1,0:T(8,128)}', space=vmem, size = 0x1000, scoped, tag = 'scratch operand']
  #allocation4 [shape = 'f32[8,32]{1,0:T(8,128)}', space=vmem, size = 0x1000, scoped, tag = 'scratch operand']
  %s0 = inlined_call_operand.vmem [shape: bf16[2,8,32], index: 0, kind: input, shape index: {}]
  %s1 = inlined_call_operand.vmem [shape: bf16[2,8,32], index: 1, kind: input, shape index: {}]
  %s2 = inlined_call_operand.vmem [shape: bf16[2,8,32], index: 2, kind: input, shape index: {}]
  %s3 = inlined_call_operand.vmem [shape: f32[2,8,32], index: 3, kind: input, shape index: {}]
  %s4 = inlined_call_operand.vmem [shape: bf16[32,32], index: 4, kind: input, shape index: {}]
  %s5 = inlined_call_operand.vmem [shape: f32[2,8,32], index: 5, kind: output, shape index: {}]
  %s6 = sld [smem:[#allocation0]]
  $region69: #{forward.4} parent=0
    _
  %s8 = ssub.s32 1, %s6
  %s9 = scalar_select 0, %s8, %s6
  loop: start=0, step=1, limit=4
  $region2: #{forward.4} parent=0 // loop_pre_header
    _
  $region3: #{forward.4} parent=0 // loop_header
    %s11 = sphi 0, %s15
    %p12 = scmp.ge.s32.totalorder %s11, 4
    %s18 = sphi 0, %s37
    %s19 = sphi 0, %s33
    %s20 = sphi 0, %s29
    %s21 = sphi 0, %s18
    %s22 = sphi 0, %s19
    %s23 = sphi 0, %s20
    %s24 = sphi 0, %s21
    %s25 = sphi 0, %s22
    %s26 = sphi 0, %s23
    %s42 = sphi 0, %s44
    %s45 = sphi 0, %s42
    %s46 = sphi 0, %s45
    %s62 = sphi 0, %s46
    %s70 = sphi 0, %s72
    %s73 = sphi 0, %s70
    %s74 = sphi 0, %s73
    %s90 = sphi 0, %s74
    %s98 = sphi 0, %s100
    %s101 = sphi 0, %s98
    %s102 = sphi 0, %s101
    %s118 = sphi 0, %s102
    %s126 = sphi 0, %s128
    %s129 = sphi 0, %s126
    %s130 = sphi 0, %s129
    %s146 = sphi 0, %s130
    %s150 = sphi 0, %s150
    %s152 = sphi 0, %s150
    %s153 = sphi 0, %s152
    %s167 = sphi 0, %s153
    %s175 = sphi 0, %s177
    %s178 = sphi 0, %s175
    %s179 = sphi 0, %s178
    %s195 = sphi 0, %s179
  $region4: #{forward.4} parent=0 // loop_header_branch
    %14 = sbr.rel (%p12) target = $region8
  $region5: #{forward.4} parent=0 // loop_body
    %s16 = ssub.s32 %s11, 1
    %s17 = ssub.s32 %s11, 2
    %s27 = sadd.s32 1, %s20
    %p28 = scmp.ge.s32.totalorder %s27, 1
    %s29 = scalar_select %p28, 0, %s27
    %s30 = sadd.s32 1, %s19
    %s31 = scalar_select %p28, %s30, %s19
    %p32 = scmp.ge.s32.totalorder %s31, 1
    %s33 = scalar_select %p32, 0, %s31
    %s34 = sadd.s32 1, %s18
    %s35 = scalar_select %p32, %s34, %s18
    %p36 = scmp.ge.s32.totalorder %s35, 2
    %s37 = scalar_select %p36, 0, %s35
    %s38 = ssub.s32 %s18, %s37
    %s39 = ssub.s32 %s19, %s33
    %s40 = sor.u32 %s38, %s39
    %p41 = scmp.eq.s32.totalorder %s40, 0
    %s43 = sadd.s32 %s42, 1
    %s44 = scalar_select %p41, %s42, %s43
    %p47 = pneg %p41
    %p48 = scmp.eq.s32.totalorder %s11, 1
    %p49 = por %p47, %p48
    %p50 = scmp.ne.s32.totalorder %s42, %s45
    %p51 = scmp.eq.s32.totalorder %s11, 0
    %p52 = por %p50, %p51
    %p53 = scmp.ne.s32.totalorder %s42, %s45
    %p54 = scmp.eq.s32.totalorder %s16, 1
    %p55 = por %p53, %p54
    %p56 = scmp.ne.s32.totalorder %s45, %s46
    %p57 = scmp.eq.s32.totalorder %s16, 0
    %p58 = por %p56, %p57
    %p59 = scmp.ne.s32.totalorder %s45, %s46
    %p60 = scmp.eq.s32.totalorder %s17, 1
    %p61 = por %p59, %p60
    %p63 = scmp.ne.s32.totalorder %s46, %s62
    %p64 = scmp.eq.s32.totalorder %s17, 0
    %p65 = por %p63, %p64
    %s66 = ssub.s32 %s18, %s37
    %s67 = ssub.s32 %s20, %s29
    %s68 = sor.u32 %s66, %s67
    %p69 = scmp.eq.s32.totalorder %s68, 0
    %s71 = sadd.s32 %s70, 1
    %s72 = scalar_select %p69, %s70, %s71
    %p75 = pneg %p69
    %p76 = scmp.eq.s32.totalorder %s11, 1
    %p77 = por %p75, %p76
    %p78 = scmp.ne.s32.totalorder %s70, %s73
    %p79 = scmp.eq.s32.totalorder %s11, 0
    %p80 = por %p78, %p79
    %p81 = scmp.ne.s32.totalorder %s70, %s73
    %p82 = scmp.eq.s32.totalorder %s16, 1
    %p83 = por %p81, %p82
    %p84 = scmp.ne.s32.totalorder %s73, %s74
    %p85 = scmp.eq.s32.totalorder %s16, 0
    %p86 = por %p84, %p85
    %p87 = scmp.ne.s32.totalorder %s73, %s74
    %p88 = scmp.eq.s32.totalorder %s17, 1
    %p89 = por %p87, %p88
    %p91 = scmp.ne.s32.totalorder %s74, %s90
    %p92 = scmp.eq.s32.totalorder %s17, 0
    %p93 = por %p91, %p92
    %s94 = ssub.s32 %s18, %s37
    %s95 = ssub.s32 %s20, %s29
    %s96 = sor.u32 %s94, %s95
    %p97 = scmp.eq.s32.totalorder %s96, 0
    %s99 = sadd.s32 %s98, 1
    %s100 = scalar_select %p97, %s98, %s99
    %p103 = pneg %p97
    %p104 = scmp.eq.s32.totalorder %s11, 1
    %p105 = por %p103, %p104
    %p106 = scmp.ne.s32.totalorder %s98, %s101
    %p107 = scmp.eq.s32.totalorder %s11, 0
    %p108 = por %p106, %p107
    %p109 = scmp.ne.s32.totalorder %s98, %s101
    %p110 = scmp.eq.s32.totalorder %s16, 1
    %p111 = por %p109, %p110
    %p112 = scmp.ne.s32.totalorder %s101, %s102
    %p113 = scmp.eq.s32.totalorder %s16, 0
    %p114 = por %p112, %p113
    %p115 = scmp.ne.s32.totalorder %s101, %s102
    %p116 = scmp.eq.s32.totalorder %s17, 1
    %p117 = por %p115, %p116
    %p119 = scmp.ne.s32.totalorder %s102, %s118
    %p120 = scmp.eq.s32.totalorder %s17, 0
    %p121 = por %p119, %p120
    %s122 = ssub.s32 %s18, %s37
    %s123 = ssub.s32 %s19, %s33
    %s124 = sor.u32 %s122, %s123
    %p125 = scmp.eq.s32.totalorder %s124, 0
    %s127 = sadd.s32 %s126, 1
    %s128 = scalar_select %p125, %s126, %s127
    %p131 = pneg %p125
    %p132 = scmp.eq.s32.totalorder %s11, 1
    %p133 = por %p131, %p132
    %p134 = scmp.ne.s32.totalorder %s126, %s129
    %p135 = scmp.eq.s32.totalorder %s11, 0
    %p136 = por %p134, %p135
    %p137 = scmp.ne.s32.totalorder %s126, %s129
    %p138 = scmp.eq.s32.totalorder %s16, 1
    %p139 = por %p137, %p138
    %p140 = scmp.ne.s32.totalorder %s129, %s130
    %p141 = scmp.eq.s32.totalorder %s16, 0
    %p142 = por %p140, %p141
    %p143 = scmp.ne.s32.totalorder %s129, %s130
    %p144 = scmp.eq.s32.totalorder %s17, 1
    %p145 = por %p143, %p144
    %p147 = scmp.ne.s32.totalorder %s130, %s146
    %p148 = scmp.eq.s32.totalorder %s17, 0
    %p149 = por %p147, %p148
    %s151 = sadd.s32 %s150, 1
    %p154 = scmp.eq.s32.totalorder %s11, 1
    %p155 = scmp.ne.s32.totalorder %s150, %s152
    %p156 = scmp.eq.s32.totalorder %s11, 0
    %p157 = por %p155, %p156
    %p158 = scmp.ne.s32.totalorder %s150, %s152
    %p159 = scmp.eq.s32.totalorder %s16, 1
    %p160 = por %p158, %p159
    %p161 = scmp.ne.s32.totalorder %s152, %s153
    %p162 = scmp.eq.s32.totalorder %s16, 0
    %p163 = por %p161, %p162
    %p164 = scmp.ne.s32.totalorder %s152, %s153
    %p165 = scmp.eq.s32.totalorder %s17, 1
    %p166 = por %p164, %p165
    %p168 = scmp.ne.s32.totalorder %s153, %s167
    %p169 = scmp.eq.s32.totalorder %s17, 0
    %p170 = por %p168, %p169
    %s171 = ssub.s32 %s18, %s37
    %s172 = ssub.s32 %s19, %s33
    %s173 = sor.u32 %s171, %s172
    %p174 = scmp.eq.s32.totalorder %s173, 0
    %s176 = sadd.s32 %s175, 1
    %s177 = scalar_select %p174, %s175, %s176
    %p180 = pneg %p174
    %p181 = scmp.eq.s32.totalorder %s11, 1
    %p182 = por %p180, %p181
    %p183 = scmp.ne.s32.totalorder %s175, %s178
    %p184 = scmp.eq.s32.totalorder %s11, 0
    %p185 = por %p183, %p184
    %p186 = scmp.ne.s32.totalorder %s175, %s178
    %p187 = scmp.eq.s32.totalorder %s16, 1
    %p188 = por %p186, %p187
    %p189 = scmp.ne.s32.totalorder %s178, %s179
    %p190 = scmp.eq.s32.totalorder %s16, 0
    %p191 = por %p189, %p190
    %p192 = scmp.ne.s32.totalorder %s178, %s179
    %p193 = scmp.eq.s32.totalorder %s17, 1
    %p194 = por %p192, %p193
    %p196 = scmp.ne.s32.totalorder %s179, %s195
    %p197 = scmp.eq.s32.totalorder %s17, 0
    %p198 = por %p196, %p197
    %p199 = scmp.le.s32.totalorder 1, %s11
    %p200 = scmp.lt.s32.totalorder %s11, 3
    %p201 = pnand %p199, %p200
    %p202 = pneg %p201
    // Predicated region
    $region9: #{forward.4} parent=5 // pred_check
      _
    $region10: #{forward.4} parent=5 // pred_check_branch
      %204 = sbr.rel (%p201) target = $region12
    $region11: #{forward.4} parent=5 // pred_region
      %s205 = ssub.s32 %s11, 1
      // Predicated region
      $region13: #{forward.4} parent=11 // pred_check
        %p206 = pneg %p163
      $region14: #{forward.4} parent=11 // pred_check_branch
        %208 = sbr.rel (%p206) target = $region16
      $region15: #{forward.4} parent=11 // pred_region
        _
      $region16: #{forward.4} parent=11 // pred_fallthru
        _
    $region12: #{forward.4} parent=5 // pred_fallthru
      _
    %p209 = scmp.lt.s32.totalorder %s11, 2
    // Predicated region
    $region17: #{forward.4} parent=5 // pred_check
      %p210 = pneg %p209
    $region18: #{forward.4} parent=5 // pred_check_branch
      %212 = sbr.rel (%p210) target = $region20
    $region19: #{forward.4} parent=5 // pred_region
      // Predicated region
      $region21: #{forward.4} parent=19 // pred_check
        %p213 = pneg %p52
      $region22: #{forward.4} parent=19 // pred_check_branch
        %215 = sbr.rel (%p213) target = $region24
      $region23: #{forward.4} parent=19 // pred_region
        %p216 = scmp.lt.s32.totalorder %s18, 1
        %s217 = scalar_select %p216, %s18, 1
        %p218 = scmp.lt.s32.totalorder %s19, 0
        %s219 = scalar_select %p218, %s19, 0
        %s220 = sadd.s32 %s219, %s217
        %s221 = smul.addr %s220, 4
        %s222 = scalar_lea.vmem %s0, %s221
      $region24: #{forward.4} parent=19 // pred_fallthru
        _
      // Predicated region
      $region25: #{forward.4} parent=19 // pred_check
        %p223 = pneg %p80
      $region26: #{forward.4} parent=19 // pred_check_branch
        %225 = sbr.rel (%p223) target = $region28
      $region27: #{forward.4} parent=19 // pred_region
        %p226 = scmp.lt.s32.totalorder %s18, 1
        %s227 = scalar_select %p226, %s18, 1
        %p228 = scmp.lt.s32.totalorder %s20, 0
        %s229 = scalar_select %p228, %s20, 0
        %s230 = sadd.s32 %s229, %s227
        %s231 = smul.addr %s230, 4
        %s232 = scalar_lea.vmem %s1, %s231
      $region28: #{forward.4} parent=19 // pred_fallthru
        _
      // Predicated region
      $region29: #{forward.4} parent=19 // pred_check
        %p233 = pneg %p108
      $region30: #{forward.4} parent=19 // pred_check_branch
        %235 = sbr.rel (%p233) target = $region32
      $region31: #{forward.4} parent=19 // pred_region
        %p236 = scmp.lt.s32.totalorder %s18, 1
        %s237 = scalar_select %p236, %s18, 1
        %p238 = scmp.lt.s32.totalorder %s20, 0
        %s239 = scalar_select %p238, %s20, 0
        %s240 = sadd.s32 %s239, %s237
        %s241 = smul.addr %s240, 4
        %s242 = scalar_lea.vmem %s2, %s241
      $region32: #{forward.4} parent=19 // pred_fallthru
        _
      // Predicated region
      $region33: #{forward.4} parent=19 // pred_check
        %p243 = pneg %p136
      $region34: #{forward.4} parent=19 // pred_check_branch
        %245 = sbr.rel (%p243) target = $region36
      $region35: #{forward.4} parent=19 // pred_region
        %p246 = scmp.lt.s32.totalorder %s18, 1
        %s247 = scalar_select %p246, %s18, 1
        %p248 = scmp.lt.s32.totalorder %s19, 0
        %s249 = scalar_select %p248, %s19, 0
        %s250 = sadd.s32 %s249, %s247
        %s251 = smul.addr %s250, 8
        %s252 = scalar_lea.vmem %s3, %s251
      $region36: #{forward.4} parent=19 // pred_fallthru
        _
    $region20: #{forward.4} parent=5 // pred_fallthru
      _
    %p253 = scmp.le.s32.totalorder 1, %s11
    %p254 = scmp.lt.s32.totalorder %s11, 3
    %p255 = pnand %p253, %p254
    %p256 = pneg %p255
    // Predicated region
    $region37: #{forward.4} parent=5 // pred_check
      _
    $region38: #{forward.4} parent=5 // pred_check_branch
      %258 = sbr.rel (%p255) target = $region40
    $region39: #{forward.4} parent=5 // pred_region
      %s259 = ssub.s32 %s11, 1
      %p260 = scmp.lt.s32.totalorder %s21, 1
      %s261 = scalar_select %p260, %s21, 1
      %p262 = scmp.lt.s32.totalorder %s22, 0
      %s263 = scalar_select %p262, %s22, 0
      %s264 = sadd.s32 %s263, %s261
      %s265 = smul.addr %s264, 4
      %s266 = scalar_lea.vmem %s0, %s265
      %p267 = pneg %p58
      %p268 = pneg %p55
      %p269 = scmp.lt.s32.totalorder %s21, 1
      %s270 = scalar_select %p269, %s21, 1
      %p271 = scmp.lt.s32.totalorder %s23, 0
      %s272 = scalar_select %p271, %s23, 0
      %s273 = sadd.s32 %s272, %s270
      %s274 = smul.addr %s273, 4
      %s275 = scalar_lea.vmem %s1, %s274
      %p276 = pneg %p86
      %p277 = pneg %p83
      %p278 = scmp.lt.s32.totalorder %s21, 1
      %s279 = scalar_select %p278, %s21, 1
      %p280 = scmp.lt.s32.totalorder %s23, 0
      %s281 = scalar_select %p280, %s23, 0
      %s282 = sadd.s32 %s281, %s279
      %s283 = smul.addr %s282, 4
      %s284 = scalar_lea.vmem %s2, %s283
      %p285 = pneg %p114
      %p286 = pneg %p111
      %p287 = scmp.lt.s32.totalorder %s21, 1
      %s288 = scalar_select %p287, %s21, 1
      %p289 = scmp.lt.s32.totalorder %s22, 0
      %s290 = scalar_select %p289, %s22, 0
      %s291 = sadd.s32 %s290, %s288
      %s292 = smul.addr %s291, 8
      %s293 = scalar_lea.vmem %s3, %s292
      %p294 = pneg %p142
      %p295 = pneg %p139
      %p296 = pneg %p163
      %p297 = pneg %p160
      %p298 = pneg %p191
      %p299 = pneg %p188
      %p300 = scmp.lt.s32.totalorder %s21, 1
      %s301 = scalar_select %p300, %s21, 1
      %p302 = scmp.lt.s32.totalorder %s22, 0
      %s303 = scalar_select %p302, %s22, 0
      %s304 = sadd.s32 %s303, %s301
      %s305 = smul.addr %s304, 8
      %s306 = scalar_lea.vmem %s5, %s305
      %p307 = scmp.lt.s32.totalorder %s21, 1
      %s308 = scalar_select %p307, %s21, 1
      %p309 = scmp.lt.s32.totalorder %s22, 0
      %s310 = scalar_select %p309, %s22, 0
      %s311 = sadd.s32 %s310, %s308
      %s312 = smul.addr %s311, 4
      %s313 = scalar_lea.vmem %s0, %s312
      %p314 = scmp.lt.s32.totalorder %s21, 1
      %s315 = scalar_select %p314, %s21, 1
      %p316 = scmp.lt.s32.totalorder %s23, 0
      %s317 = scalar_select %p316, %s23, 0
      %s318 = sadd.s32 %s317, %s315
      %s319 = smul.addr %s318, 4
      %s320 = scalar_lea.vmem %s1, %s319
      %p321 = scmp.lt.s32.totalorder %s21, 1
      %s322 = scalar_select %p321, %s21, 1
      %p323 = scmp.lt.s32.totalorder %s23, 0
      %s324 = scalar_select %p323, %s23, 0
      %s325 = sadd.s32 %s324, %s322
      %s326 = smul.addr %s325, 4
      %s327 = scalar_lea.vmem %s2, %s326
      %p328 = scmp.lt.s32.totalorder %s21, 1
      %s329 = scalar_select %p328, %s21, 1
      %p330 = scmp.lt.s32.totalorder %s22, 0
      %s331 = scalar_select %p330, %s22, 0
      %s332 = sadd.s32 %s331, %s329
      %s333 = smul.addr %s332, 8
      %s334 = scalar_lea.vmem %s3, %s333
      %p335 = scmp.lt.s32.totalorder %s21, 1
      %s336 = scalar_select %p335, %s21, 1
      %p337 = scmp.lt.s32.totalorder %s22, 0
      %s338 = scalar_select %p337, %s22, 0
      %s339 = sadd.s32 %s338, %s336
      %s340 = smul.addr %s339, 8
      %s341 = scalar_lea.vmem %s5, %s340
      %s343 = smul.u32 %s22, 8
      %s344 = smul.u32 %s23, 8
      %p345 = scmp.eq.s32.totalorder %s23, 0
      // Predicated region
      $region41: #{forward.4} parent=39 // pred_check
        %p346 = pneg %p345
      $region42: #{forward.4} parent=39 // pred_check_branch
        %348 = sbr.rel (%p346) target = $region44
      $region43: #{forward.4} parent=39 // pred_region
        %vm349 = vcmask 7168
        %350 = vst.msk [vmem:[#allocation2] sm:$0xff] %vm349, -1e+30
        %351 = vst.msk [vmem:[#allocation3] sm:$0xff] %vm349, 0.0
        %vm352 = vcmask 261120
        %353 = vst.msk [vmem:[#allocation4] sm:$0xff] %vm352, 0.0
      $region44: #{forward.4} parent=39 // pred_fallthru
        _
      %s354 = sadd.s32 %s343, 7
      %p355 = scmp.le.s32.totalorder %s344, %s354
      %s356 = sadd.s32 %s344, 7
      %p357 = scmp.gt.s32.totalorder %s356, %s343
      %p358 = scmp.le.s32.totalorder %s356, %s343
      %p359 = pnand %p355, %p358
      %p360 = pneg %p359
      // Predicated region
      $region45: #{forward.4} parent=39 // pred_check
        _
      $region46: #{forward.4} parent=39 // pred_check_branch
        %362 = sbr.rel (%p359) target = $region48
      $region47: #{forward.4} parent=39 // pred_region
        %v363 = vld [vmem:[%s313] sm:$0xf]
        %v364 = vld [vmem:[%s320] sm:$0xf]
        %v365 = vld [vmem:[%s327] sm:$0xf]
        %vm366 = vcmask 261120
        %v368 = vsel %vm366, %v363, 0
        %v371 = vsel %vm366, %v364, 0
        %373 = vmatprep.subr.bf16.mxu0 0
        %374 = vmatpush1.bf16.xpose.msra.mxu0 %v371
        %375 = vmatprep.subr.bf16.mxu0 0
        %376 = vmatpush1.bf16.xpose.msra.mxu0 0
        %377 = vmatprep.subr.bf16.mxu0 0
        %378 = vmatpush1.bf16.xpose.msra.mxu0 0
        %379 = vmatprep.subr.bf16.mxu0 0
        %380 = vmatpush1.bf16.xpose.msra.mxu0 0
        %381 = vmatprep.subr.bf16.mxu0 0
        %382 = vmatpush1.bf16.xpose.msra.mxu0 0
        %383 = vmatprep.subr.bf16.mxu0 0
        %384 = vmatpush1.bf16.xpose.msra.mxu0 0
        %385 = vmatprep.subr.bf16.mxu0 0
        %386 = vmatpush1.bf16.xpose.msra.mxu0 0
        %387 = vmatprep.subr.bf16.mxu0 0
        %388 = vmatpush1.bf16.xpose.msra.mxu0 0
        %389 = vmatprep.subr.bf16.mxu0 0
        %390 = vmatpush1.bf16.xpose.msra.mxu0 0
        %391 = vmatprep.subr.bf16.mxu0 0
        %392 = vmatpush1.bf16.xpose.msra.mxu0 0
        %393 = vmatprep.subr.bf16.mxu0 0
        %394 = vmatpush1.bf16.xpose.msra.mxu0 0
        %395 = vmatprep.subr.bf16.mxu0 0
        %396 = vmatpush1.bf16.xpose.msra.mxu0 0
        %397 = vmatprep.subr.bf16.mxu0 0
        %398 = vmatpush1.bf16.xpose.msra.mxu0 0
        %399 = vmatprep.subr.bf16.mxu0 0
        %400 = vmatpush1.bf16.xpose.msra.mxu0 0
        %401 = vmatprep.subr.bf16.mxu0 0
        %402 = vmatpush1.bf16.xpose.msra.mxu0 0
        %403 = vmatprep.subr.bf16.mxu0 0
        %404 = vmatpush1.bf16.xpose.msra.mxu0 0
        %405 = vmatprep.mubr.bf16.mxu0 0
        %406 = vmatmul.mubr.bf16.gmra.mrb[0].mxu0 %v368
        %v407 = vpop.f32.mrb[0].mxu0
        %v408 = vadd.f32 0.0, %v407
        %v409 = vpop.f32.mrb[0].mxu0
        %v410 = vpop.f32.mrb[0].mxu0
        %v411 = vpop.f32.mrb[0].mxu0
        %412 = vdwg.mxu0
        %v413 = vld [vmem:[#allocation2] sm:$0xff]
        %vm414 = vcmask 64512
        %v415 = vsel %vm414, %v408, -inf
        %416 = vmax.xlane.f32.xlu0 %v415
        %v417 = vpop.xlane.xlu0 %416
        %v418 = vmax.f32 %v413, %v417
        %v419 = vsub.f32 %v413, %v418
        %v420 = vmul.f32 %v419, 1.442695
        %v421 = vpow.pop %v420
        %423 = vset.pattern.permute.xlu0 0
        %424 = vperm.xlu0 %423, %v418
        %v425 = vpop.permute.xlu0 %424
        %v427 = vsub.f32 %v408, %v425
        %v428 = vmul.f32 %v427, 1.442695
        %v429 = vpow.pop %v428
        %v430 = vld [vmem:[#allocation3] sm:$0xff]
        %v431 = vmul.f32 %v421, %v430
        %v432 = vsel %vm414, %v429, 0.0
        %433 = vadd.xlane.f32.xlu0 %v432
        %v434 = vpop.xlane.xlu0 %433
        %v435 = vadd.f32 %v431, %v434
        %vm436 = vcmask 7168
        %437 = vst.msk [vmem:[#allocation3] sm:$0xff] %vm436, %v435
        %v438 = vld [vmem:[#allocation4] sm:$0xff]
        %440 = vset.pattern.permute.xlu0 0
        %441 = vperm.xlu0 %440, %v421
        %v442 = vpop.permute.xlu0 %441
        %v444 = vmul.f32 %v442, %v438
        %v445 = vpack.c.bf16 %v429, %v429
        %v447 = vsel %vm414, %v445, 0
        %vm449 = vcmask 1043456
        %v451 = vsel %vm449, %v365, 0
        %453 = vmatprep.subr.bf16.mxu0 0
        %454 = vmatpush1.bf16.msra.mxu0 %v451
        %455 = vmatprep.subr.bf16.mxu0 0
        %456 = vmatpush1.bf16.msra.mxu0 0
        %457 = vmatprep.subr.bf16.mxu0 0
        %458 = vmatpush1.bf16.msra.mxu0 0
        %459 = vmatprep.subr.bf16.mxu0 0
        %460 = vmatpush1.bf16.msra.mxu0 0
        %461 = vmatprep.subr.bf16.mxu0 0
        %462 = vmatpush1.bf16.msra.mxu0 0
        %463 = vmatprep.subr.bf16.mxu0 0
        %464 = vmatpush1.bf16.msra.mxu0 0
        %465 = vmatprep.subr.bf16.mxu0 0
        %466 = vmatpush1.bf16.msra.mxu0 0
        %467 = vmatprep.subr.bf16.mxu0 0
        %468 = vmatpush1.bf16.msra.mxu0 0
        %469 = vmatprep.subr.bf16.mxu0 0
        %470 = vmatpush1.bf16.msra.mxu0 0
        %471 = vmatprep.subr.bf16.mxu0 0
        %472 = vmatpush1.bf16.msra.mxu0 0
        %473 = vmatprep.subr.bf16.mxu0 0
        %474 = vmatpush1.bf16.msra.mxu0 0
        %475 = vmatprep.subr.bf16.mxu0 0
        %476 = vmatpush1.bf16.msra.mxu0 0
        %477 = vmatprep.subr.bf16.mxu0 0
        %478 = vmatpush1.bf16.msra.mxu0 0
        %479 = vmatprep.subr.bf16.mxu0 0
        %480 = vmatpush1.bf16.msra.mxu0 0
        %481 = vmatprep.subr.bf16.mxu0 0
        %482 = vmatpush1.bf16.msra.mxu0 0
        %483 = vmatprep.subr.bf16.mxu0 0
        %484 = vmatpush1.bf16.msra.mxu0 0
        %485 = vmatprep.mubr.bf16.mxu0 0
        %486 = vmatmul.mubr.bf16.gmra.mrb[0].mxu0 %v447
        %v487 = vpop.f32.mrb[0].mxu0
        %v488 = vadd.f32 0.0, %v487
        %v489 = vpop.f32.mrb[0].mxu0
        %v490 = vpop.f32.mrb[0].mxu0
        %v491 = vpop.f32.mrb[0].mxu0
        %492 = vdwg.mxu0
        %v493 = vadd.f32 %v444, %v488
        %494 = vst.msk [vmem:[#allocation4] sm:$0xff] %vm366, %v493
        %495 = vst.msk [vmem:[#allocation2] sm:$0xff] %vm436, %v418
      $region48: #{forward.4} parent=39 // pred_fallthru
        _
      %p496 = pnand %p355, %p357
      %p497 = pneg %p496
      // Predicated region
      $region49: #{forward.4} parent=39 // pred_check
        _
      $region50: #{forward.4} parent=39 // pred_check_branch
        %499 = sbr.rel (%p496) target = $region52
      $region51: #{forward.4} parent=39 // pred_region
        %v500 = vld [vmem:[%s313] sm:$0xf]
        %v501 = vld [vmem:[%s320] sm:$0xf]
        %v502 = vld [vmem:[%s327] sm:$0xf]
        %vm503 = vcmask 261120
        %v505 = vsel %vm503, %v500, 0
        %v508 = vsel %vm503, %v501, 0
        %510 = vmatprep.subr.bf16.mxu0 0
        %511 = vmatpush1.bf16.xpose.msra.mxu0 %v508
        %512 = vmatprep.subr.bf16.mxu0 0
        %513 = vmatpush1.bf16.xpose.msra.mxu0 0
        %514 = vmatprep.subr.bf16.mxu0 0
        %515 = vmatpush1.bf16.xpose.msra.mxu0 0
        %516 = vmatprep.subr.bf16.mxu0 0
        %517 = vmatpush1.bf16.xpose.msra.mxu0 0
        %518 = vmatprep.subr.bf16.mxu0 0
        %519 = vmatpush1.bf16.xpose.msra.mxu0 0
        %520 = vmatprep.subr.bf16.mxu0 0
        %521 = vmatpush1.bf16.xpose.msra.mxu0 0
        %522 = vmatprep.subr.bf16.mxu0 0
        %523 = vmatpush1.bf16.xpose.msra.mxu0 0
        %524 = vmatprep.subr.bf16.mxu0 0
        %525 = vmatpush1.bf16.xpose.msra.mxu0 0
        %526 = vmatprep.subr.bf16.mxu0 0
        %527 = vmatpush1.bf16.xpose.msra.mxu0 0
        %528 = vmatprep.subr.bf16.mxu0 0
        %529 = vmatpush1.bf16.xpose.msra.mxu0 0
        %530 = vmatprep.subr.bf16.mxu0 0
        %531 = vmatpush1.bf16.xpose.msra.mxu0 0
        %532 = vmatprep.subr.bf16.mxu0 0
        %533 = vmatpush1.bf16.xpose.msra.mxu0 0
        %534 = vmatprep.subr.bf16.mxu0 0
        %535 = vmatpush1.bf16.xpose.msra.mxu0 0
        %536 = vmatprep.subr.bf16.mxu0 0
        %537 = vmatpush1.bf16.xpose.msra.mxu0 0
        %538 = vmatprep.subr.bf16.mxu0 0
        %539 = vmatpush1.bf16.xpose.msra.mxu0 0
        %540 = vmatprep.subr.bf16.mxu0 0
        %541 = vmatpush1.bf16.xpose.msra.mxu0 0
        %542 = vmatprep.mubr.bf16.mxu0 0
        %543 = vmatmul.mubr.bf16.gmra.mrb[0].mxu0 %v505
        %v544 = vpop.f32.mrb[0].mxu0
        %v545 = vadd.f32 0.0, %v544
        %v546 = vpop.f32.mrb[0].mxu0
        %v547 = vpop.f32.mrb[0].mxu0
        %v548 = vpop.f32.mrb[0].mxu0
        %549 = vdwg.mxu0
        %v550 = vlaneseq
        %v551 = vshrl.u32 %v550, 7
        %v552 = vstv %s343
        %v553 = vadd.s32 %v552, %v551
        %v554 = vlaneseq
        %v555 = vand.u32 %v554, 127
        %v556 = vstv %s344
        %v557 = vadd.s32 %v556, %v555
        %vm558 = vcmp.le.s32.totalorder %v557, %v553
        %v559 = vsel %vm558, %v545, -1e+30
        %v560 = vld [vmem:[#allocation2] sm:$0xff]
        %vm561 = vcmask 64512
        %v562 = vsel %vm561, %v559, -inf
        %563 = vmax.xlane.f32.xlu0 %v562
        %v564 = vpop.xlane.xlu0 %563
        %v565 = vmax.f32 %v560, %v564
        %v566 = vsub.f32 %v560, %v565
        %v567 = vmul.f32 %v566, 1.442695
        %v568 = vpow.pop %v567
        %570 = vset.pattern.permute.xlu0 0
        %571 = vperm.xlu0 %570, %v565
        %v572 = vpop.permute.xlu0 %571
        %v574 = vsub.f32 %v559, %v572
        %v575 = vmul.f32 %v574, 1.442695
        %v576 = vpow.pop %v575
        %v577 = vld [vmem:[#allocation3] sm:$0xff]
        %v578 = vmul.f32 %v568, %v577
        %v579 = vsel %vm561, %v576, 0.0
        %580 = vadd.xlane.f32.xlu0 %v579
        %v581 = vpop.xlane.xlu0 %580
        %v582 = vadd.f32 %v578, %v581
        %vm583 = vcmask 7168
        %584 = vst.msk [vmem:[#allocation3] sm:$0xff] %vm583, %v582
        %v585 = vld [vmem:[#allocation4] sm:$0xff]
        %587 = vset.pattern.permute.xlu0 0
        %588 = vperm.xlu0 %587, %v568
        %v589 = vpop.permute.xlu0 %588
        %v591 = vmul.f32 %v589, %v585
        %v592 = vpack.c.bf16 %v576, %v576
        %v594 = vsel %vm561, %v592, 0
        %vm596 = vcmask 1043456
        %v598 = vsel %vm596, %v502, 0
        %600 = vmatprep.subr.bf16.mxu0 0
        %601 = vmatpush1.bf16.msra.mxu0 %v598
        %602 = vmatprep.subr.bf16.mxu0 0
        %603 = vmatpush1.bf16.msra.mxu0 0
        %604 = vmatprep.subr.bf16.mxu0 0
        %605 = vmatpush1.bf16.msra.mxu0 0
        %606 = vmatprep.subr.bf16.mxu0 0
        %607 = vmatpush1.bf16.msra.mxu0 0
        %608 = vmatprep.subr.bf16.mxu0 0
        %609 = vmatpush1.bf16.msra.mxu0 0
        %610 = vmatprep.subr.bf16.mxu0 0
        %611 = vmatpush1.bf16.msra.mxu0 0
        %612 = vmatprep.subr.bf16.mxu0 0
        %613 = vmatpush1.bf16.msra.mxu0 0
        %614 = vmatprep.subr.bf16.mxu0 0
        %615 = vmatpush1.bf16.msra.mxu0 0
        %616 = vmatprep.subr.bf16.mxu0 0
        %617 = vmatpush1.bf16.msra.mxu0 0
        %618 = vmatprep.subr.bf16.mxu0 0
        %619 = vmatpush1.bf16.msra.mxu0 0
        %620 = vmatprep.subr.bf16.mxu0 0
        %621 = vmatpush1.bf16.msra.mxu0 0
        %622 = vmatprep.subr.bf16.mxu0 0
        %623 = vmatpush1.bf16.msra.mxu0 0
        %624 = vmatprep.subr.bf16.mxu0 0
        %625 = vmatpush1.bf16.msra.mxu0 0
        %626 = vmatprep.subr.bf16.mxu0 0
        %627 = vmatpush1.bf16.msra.mxu0 0
        %628 = vmatprep.subr.bf16.mxu0 0
        %629 = vmatpush1.bf16.msra.mxu0 0
        %630 = vmatprep.subr.bf16.mxu0 0
        %631 = vmatpush1.bf16.msra.mxu0 0
        %632 = vmatprep.mubr.bf16.mxu0 0
        %633 = vmatmul.mubr.bf16.gmra.mrb[0].mxu0 %v594
        %v634 = vpop.f32.mrb[0].mxu0
        %v635 = vadd.f32 0.0, %v634
        %v636 = vpop.f32.mrb[0].mxu0
        %v637 = vpop.f32.mrb[0].mxu0
        %v638 = vpop.f32.mrb[0].mxu0
        %639 = vdwg.mxu0
        %v640 = vadd.f32 %v591, %v635
        %641 = vst.msk [vmem:[#allocation4] sm:$0xff] %vm503, %v640
        %642 = vst.msk [vmem:[#allocation2] sm:$0xff] %vm583, %v565
      $region52: #{forward.4} parent=39 // pred_fallthru
        _
      // Predicated region
      $region53: #{forward.4} parent=39 // pred_check
        %p643 = pneg %p345
      $region54: #{forward.4} parent=39 // pred_check_branch
        %645 = sbr.rel (%p643) target = $region56
      $region55: #{forward.4} parent=39 // pred_region
        %v646 = vld [vmem:[#allocation3] sm:$0xff]
        %v647 = vrcp.pop %v646
        %v648 = vld [vmem:[#allocation4] sm:$0xff]
        %650 = vset.pattern.permute.xlu0 0
        %651 = vperm.xlu0 %650, %v647
        %v652 = vpop.permute.xlu0 %651
        %v654 = vmul.f32 %v648, %v652
        %v655 = vpack.c.bf16 %v654, %v654
        %v656 = vld [vmem:[%s4] sm:$0xf]
        %v657 = vld [vmem:[%s4 + $0x4] sm:$0xf]
        %v658 = vld [vmem:[%s4 + $0x8] sm:$0xf]
        %v659 = vld [vmem:[%s4 + $0xc] sm:$0xf]
        %v664 = vunpack.c.l.b16 %v656
        %v665 = vunpack.c.l.b16 %v657
        %v666 = vunpack.c.l.b16 %v658
        %v667 = vunpack.c.l.b16 %v659
        %v668 = vpack.c.b16 %v665, %v664
        %v669 = vpack.c.b16 %v667, %v666
        %vm672 = vcmask 261120
        %v674 = vsel %vm672, %v655, 0
        %676 = vmatprep.subr.bf16.mxu0 0
        %677 = vmatpush1.bf16.msra.mxu0 %v668
        %678 = vmatprep.subr.bf16.mxu0 0
        %679 = vmatpush1.bf16.msra.mxu0 %v669
        %680 = vmatprep.subr.bf16.mxu0 0
        %681 = vmatpush1.bf16.msra.mxu0 0
        %682 = vmatprep.subr.bf16.mxu0 0
        %683 = vmatpush1.bf16.msra.mxu0 0
        %684 = vmatprep.subr.bf16.mxu0 0
        %685 = vmatpush1.bf16.msra.mxu0 0
        %686 = vmatprep.subr.bf16.mxu0 0
        %687 = vmatpush1.bf16.msra.mxu0 0
        %688 = vmatprep.subr.bf16.mxu0 0
        %689 = vmatpush1.bf16.msra.mxu0 0
        %690 = vmatprep.subr.bf16.mxu0 0
        %691 = vmatpush1.bf16.msra.mxu0 0
        %692 = vmatprep.subr.bf16.mxu0 0
        %693 = vmatpush1.bf16.msra.mxu0 0
        %694 = vmatprep.subr.bf16.mxu0 0
        %695 = vmatpush1.bf16.msra.mxu0 0
        %696 = vmatprep.subr.bf16.mxu0 0
        %697 = vmatpush1.bf16.msra.mxu0 0
        %698 = vmatprep.subr.bf16.mxu0 0
        %699 = vmatpush1.bf16.msra.mxu0 0
        %700 = vmatprep.subr.bf16.mxu0 0
        %701 = vmatpush1.bf16.msra.mxu0 0
        %702 = vmatprep.subr.bf16.mxu0 0
        %703 = vmatpush1.bf16.msra.mxu0 0
        %704 = vmatprep.subr.bf16.mxu0 0
        %705 = vmatpush1.bf16.msra.mxu0 0
        %706 = vmatprep.subr.bf16.mxu0 0
        %707 = vmatpush1.bf16.msra.mxu0 0
        %708 = vmatprep.mubr.bf16.mxu0 0
        %709 = vmatmul.mubr.bf16.gmra.mrb[0].mxu0 %v674
        %v710 = vpop.f32.mrb[0].mxu0
        %v711 = vadd.f32 0.0, %v710
        %v712 = vpop.f32.mrb[0].mxu0
        %v713 = vpop.f32.mrb[0].mxu0
        %v714 = vpop.f32.mrb[0].mxu0
        %715 = vdwg.mxu0
        %v716 = vld [vmem:[%s334] sm:$0xff]
        %v717 = vadd.f32 %v716, %v711
        %718 = vst.msk [vmem:[%s341] sm:$0xff] %vm672, %v717
      $region56: #{forward.4} parent=39 // pred_fallthru
        _
      %p719 = scmp.lt.s32.totalorder %s21, 1
      %s720 = scalar_select %p719, %s21, 1
      %p721 = scmp.lt.s32.totalorder %s22, 0
      %s722 = scalar_select %p721, %s22, 0
      %s723 = sadd.s32 %s722, %s720
      %s724 = smul.addr %s723, 8
      %s725 = scalar_lea.vmem %s5, %s724
      // Predicated region
      $region57: #{forward.4} parent=39 // pred_check
        %p726 = pneg %p188
      $region58: #{forward.4} parent=39 // pred_check_branch
        %728 = sbr.rel (%p726) target = $region60
      $region59: #{forward.4} parent=39 // pred_region
        _
      $region60: #{forward.4} parent=39 // pred_fallthru
        _
    $region40: #{forward.4} parent=5 // pred_fallthru
      _
    %p729 = scmp.le.s32.totalorder 2, %s11
    // Predicated region
    $region61: #{forward.4} parent=5 // pred_check
      %p730 = pneg %p729
    $region62: #{forward.4} parent=5 // pred_check_branch
      %732 = sbr.rel (%p730) target = $region64
    $region63: #{forward.4} parent=5 // pred_region
      %s733 = ssub.s32 %s11, 2
      // Predicated region
      $region65: #{forward.4} parent=63 // pred_check
        %p734 = pneg %p194
      $region66: #{forward.4} parent=63 // pred_check_branch
        %736 = sbr.rel (%p734) target = $region68
      $region67: #{forward.4} parent=63 // pred_region
        %p737 = scmp.lt.s32.totalorder %s24, 1
        %s738 = scalar_select %p737, %s24, 1
        %p739 = scmp.lt.s32.totalorder %s25, 0
        %s740 = scalar_select %p739, %s25, 0
        %s741 = sadd.s32 %s740, %s738
        %s742 = smul.addr %s741, 8
        %s743 = scalar_lea.vmem %s5, %s742
      $region68: #{forward.4} parent=63 // pred_fallthru
        _
    $region64: #{forward.4} parent=5 // pred_fallthru
      _
  $region6: #{forward.4} parent=0 // loop_footer
    %s15 = sadd.s32 1, %s11
  $region7: #{forward.4} parent=0 // loop_footer_branch
    %10 = sbr.rel target = $region3
  $region8: #{forward.4} parent=0 // loop_exit
    _

// kernel: forward.3
$region0: #{forward.3}
  #allocation0 [shape = 'u32[]', space=smem, size = 0x4, offset = 0x4, fixed_abs, tag = 'smem constant byte address 0x4 - core index']
  #allocation1 [shape = 'u32[144,128]{1,0:T(1,128)}', space=vmem, size = 0x12000, scoped, tag = 'internal scratch']
  %s0 = inlined_call_operand.vmem [shape: f32[2,8,32], index: 0, kind: input, shape index: {}]
  %s1 = inlined_call_operand.vmem [shape: f32[1,32], index: 1, kind: input, shape index: {}]
  %s2 = inlined_call_operand.vmem [shape: bf16[32,32], index: 2, kind: input, shape index: {}]
  %s3 = inlined_call_operand.vmem [shape: bf16[32,32], index: 3, kind: input, shape index: {}]
  %s4 = inlined_call_operand.vmem [shape: bf16[32,32], index: 4, kind: input, shape index: {}]
  %s5 = inlined_call_operand.vmem [shape: bf16[2,8,32], index: 5, kind: output, shape index: {0}]
  %s6 = inlined_call_operand.vmem [shape: bf16[2,8,32], index: 6, kind: output, shape index: {1}]
  %s7 = inlined_call_operand.vmem [shape: bf16[2,8,32], index: 7, kind: output, shape index: {2}]
  %8 = xla_tuple %s5, %s6, %s7
  %s9 = sld [smem:[#allocation0]]
  $region69: #{forward.3} parent=0
    _
  %s11 = ssub.s32 1, %s9
  %s12 = scalar_select 0, %s11, %s9
  loop: start=0, step=1, limit=4
  $region2: #{forward.3} parent=0 // loop_pre_header
    _
  $region3: #{forward.3} parent=0 // loop_header
    %s14 = sphi 0, %s18
    %p15 = scmp.ge.s32.totalorder %s14, 4
    %s21 = sphi 0, %s33
    %s22 = sphi 0, %s29
    %s23 = sphi 0, %s21
    %s24 = sphi 0, %s22
    %s25 = sphi 0, %s23
    %s26 = sphi 0, %s24
    %s38 = sphi 0, %s40
    %s41 = sphi 0, %s38
    %s42 = sphi 0, %s41
    %s58 = sphi 0, %s42
    %s62 = sphi 0, %s62
    %s64 = sphi 0, %s62
    %s65 = sphi 0, %s64
    %s79 = sphi 0, %s65
    %s83 = sphi 0, %s83
    %s85 = sphi 0, %s83
    %s86 = sphi 0, %s85
    %s100 = sphi 0, %s86
    %s104 = sphi 0, %s104
    %s106 = sphi 0, %s104
    %s107 = sphi 0, %s106
    %s121 = sphi 0, %s107
    %s125 = sphi 0, %s125
    %s127 = sphi 0, %s125
    %s128 = sphi 0, %s127
    %s142 = sphi 0, %s128
    %s150 = sphi 0, %s152
    %s153 = sphi 0, %s150
    %s154 = sphi 0, %s153
    %s170 = sphi 0, %s154
    %s178 = sphi 0, %s180
    %s181 = sphi 0, %s178
    %s182 = sphi 0, %s181
    %s198 = sphi 0, %s182
    %s206 = sphi 0, %s208
    %s209 = sphi 0, %s206
    %s210 = sphi 0, %s209
    %s226 = sphi 0, %s210
  $region4: #{forward.3} parent=0 // loop_header_branch
    %17 = sbr.rel (%p15) target = $region8
  $region5: #{forward.3} parent=0 // loop_body
    %s19 = ssub.s32 %s14, 1
    %s20 = ssub.s32 %s14, 2
    %s27 = sadd.s32 1, %s22
    %p28 = scmp.ge.s32.totalorder %s27, 1
    %s29 = scalar_select %p28, 0, %s27
    %s30 = sadd.s32 1, %s21
    %s31 = scalar_select %p28, %s30, %s21
    %p32 = scmp.ge.s32.totalorder %s31, 2
    %s33 = scalar_select %p32, 0, %s31
    %s34 = ssub.s32 %s21, %s33
    %s35 = ssub.s32 %s22, %s29
    %s36 = sor.u32 %s34, %s35
    %p37 = scmp.eq.s32.totalorder %s36, 0
    %s39 = sadd.s32 %s38, 1
    %s40 = scalar_select %p37, %s38, %s39
    %p43 = pneg %p37
    %p44 = scmp.eq.s32.totalorder %s14, 1
    %p45 = por %p43, %p44
    %p46 = scmp.ne.s32.totalorder %s38, %s41
    %p47 = scmp.eq.s32.totalorder %s14, 0
    %p48 = por %p46, %p47
    %p49 = scmp.ne.s32.totalorder %s38, %s41
    %p50 = scmp.eq.s32.totalorder %s19, 1
    %p51 = por %p49, %p50
    %p52 = scmp.ne.s32.totalorder %s41, %s42
    %p53 = scmp.eq.s32.totalorder %s19, 0
    %p54 = por %p52, %p53
    %p55 = scmp.ne.s32.totalorder %s41, %s42
    %p56 = scmp.eq.s32.totalorder %s20, 1
    %p57 = por %p55, %p56
    %p59 = scmp.ne.s32.totalorder %s42, %s58
    %p60 = scmp.eq.s32.totalorder %s20, 0
    %p61 = por %p59, %p60
    %s63 = sadd.s32 %s62, 1
    %p66 = scmp.eq.s32.totalorder %s14, 1
    %p67 = scmp.ne.s32.totalorder %s62, %s64
    %p68 = scmp.eq.s32.totalorder %s14, 0
    %p69 = por %p67, %p68
    %p70 = scmp.ne.s32.totalorder %s62, %s64
    %p71 = scmp.eq.s32.totalorder %s19, 1
    %p72 = por %p70, %p71
    %p73 = scmp.ne.s32.totalorder %s64, %s65
    %p74 = scmp.eq.s32.totalorder %s19, 0
    %p75 = por %p73, %p74
    %p76 = scmp.ne.s32.totalorder %s64, %s65
    %p77 = scmp.eq.s32.totalorder %s20, 1
    %p78 = por %p76, %p77
    %p80 = scmp.ne.s32.totalorder %s65, %s79
    %p81 = scmp.eq.s32.totalorder %s20, 0
    %p82 = por %p80, %p81
    %s84 = sadd.s32 %s83, 1
    %p87 = scmp.eq.s32.totalorder %s14, 1
    %p88 = scmp.ne.s32.totalorder %s83, %s85
    %p89 = scmp.eq.s32.totalorder %s14, 0
    %p90 = por %p88, %p89
    %p91 = scmp.ne.s32.totalorder %s83, %s85
    %p92 = scmp.eq.s32.totalorder %s19, 1
    %p93 = por %p91, %p92
    %p94 = scmp.ne.s32.totalorder %s85, %s86
    %p95 = scmp.eq.s32.totalorder %s19, 0
    %p96 = por %p94, %p95
    %p97 = scmp.ne.s32.totalorder %s85, %s86
    %p98 = scmp.eq.s32.totalorder %s20, 1
    %p99 = por %p97, %p98
    %p101 = scmp.ne.s32.totalorder %s86, %s100
    %p102 = scmp.eq.s32.totalorder %s20, 0
    %p103 = por %p101, %p102
    %s105 = sadd.s32 %s104, 1
    %p108 = scmp.eq.s32.totalorder %s14, 1
    %p109 = scmp.ne.s32.totalorder %s104, %s106
    %p110 = scmp.eq.s32.totalorder %s14, 0
    %p111 = por %p109, %p110
    %p112 = scmp.ne.s32.totalorder %s104, %s106
    %p113 = scmp.eq.s32.totalorder %s19, 1
    %p114 = por %p112, %p113
    %p115 = scmp.ne.s32.totalorder %s106, %s107
    %p116 = scmp.eq.s32.totalorder %s19, 0
    %p117 = por %p115, %p116
    %p118 = scmp.ne.s32.totalorder %s106, %s107
    %p119 = scmp.eq.s32.totalorder %s20, 1
    %p120 = por %p118, %p119
    %p122 = scmp.ne.s32.totalorder %s107, %s121
    %p123 = scmp.eq.s32.totalorder %s20, 0
    %p124 = por %p122, %p123
    %s126 = sadd.s32 %s125, 1
    %p129 = scmp.eq.s32.totalorder %s14, 1
    %p130 = scmp.ne.s32.totalorder %s125, %s127
    %p131 = scmp.eq.s32.totalorder %s14, 0
    %p132 = por %p130, %p131
    %p133 = scmp.ne.s32.totalorder %s125, %s127
    %p134 = scmp.eq.s32.totalorder %s19, 1
    %p135 = por %p133, %p134
    %p136 = scmp.ne.s32.totalorder %s127, %s128
    %p137 = scmp.eq.s32.totalorder %s19, 0
    %p138 = por %p136, %p137
    %p139 = scmp.ne.s32.totalorder %s127, %s128
    %p140 = scmp.eq.s32.totalorder %s20, 1
    %p141 = por %p139, %p140
    %p143 = scmp.ne.s32.totalorder %s128, %s142
    %p144 = scmp.eq.s32.totalorder %s20, 0
    %p145 = por %p143, %p144
    %s146 = ssub.s32 %s21, %s33
    %s147 = ssub.s32 %s22, %s29
    %s148 = sor.u32 %s146, %s147
    %p149 = scmp.eq.s32.totalorder %s148, 0
    %s151 = sadd.s32 %s150, 1
    %s152 = scalar_select %p149, %s150, %s151
    %p155 = pneg %p149
    %p156 = scmp.eq.s32.totalorder %s14, 1
    %p157 = por %p155, %p156
    %p158 = scmp.ne.s32.totalorder %s150, %s153
    %p159 = scmp.eq.s32.totalorder %s14, 0
    %p160 = por %p158, %p159
    %p161 = scmp.ne.s32.totalorder %s150, %s153
    %p162 = scmp.eq.s32.totalorder %s19, 1
    %p163 = por %p161, %p162
    %p164 = scmp.ne.s32.totalorder %s153, %s154
    %p165 = scmp.eq.s32.totalorder %s19, 0
    %p166 = por %p164, %p165
    %p167 = scmp.ne.s32.totalorder %s153, %s154
    %p168 = scmp.eq.s32.totalorder %s20, 1
    %p169 = por %p167, %p168
    %p171 = scmp.ne.s32.totalorder %s154, %s170
    %p172 = scmp.eq.s32.totalorder %s20, 0
    %p173 = por %p171, %p172
    %s174 = ssub.s32 %s21, %s33
    %s175 = ssub.s32 %s22, %s29
    %s176 = sor.u32 %s174, %s175
    %p177 = scmp.eq.s32.totalorder %s176, 0
    %s179 = sadd.s32 %s178, 1
    %s180 = scalar_select %p177, %s178, %s179
    %p183 = pneg %p177
    %p184 = scmp.eq.s32.totalorder %s14, 1
    %p185 = por %p183, %p184
    %p186 = scmp.ne.s32.totalorder %s178, %s181
    %p187 = scmp.eq.s32.totalorder %s14, 0
    %p188 = por %p186, %p187
    %p189 = scmp.ne.s32.totalorder %s178, %s181
    %p190 = scmp.eq.s32.totalorder %s19, 1
    %p191 = por %p189, %p190
    %p192 = scmp.ne.s32.totalorder %s181, %s182
    %p193 = scmp.eq.s32.totalorder %s19, 0
    %p194 = por %p192, %p193
    %p195 = scmp.ne.s32.totalorder %s181, %s182
    %p196 = scmp.eq.s32.totalorder %s20, 1
    %p197 = por %p195, %p196
    %p199 = scmp.ne.s32.totalorder %s182, %s198
    %p200 = scmp.eq.s32.totalorder %s20, 0
    %p201 = por %p199, %p200
    %s202 = ssub.s32 %s21, %s33
    %s203 = ssub.s32 %s22, %s29
    %s204 = sor.u32 %s202, %s203
    %p205 = scmp.eq.s32.totalorder %s204, 0
    %s207 = sadd.s32 %s206, 1
    %s208 = scalar_select %p205, %s206, %s207
    %p211 = pneg %p205
    %p212 = scmp.eq.s32.totalorder %s14, 1
    %p213 = por %p211, %p212
    %p214 = scmp.ne.s32.totalorder %s206, %s209
    %p215 = scmp.eq.s32.totalorder %s14, 0
    %p216 = por %p214, %p215
    %p217 = scmp.ne.s32.totalorder %s206, %s209
    %p218 = scmp.eq.s32.totalorder %s19, 1
    %p219 = por %p217, %p218
    %p220 = scmp.ne.s32.totalorder %s209, %s210
    %p221 = scmp.eq.s32.totalorder %s19, 0
    %p222 = por %p220, %p221
    %p223 = scmp.ne.s32.totalorder %s209, %s210
    %p224 = scmp.eq.s32.totalorder %s20, 1
    %p225 = por %p223, %p224
    %p227 = scmp.ne.s32.totalorder %s210, %s226
    %p228 = scmp.eq.s32.totalorder %s20, 0
    %p229 = por %p227, %p228
    %p230 = scmp.le.s32.totalorder 1, %s14
    %p231 = scmp.lt.s32.totalorder %s14, 3
    %p232 = pnand %p230, %p231
    %p233 = pneg %p232
    // Predicated region
    $region9: #{forward.3} parent=5 // pred_check
      _
    $region10: #{forward.3} parent=5 // pred_check_branch
      %235 = sbr.rel (%p232) target = $region12
    $region11: #{forward.3} parent=5 // pred_region
      %s236 = ssub.s32 %s14, 1
      // Predicated region
      $region13: #{forward.3} parent=11 // pred_check
        %p237 = pneg %p75
      $region14: #{forward.3} parent=11 // pred_check_branch
        %239 = sbr.rel (%p237) target = $region16
      $region15: #{forward.3} parent=11 // pred_region
        _
      $region16: #{forward.3} parent=11 // pred_fallthru
        _
      // Predicated region
      $region17: #{forward.3} parent=11 // pred_check
        %p240 = pneg %p96
      $region18: #{forward.3} parent=11 // pred_check_branch
        %242 = sbr.rel (%p240) target = $region20
      $region19: #{forward.3} parent=11 // pred_region
        _
      $region20: #{forward.3} parent=11 // pred_fallthru
        _
      // Predicated region
      $region21: #{forward.3} parent=11 // pred_check
        %p243 = pneg %p117
      $region22: #{forward.3} parent=11 // pred_check_branch
        %245 = sbr.rel (%p243) target = $region24
      $region23: #{forward.3} parent=11 // pred_region
        _
      $region24: #{forward.3} parent=11 // pred_fallthru
        _
      // Predicated region
      $region25: #{forward.3} parent=11 // pred_check
        %p246 = pneg %p138
      $region26: #{forward.3} parent=11 // pred_check_branch
        %248 = sbr.rel (%p246) target = $region28
      $region27: #{forward.3} parent=11 // pred_region
        _
      $region28: #{forward.3} parent=11 // pred_fallthru
        _
    $region12: #{forward.3} parent=5 // pred_fallthru
      _
    %p249 = scmp.lt.s32.totalorder %s14, 2
    // Predicated region
    $region29: #{forward.3} parent=5 // pred_check
      %p250 = pneg %p249
    $region30: #{forward.3} parent=5 // pred_check_branch
      %252 = sbr.rel (%p250) target = $region32
    $region31: #{forward.3} parent=5 // pred_region
      // Predicated region
      $region33: #{forward.3} parent=31 // pred_check
        %p253 = pneg %p48
      $region34: #{forward.3} parent=31 // pred_check_branch
        %255 = sbr.rel (%p253) target = $region36
      $region35: #{forward.3} parent=31 // pred_region
        %p256 = scmp.lt.s32.totalorder %s21, 1
        %s257 = scalar_select %p256, %s21, 1
        %p258 = scmp.lt.s32.totalorder %s22, 0
        %s259 = scalar_select %p258, %s22, 0
        %s260 = sadd.s32 %s259, %s257
        %s261 = smul.addr %s260, 8
        %s262 = scalar_lea.vmem %s0, %s261
      $region36: #{forward.3} parent=31 // pred_fallthru
        _
    $region32: #{forward.3} parent=5 // pred_fallthru
      _
    %p263 = scmp.le.s32.totalorder 1, %s14
    %p264 = scmp.lt.s32.totalorder %s14, 3
    %p265 = pnand %p263, %p264
    %p266 = pneg %p265
    // Predicated region
    $region37: #{forward.3} parent=5 // pred_check
      _
    $region38: #{forward.3} parent=5 // pred_check_branch
      %268 = sbr.rel (%p265) target = $region40
    $region39: #{forward.3} parent=5 // pred_region
      %s269 = ssub.s32 %s14, 1
      %p270 = scmp.lt.s32.totalorder %s23, 1
      %s271 = scalar_select %p270, %s23, 1
      %p272 = scmp.lt.s32.totalorder %s24, 0
      %s273 = scalar_select %p272, %s24, 0
      %s274 = sadd.s32 %s273, %s271
      %s275 = smul.addr %s274, 8
      %s276 = scalar_lea.vmem %s0, %s275
      %p277 = pneg %p54
      %p278 = pneg %p51
      %p279 = pneg %p75
      %p280 = pneg %p72
      %p281 = pneg %p96
      %p282 = pneg %p93
      %p283 = pneg %p117
      %p284 = pneg %p114
      %p285 = pneg %p138
      %p286 = pneg %p135
      %p287 = pneg %p166
      %p288 = pneg %p163
      %p289 = scmp.lt.s32.totalorder %s23, 1
      %s290 = scalar_select %p289, %s23, 1
      %p291 = scmp.lt.s32.totalorder %s24, 0
      %s292 = scalar_select %p291, %s24, 0
      %s293 = sadd.s32 %s292, %s290
      %s294 = smul.addr %s293, 4
      %s295 = scalar_lea.vmem %s5, %s294
      %p296 = pneg %p194
      %p297 = pneg %p191
      %p298 = scmp.lt.s32.totalorder %s23, 1
      %s299 = scalar_select %p298, %s23, 1
      %p300 = scmp.lt.s32.totalorder %s24, 0
      %s301 = scalar_select %p300, %s24, 0
      %s302 = sadd.s32 %s301, %s299
      %s303 = smul.addr %s302, 4
      %s304 = scalar_lea.vmem %s6, %s303
      %p305 = pneg %p222
      %p306 = pneg %p219
      %p307 = scmp.lt.s32.totalorder %s23, 1
      %s308 = scalar_select %p307, %s23, 1
      %p309 = scmp.lt.s32.totalorder %s24, 0
      %s310 = scalar_select %p309, %s24, 0
      %s311 = sadd.s32 %s310, %s308
      %s312 = smul.addr %s311, 4
      %s313 = scalar_lea.vmem %s7, %s312
      %p314 = scmp.lt.s32.totalorder %s23, 1
      %s315 = scalar_select %p314, %s23, 1
      %p316 = scmp.lt.s32.totalorder %s24, 0
      %s317 = scalar_select %p316, %s24, 0
      %s318 = sadd.s32 %s317, %s315
      %s319 = smul.addr %s318, 8
      %s320 = scalar_lea.vmem %s0, %s319
      %p321 = scmp.lt.s32.totalorder %s23, 1
      %s322 = scalar_select %p321, %s23, 1
      %p323 = scmp.lt.s32.totalorder %s24, 0
      %s324 = scalar_select %p323, %s24, 0
      %s325 = sadd.s32 %s324, %s322
      %s326 = smul.addr %s325, 4
      %s327 = scalar_lea.vmem %s5, %s326
      %p328 = scmp.lt.s32.totalorder %s23, 1
      %s329 = scalar_select %p328, %s23, 1
      %p330 = scmp.lt.s32.totalorder %s24, 0
      %s331 = scalar_select %p330, %s24, 0
      %s332 = sadd.s32 %s331, %s329
      %s333 = smul.addr %s332, 4
      %s334 = scalar_lea.vmem %s6, %s333
      %p335 = scmp.lt.s32.totalorder %s23, 1
      %s336 = scalar_select %p335, %s23, 1
      %p337 = scmp.lt.s32.totalorder %s24, 0
      %s338 = scalar_select %p337, %s24, 0
      %s339 = sadd.s32 %s338, %s336
      %s340 = smul.addr %s339, 4
      %s341 = scalar_lea.vmem %s7, %s340
      %v343 = vld [vmem:[%s320] sm:$0xff]
      %v344 = vmul.f32 %v343, %v343
      %vm345 = vcmask 261120
      %v346 = vsel %vm345, %v344, 0.0
      %347 = vadd.xlane.f32.xlu0 %v346
      %v348 = vpop.xlane.xlu0 %347
      %v349 = vrcp.pop 32.0
      %v350 = vmul.f32 %v348, %v349
      %v351 = vadd.f32 %v350, 1e-06
      %v352 = vrsqrt.pop %v351
      %v353 = vmul.f32 %v343, %v352
      %v354 = vld [vmem:[%s1] sm:$0x1]
      %v356 = vlaneseq
      %v357 = vshrl.u32 %v356, 7
      %v358 = vsub.s32 0, %v357
      %v359 = vrot.slane %v354, %v358
      %v361 = vmul.f32 %v353, %v359
      %v362 = vpack.c.bf16 %v361, %v361
      %v363 = vld [vmem:[%s2] sm:$0xf]
      %v364 = vld [vmem:[%s2 + $0x4] sm:$0xf]
      %v365 = vld [vmem:[%s2 + $0x8] sm:$0xf]
      %v366 = vld [vmem:[%s2 + $0xc] sm:$0xf]
      %v371 = vunpack.c.l.b16 %v363
      %v372 = vunpack.c.l.b16 %v364
      %v373 = vunpack.c.l.b16 %v365
      %v374 = vunpack.c.l.b16 %v366
      %v375 = vpack.c.b16 %v372, %v371
      %v376 = vpack.c.b16 %v374, %v373
      %v380 = vsel %vm345, %v362, 0
      %382 = vmatprep.subr.bf16.mxu0 0
      %383 = vmatpush1.bf16.msra.mxu0 %v375
      %384 = vmatprep.subr.bf16.mxu0 0
      %385 = vmatpush1.bf16.msra.mxu0 %v376
      %386 = vmatprep.subr.bf16.mxu0 0
      %387 = vmatpush1.bf16.msra.mxu0 0
      %388 = vmatprep.subr.bf16.mxu0 0
      %389 = vmatpush1.bf16.msra.mxu0 0
      %390 = vmatprep.subr.bf16.mxu0 0
      %391 = vmatpush1.bf16.msra.mxu0 0
      %392 = vmatprep.subr.bf16.mxu0 0
      %393 = vmatpush1.bf16.msra.mxu0 0
      %394 = vmatprep.subr.bf16.mxu0 0
      %395 = vmatpush1.bf16.msra.mxu0 0
      %396 = vmatprep.subr.bf16.mxu0 0
      %397 = vmatpush1.bf16.msra.mxu0 0
      %398 = vmatprep.subr.bf16.mxu0 0
      %399 = vmatpush1.bf16.msra.mxu0 0
      %400 = vmatprep.subr.bf16.mxu0 0
      %401 = vmatpush1.bf16.msra.mxu0 0
      %402 = vmatprep.subr.bf16.mxu0 0
      %403 = vmatpush1.bf16.msra.mxu0 0
      %404 = vmatprep.subr.bf16.mxu0 0
      %405 = vmatpush1.bf16.msra.mxu0 0
      %406 = vmatprep.subr.bf16.mxu0 0
      %407 = vmatpush1.bf16.msra.mxu0 0
      %408 = vmatprep.subr.bf16.mxu0 0
      %409 = vmatpush1.bf16.msra.mxu0 0
      %410 = vmatprep.subr.bf16.mxu0 0
      %411 = vmatpush1.bf16.msra.mxu0 0
      %412 = vmatprep.subr.bf16.mxu0 0
      %413 = vmatpush1.bf16.msra.mxu0 0
      %414 = vmatprep.mubr.bf16.mxu0 0
      %415 = vmatmul.mubr.bf16.gmra.mrb[0].mxu0 %v380
      %v416 = vpop.f32.mrb[0].mxu0
      %v417 = vadd.f32 0.0, %v416
      %v418 = vpop.f32.mrb[0].mxu0
      %v419 = vpop.f32.mrb[0].mxu0
      %v420 = vpop.f32.mrb[0].mxu0
      %421 = vdwg.mxu0
      %v422 = vmul.f32 %v417, 0.17677669
      %v423 = vpack.c.bf16 %v422, %v422
      %vm424 = vcmask 257024
      %425 = vst.msk [vmem:[%s327] sm:$0xf] %vm424, %v423
      %v426 = vld [vmem:[%s3] sm:$0xf]
      %v427 = vld [vmem:[%s3 + $0x4] sm:$0xf]
      %v428 = vld [vmem:[%s3 + $0x8] sm:$0xf]
      %v429 = vld [vmem:[%s3 + $0xc] sm:$0xf]
      %v434 = vunpack.c.l.b16 %v426
      %v435 = vunpack.c.l.b16 %v427
      %v436 = vunpack.c.l.b16 %v428
      %v437 = vunpack.c.l.b16 %v429
      %v438 = vpack.c.b16 %v435, %v434
      %v439 = vpack.c.b16 %v437, %v436
      %442 = vmatprep.subr.bf16.mxu0 0
      %443 = vmatpush1.bf16.msra.mxu0 %v438
      %444 = vmatprep.subr.bf16.mxu0 0
      %445 = vmatpush1.bf16.msra.mxu0 %v439
      %446 = vmatprep.subr.bf16.mxu0 0
      %447 = vmatpush1.bf16.msra.mxu0 0
      %448 = vmatprep.subr.bf16.mxu0 0
      %449 = vmatpush1.bf16.msra.mxu0 0
      %450 = vmatprep.subr.bf16.mxu0 0
      %451 = vmatpush1.bf16.msra.mxu0 0
      %452 = vmatprep.subr.bf16.mxu0 0
      %453 = vmatpush1.bf16.msra.mxu0 0
      %454 = vmatprep.subr.bf16.mxu0 0
      %455 = vmatpush1.bf16.msra.mxu0 0
      %456 = vmatprep.subr.bf16.mxu0 0
      %457 = vmatpush1.bf16.msra.mxu0 0
      %458 = vmatprep.subr.bf16.mxu0 0
      %459 = vmatpush1.bf16.msra.mxu0 0
      %460 = vmatprep.subr.bf16.mxu0 0
      %461 = vmatpush1.bf16.msra.mxu0 0
      %462 = vmatprep.subr.bf16.mxu0 0
      %463 = vmatpush1.bf16.msra.mxu0 0
      %464 = vmatprep.subr.bf16.mxu0 0
      %465 = vmatpush1.bf16.msra.mxu0 0
      %466 = vmatprep.subr.bf16.mxu0 0
      %467 = vmatpush1.bf16.msra.mxu0 0
      %468 = vmatprep.subr.bf16.mxu0 0
      %469 = vmatpush1.bf16.msra.mxu0 0
      %470 = vmatprep.subr.bf16.mxu0 0
      %471 = vmatpush1.bf16.msra.mxu0 0
      %472 = vmatprep.subr.bf16.mxu0 0
      %473 = vmatpush1.bf16.msra.mxu0 0
      %474 = vmatprep.mubr.bf16.mxu0 0
      %475 = vmatmul.mubr.bf16.gmra.mrb[0].mxu0 %v380
      %v476 = vpop.f32.mrb[0].mxu0
      %v477 = vadd.f32 0.0, %v476
      %v478 = vpop.f32.mrb[0].mxu0
      %v479 = vpop.f32.mrb[0].mxu0
      %v480 = vpop.f32.mrb[0].mxu0
      %481 = vdwg.mxu0
      %v482 = vpack.c.bf16 %v477, %v477
      %483 = vst.msk [vmem:[%s334] sm:$0xf] %vm424, %v482
      %v484 = vld [vmem:[%s4] sm:$0xf]
      %v485 = vld [vmem:[%s4 + $0x4] sm:$0xf]
      %v486 = vld [vmem:[%s4 + $0x8] sm:$0xf]
      %v487 = vld [vmem:[%s4 + $0xc] sm:$0xf]
      %v492 = vunpack.c.l.b16 %v484
      %v493 = vunpack.c.l.b16 %v485
      %v494 = vunpack.c.l.b16 %v486
      %v495 = vunpack.c.l.b16 %v487
      %v496 = vpack.c.b16 %v493, %v492
      %v497 = vpack.c.b16 %v495, %v494
      %500 = vmatprep.subr.bf16.mxu0 0
      %501 = vmatpush1.bf16.msra.mxu0 %v496
      %502 = vmatprep.subr.bf16.mxu0 0
      %503 = vmatpush1.bf16.msra.mxu0 %v497
      %504 = vmatprep.subr.bf16.mxu0 0
      %505 = vmatpush1.bf16.msra.mxu0 0
      %506 = vmatprep.subr.bf16.mxu0 0
      %507 = vmatpush1.bf16.msra.mxu0 0
      %508 = vmatprep.subr.bf16.mxu0 0
      %509 = vmatpush1.bf16.msra.mxu0 0
      %510 = vmatprep.subr.bf16.mxu0 0
      %511 = vmatpush1.bf16.msra.mxu0 0
      %512 = vmatprep.subr.bf16.mxu0 0
      %513 = vmatpush1.bf16.msra.mxu0 0
      %514 = vmatprep.subr.bf16.mxu0 0
      %515 = vmatpush1.bf16.msra.mxu0 0
      %516 = vmatprep.subr.bf16.mxu0 0
      %517 = vmatpush1.bf16.msra.mxu0 0
      %518 = vmatprep.subr.bf16.mxu0 0
      %519 = vmatpush1.bf16.msra.mxu0 0
      %520 = vmatprep.subr.bf16.mxu0 0
      %521 = vmatpush1.bf16.msra.mxu0 0
      %522 = vmatprep.subr.bf16.mxu0 0
      %523 = vmatpush1.bf16.msra.mxu0 0
      %524 = vmatprep.subr.bf16.mxu0 0
      %525 = vmatpush1.bf16.msra.mxu0 0
      %526 = vmatprep.subr.bf16.mxu0 0
      %527 = vmatpush1.bf16.msra.mxu0 0
      %528 = vmatprep.subr.bf16.mxu0 0
      %529 = vmatpush1.bf16.msra.mxu0 0
      %530 = vmatprep.subr.bf16.mxu0 0
      %531 = vmatpush1.bf16.msra.mxu0 0
      %532 = vmatprep.mubr.bf16.mxu0 0
      %533 = vmatmul.mubr.bf16.gmra.mrb[0].mxu0 %v380
      %v534 = vpop.f32.mrb[0].mxu0
      %v535 = vadd.f32 0.0, %v534
      %v536 = vpop.f32.mrb[0].mxu0
      %v537 = vpop.f32.mrb[0].mxu0
      %v538 = vpop.f32.mrb[0].mxu0
      %539 = vdwg.mxu0
      %v540 = vpack.c.bf16 %v535, %v535
      %541 = vst.msk [vmem:[%s341] sm:$0xf] %vm424, %v540
      %p542 = scmp.lt.s32.totalorder %s23, 1
      %s543 = scalar_select %p542, %s23, 1
      %p544 = scmp.lt.s32.totalorder %s24, 0
      %s545 = scalar_select %p544, %s24, 0
      %s546 = sadd.s32 %s545, %s543
      %s547 = smul.addr %s546, 4
      %s548 = scalar_lea.vmem %s5, %s547
      %p549 = scmp.lt.s32.totalorder %s23, 1
      %s550 = scalar_select %p549, %s23, 1
      %p551 = scmp.lt.s32.totalorder %s24, 0
      %s552 = scalar_select %p551, %s24, 0
      %s553 = sadd.s32 %s552, %s550
      %s554 = smul.addr %s553, 4
      %s555 = scalar_lea.vmem %s6, %s554
      %p556 = scmp.lt.s32.totalorder %s23, 1
      %s557 = scalar_select %p556, %s23, 1
      %p558 = scmp.lt.s32.totalorder %s24, 0
      %s559 = scalar_select %p558, %s24, 0
      %s560 = sadd.s32 %s559, %s557
      %s561 = smul.addr %s560, 4
      %s562 = scalar_lea.vmem %s7, %s561
      // Predicated region
      $region41: #{forward.3} parent=39 // pred_check
        %p563 = pneg %p163
      $region42: #{forward.3} parent=39 // pred_check_branch
        %565 = sbr.rel (%p563) target = $region44
      $region43: #{forward.3} parent=39 // pred_region
        _
      $region44: #{forward.3} parent=39 // pred_fallthru
        _
      // Predicated region
      $region45: #{forward.3} parent=39 // pred_check
        %p566 = pneg %p191
      $region46: #{forward.3} parent=39 // pred_check_branch
        %568 = sbr.rel (%p566) target = $region48
      $region47: #{forward.3} parent=39 // pred_region
        _
      $region48: #{forward.3} parent=39 // pred_fallthru
        _
      // Predicated region
      $region49: #{forward.3} parent=39 // pred_check
        %p569 = pneg %p219
      $region50: #{forward.3} parent=39 // pred_check_branch
        %571 = sbr.rel (%p569) target = $region52
      $region51: #{forward.3} parent=39 // pred_region
        _
      $region52: #{forward.3} parent=39 // pred_fallthru
        _
    $region40: #{forward.3} parent=5 // pred_fallthru
      _
    %p572 = scmp.le.s32.totalorder 2, %s14
    // Predicated region
    $region53: #{forward.3} parent=5 // pred_check
      %p573 = pneg %p572
    $region54: #{forward.3} parent=5 // pred_check_branch
      %575 = sbr.rel (%p573) target = $region56
    $region55: #{forward.3} parent=5 // pred_region
      %s576 = ssub.s32 %s14, 2
      // Predicated region
      $region57: #{forward.3} parent=55 // pred_check
        %p577 = pneg %p169
      $region58: #{forward.3} parent=55 // pred_check_branch
        %579 = sbr.rel (%p577) target = $region60
      $region59: #{forward.3} parent=55 // pred_region
        %p580 = scmp.lt.s32.totalorder %s25, 1
        %s581 = scalar_select %p580, %s25, 1
        %p582 = scmp.lt.s32.totalorder %s26, 0
        %s583 = scalar_select %p582, %s26, 0
        %s584 = sadd.s32 %s583, %s581
        %s585 = smul.addr %s584, 4
        %s586 = scalar_lea.vmem %s5, %s585
      $region60: #{forward.3} parent=55 // pred_fallthru
        _
      // Predicated region
      $region61: #{forward.3} parent=55 // pred_check
        %p587 = pneg %p197
      $region62: #{forward.3} parent=55 // pred_check_branch
        %589 = sbr.rel (%p587) target = $region64
      $region63: #{forward.3} parent=55 // pred_region
        %p590 = scmp.lt.s32.totalorder %s25, 1
        %s591 = scalar_select %p590, %s25, 1
        %p592 = scmp.lt.s32.totalorder %s26, 0
        %s593 = scalar_select %p592, %s26, 0
        %s594 = sadd.s32 %s593, %s591
        %s595 = smul.addr %s594, 4
        %s596 = scalar_lea.vmem %s6, %s595
      $region64: #{forward.3} parent=55 // pred_fallthru
        _
      // Predicated region
      $region65: #{forward.3} parent=55 // pred_check
        %p597 = pneg %p225
      $region66: #{forward.3} parent=55 // pred_check_branch
        %599 = sbr.rel (%p597) target = $region68
      $region67: #{forward.3} parent=55 // pred_region
        %p600 = scmp.lt.s32.totalorder %s25, 1
        %s601 = scalar_select %p600, %s25, 1
        %p602 = scmp.lt.s32.totalorder %s26, 0
        %s603 = scalar_select %p602, %s26, 0
        %s604 = sadd.s32 %s603, %s601
        %s605 = smul.addr %s604, 4
        %s606 = scalar_lea.vmem %s7, %s605
      $region68: #{forward.3} parent=55 // pred_fallthru
        _
    $region56: #{forward.3} parent=5 // pred_fallthru
      _
  $region6: #{forward.3} parent=0 // loop_footer
    %s18 = sadd.s32 1, %s14
  $region7: #{forward.3} parent=0 // loop_footer_branch
    %13 = sbr.rel target = $region3
  $region8: #{forward.3} parent=0 // loop_exit
    _

// kernel: forward.5
$region0: #{forward.5}
  #allocation0 [shape = 'u32[]', space=smem, size = 0x4, offset = 0x4, fixed_abs, tag = 'smem constant byte address 0x4 - core index']
  #allocation1 [shape = 'u32[144,128]{1,0:T(1,128)}', space=vmem, size = 0x12000, scoped, tag = 'internal scratch']
  #allocation2 [shape = 'bf16[8,32]{1,0:T(8,128)(2,1)}', space=vmem, size = 0x800, scoped, tag = 'scratch operand']
  #allocation3 [shape = 'f32[8,32]{1,0:T(8,128)}', space=vmem, size = 0x1000, scoped, tag = 'scratch operand']
  %s0 = inlined_call_operand.vmem [shape: f32[2,8,32], index: 0, kind: input, shape index: {}]
  %s1 = inlined_call_operand.vmem [shape: f32[1,32], index: 1, kind: input, shape index: {}]
  %s2 = inlined_call_operand.vmem [shape: bf16[32,64], index: 2, kind: input, shape index: {}]
  %s3 = inlined_call_operand.vmem [shape: bf16[64,32], index: 3, kind: input, shape index: {}]
  %s4 = inlined_call_operand.hbm [shape: f32[2,8,32], index: 4, kind: output, shape index: {}]
  %s5 = sld [smem:[#allocation0]]
  $region57: #{forward.5} parent=0
    _
  %s7 = ssub.s32 1, %s5
  %s8 = scalar_select 0, %s7, %s5
  $region1: #{forward.5} parent=0
    #allocation4 [shape = 'u8[8192]{0}', space=vmem, size = 0x2000, scoped, tag = 'output window, operand 0']
    #allocation5 [shape = 's32[2]{0}', space=sflag, size = 0x8, scoped, tag = 'scoped memory for forward.5']
    %9 = vsyncpa [#allocation5], 0
    %s10 = scalar_lea.sflag [#allocation5], 1
    %11 = vsyncpa %s10, 0
    loop: start=0, step=1, limit=4
    $region2: #{forward.5} parent=1 // loop_pre_header
      _
    $region3: #{forward.5} parent=1 // loop_header
      %s13 = sphi 0, %s17
      %p14 = scmp.ge.s32.totalorder %s13, 4
      %s20 = sphi 0, %s39
      %s21 = sphi 0, %s35
      %s22 = sphi 0, %s31
      %s23 = sphi 0, %s20
      %s24 = sphi 0, %s21
      %s25 = sphi 0, %s22
      %s26 = sphi 0, %s23
      %s27 = sphi 0, %s24
      %s28 = sphi 0, %s25
      %s44 = sphi 0, %s46
      %s47 = sphi 0, %s44
      %s48 = sphi 0, %s47
      %s64 = sphi 0, %s48
      %s68 = sphi 0, %s68
      %s70 = sphi 0, %s68
      %s71 = sphi 0, %s70
      %s85 = sphi 0, %s71
      %s91 = sphi 0, %s93
      %s94 = sphi 0, %s91
      %s95 = sphi 0, %s94
      %s111 = sphi 0, %s95
      %s117 = sphi 0, %s119
      %s120 = sphi 0, %s117
      %s121 = sphi 0, %s120
      %s137 = sphi 0, %s121
      %s145 = sphi 0, %s147
      %s148 = sphi 0, %s145
      %s149 = sphi 0, %s148
      %s165 = sphi 0, %s149
    $region4: #{forward.5} parent=1 // loop_header_branch
      %16 = sbr.rel (%p14) target = $region8
    $region5: #{forward.5} parent=1 // loop_body
      %s18 = ssub.s32 %s13, 1
      %s19 = ssub.s32 %s13, 2
      %s29 = sadd.s32 1, %s22
      %p30 = scmp.ge.s32.totalorder %s29, 1
      %s31 = scalar_select %p30, 0, %s29
      %s32 = sadd.s32 1, %s21
      %s33 = scalar_select %p30, %s32, %s21
      %p34 = scmp.ge.s32.totalorder %s33, 1
      %s35 = scalar_select %p34, 0, %s33
      %s36 = sadd.s32 1, %s20
      %s37 = scalar_select %p34, %s36, %s20
      %p38 = scmp.ge.s32.totalorder %s37, 2
      %s39 = scalar_select %p38, 0, %s37
      %s40 = ssub.s32 %s20, %s39
      %s41 = ssub.s32 %s21, %s35
      %s42 = sor.u32 %s40, %s41
      %p43 = scmp.eq.s32.totalorder %s42, 0
      %s45 = sadd.s32 %s44, 1
      %s46 = scalar_select %p43, %s44, %s45
      %p49 = pneg %p43
      %p50 = scmp.eq.s32.totalorder %s13, 1
      %p51 = por %p49, %p50
      %p52 = scmp.ne.s32.totalorder %s44, %s47
      %p53 = scmp.eq.s32.totalorder %s13, 0
      %p54 = por %p52, %p53
      %p55 = scmp.ne.s32.totalorder %s44, %s47
      %p56 = scmp.eq.s32.totalorder %s18, 1
      %p57 = por %p55, %p56
      %p58 = scmp.ne.s32.totalorder %s47, %s48
      %p59 = scmp.eq.s32.totalorder %s18, 0
      %p60 = por %p58, %p59
      %p61 = scmp.ne.s32.totalorder %s47, %s48
      %p62 = scmp.eq.s32.totalorder %s19, 1
      %p63 = por %p61, %p62
      %p65 = scmp.ne.s32.totalorder %s48, %s64
      %p66 = scmp.eq.s32.totalorder %s19, 0
      %p67 = por %p65, %p66
      %s69 = sadd.s32 %s68, 1
      %p72 = scmp.eq.s32.totalorder %s13, 1
      %p73 = scmp.ne.s32.totalorder %s68, %s70
      %p74 = scmp.eq.s32.totalorder %s13, 0
      %p75 = por %p73, %p74
      %p76 = scmp.ne.s32.totalorder %s68, %s70
      %p77 = scmp.eq.s32.totalorder %s18, 1
      %p78 = por %p76, %p77
      %p79 = scmp.ne.s32.totalorder %s70, %s71
      %p80 = scmp.eq.s32.totalorder %s18, 0
      %p81 = por %p79, %p80
      %p82 = scmp.ne.s32.totalorder %s70, %s71
      %p83 = scmp.eq.s32.totalorder %s19, 1
      %p84 = por %p82, %p83
      %p86 = scmp.ne.s32.totalorder %s71, %s85
      %p87 = scmp.eq.s32.totalorder %s19, 0
      %p88 = por %p86, %p87
      %s89 = ssub.s32 %s22, %s31
      %p90 = scmp.eq.s32.totalorder %s89, 0
      %s92 = sadd.s32 %s91, 1
      %s93 = scalar_select %p90, %s91, %s92
      %p96 = pneg %p90
      %p97 = scmp.eq.s32.totalorder %s13, 1
      %p98 = por %p96, %p97
      %p99 = scmp.ne.s32.totalorder %s91, %s94
      %p100 = scmp.eq.s32.totalorder %s13, 0
      %p101 = por %p99, %p100
      %p102 = scmp.ne.s32.totalorder %s91, %s94
      %p103 = scmp.eq.s32.totalorder %s18, 1
      %p104 = por %p102, %p103
      %p105 = scmp.ne.s32.totalorder %s94, %s95
      %p106 = scmp.eq.s32.totalorder %s18, 0
      %p107 = por %p105, %p106
      %p108 = scmp.ne.s32.totalorder %s94, %s95
      %p109 = scmp.eq.s32.totalorder %s19, 1
      %p110 = por %p108, %p109
      %p112 = scmp.ne.s32.totalorder %s95, %s111
      %p113 = scmp.eq.s32.totalorder %s19, 0
      %p114 = por %p112, %p113
      %s115 = ssub.s32 %s22, %s31
      %p116 = scmp.eq.s32.totalorder %s115, 0
      %s118 = sadd.s32 %s117, 1
      %s119 = scalar_select %p116, %s117, %s118
      %p122 = pneg %p116
      %p123 = scmp.eq.s32.totalorder %s13, 1
      %p124 = por %p122, %p123
      %p125 = scmp.ne.s32.totalorder %s117, %s120
      %p126 = scmp.eq.s32.totalorder %s13, 0
      %p127 = por %p125, %p126
      %p128 = scmp.ne.s32.totalorder %s117, %s120
      %p129 = scmp.eq.s32.totalorder %s18, 1
      %p130 = por %p128, %p129
      %p131 = scmp.ne.s32.totalorder %s120, %s121
      %p132 = scmp.eq.s32.totalorder %s18, 0
      %p133 = por %p131, %p132
      %p134 = scmp.ne.s32.totalorder %s120, %s121
      %p135 = scmp.eq.s32.totalorder %s19, 1
      %p136 = por %p134, %p135
      %p138 = scmp.ne.s32.totalorder %s121, %s137
      %p139 = scmp.eq.s32.totalorder %s19, 0
      %p140 = por %p138, %p139
      %s141 = ssub.s32 %s20, %s39
      %s142 = ssub.s32 %s21, %s35
      %s143 = sor.u32 %s141, %s142
      %p144 = scmp.eq.s32.totalorder %s143, 0
      %s146 = sadd.s32 %s145, 1
      %s147 = scalar_select %p144, %s145, %s146
      %p150 = pneg %p144
      %p151 = scmp.eq.s32.totalorder %s13, 1
      %p152 = por %p150, %p151
      %p153 = scmp.ne.s32.totalorder %s145, %s148
      %p154 = scmp.eq.s32.totalorder %s13, 0
      %p155 = por %p153, %p154
      %p156 = scmp.ne.s32.totalorder %s145, %s148
      %p157 = scmp.eq.s32.totalorder %s18, 1
      %p158 = por %p156, %p157
      %p159 = scmp.ne.s32.totalorder %s148, %s149
      %p160 = scmp.eq.s32.totalorder %s18, 0
      %p161 = por %p159, %p160
      %p162 = scmp.ne.s32.totalorder %s148, %s149
      %p163 = scmp.eq.s32.totalorder %s19, 1
      %p164 = por %p162, %p163
      %p166 = scmp.ne.s32.totalorder %s149, %s165
      %p167 = scmp.eq.s32.totalorder %s19, 0
      %p168 = por %p166, %p167
      %p169 = scmp.le.s32.totalorder 1, %s13
      %p170 = scmp.lt.s32.totalorder %s13, 3
      %p171 = pnand %p169, %p170
      %p172 = pneg %p171
      // Predicated region
      $region9: #{forward.5} parent=5 // pred_check
        _
      $region10: #{forward.5} parent=5 // pred_check_branch
        %174 = sbr.rel (%p171) target = $region12
      $region11: #{forward.5} parent=5 // pred_region
        %s175 = ssub.s32 %s13, 1
        // Predicated region
        $region13: #{forward.5} parent=11 // pred_check
          %p176 = pneg %p81
        $region14: #{forward.5} parent=11 // pred_check_branch
          %178 = sbr.rel (%p176) target = $region16
        $region15: #{forward.5} parent=11 // pred_region
          _
        $region16: #{forward.5} parent=11 // pred_fallthru
          _
        // Predicated region
        $region17: #{forward.5} parent=11 // pred_check
          %p179 = pneg %p107
        $region18: #{forward.5} parent=11 // pred_check_branch
          %181 = sbr.rel (%p179) target = $region20
        $region19: #{forward.5} parent=11 // pred_region
          %p182 = scmp.lt.s32.totalorder %s25, 0
          %s183 = scalar_select %p182, %s25, 0
          %s184 = smul.addr %s183, 4
          %s185 = scalar_lea.vmem %s2, %s184
        $region20: #{forward.5} parent=11 // pred_fallthru
          _
        // Predicated region
        $region21: #{forward.5} parent=11 // pred_check
          %p186 = pneg %p133
        $region22: #{forward.5} parent=11 // pred_check_branch
          %188 = sbr.rel (%p186) target = $region24
        $region23: #{forward.5} parent=11 // pred_region
          %s189 = smul.u32 8, %s25
          %p190 = scmp.lt.s32.totalorder %s189, 7
          %s191 = scalar_select %p190, %s189, 7
          %s192 = smul.addr %s191, 4
          %s193 = scalar_lea.vmem %s3, %s192
          %s194 = smul.u32 8, %s25
        $region24: #{forward.5} parent=11 // pred_fallthru
          _
      $region12: #{forward.5} parent=5 // pred_fallthru
        _
      %p195 = scmp.lt.s32.totalorder %s13, 2
      // Predicated region
      $region25: #{forward.5} parent=5 // pred_check
        %p196 = pneg %p195
      $region26: #{forward.5} parent=5 // pred_check_branch
        %198 = sbr.rel (%p196) target = $region28
      $region27: #{forward.5} parent=5 // pred_region
        // Predicated region
        $region29: #{forward.5} parent=27 // pred_check
          %p199 = pneg %p54
        $region30: #{forward.5} parent=27 // pred_check_branch
          %201 = sbr.rel (%p199) target = $region32
        $region31: #{forward.5} parent=27 // pred_region
          %p202 = scmp.lt.s32.totalorder %s20, 1
          %s203 = scalar_select %p202, %s20, 1
          %p204 = scmp.lt.s32.totalorder %s21, 0
          %s205 = scalar_select %p204, %s21, 0
          %s206 = sadd.s32 %s205, %s203
          %s207 = smul.addr %s206, 8
          %s208 = scalar_lea.vmem %s0, %s207
        $region32: #{forward.5} parent=27 // pred_fallthru
          _
      $region28: #{forward.5} parent=5 // pred_fallthru
        _
      %p209 = scmp.le.s32.totalorder 1, %s13
      %p210 = scmp.lt.s32.totalorder %s13, 3
      %p211 = pnand %p209, %p210
      %p212 = pneg %p211
      // Predicated region
      $region33: #{forward.5} parent=5 // pred_check
        _
      $region34: #{forward.5} parent=5 // pred_check_branch
        %214 = sbr.rel (%p211) target = $region36
      $region35: #{forward.5} parent=5 // pred_region
        %s215 = ssub.s32 %s13, 1
        %p216 = scmp.lt.s32.totalorder %s23, 1
        %s217 = scalar_select %p216, %s23, 1
        %p218 = scmp.lt.s32.totalorder %s24, 0
        %s219 = scalar_select %p218, %s24, 0
        %s220 = sadd.s32 %s219, %s217
        %s221 = smul.addr %s220, 8
        %s222 = scalar_lea.vmem %s0, %s221
        %p223 = pneg %p60
        %p224 = pneg %p57
        %p225 = pneg %p81
        %p226 = pneg %p78
        %p227 = scmp.lt.s32.totalorder %s25, 0
        %s228 = scalar_select %p227, %s25, 0
        %s229 = smul.addr %s228, 4
        %s230 = scalar_lea.vmem %s2, %s229
        %p231 = pneg %p107
        %p232 = pneg %p104
        %s233 = smul.u32 8, %s25
        %p234 = scmp.lt.s32.totalorder %s233, 7
        %s235 = scalar_select %p234, %s233, 7
        %s236 = smul.addr %s235, 4
        %s237 = scalar_lea.vmem %s3, %s236
        %p238 = pneg %p133
        %p239 = pneg %p130
        %p240 = pneg %p161
        %p241 = pneg %p158
        %s242 = sand.u32 %s148, 1
        %s243 = scalar_lea.sflag [#allocation5], %s242
        %s244 = sand.u32 %s148, 1
        %s245 = smul.addr %s244, 8
        %s246 = scalar_lea.vmem [#allocation4], %s245
        %p247 = scmp.lt.s32.totalorder %s23, 1
        %s248 = scalar_select %p247, %s23, 1
        %p249 = scmp.lt.s32.totalorder %s24, 0
        %s250 = scalar_select %p249, %s24, 0
        %s251 = sadd.s32 %s250, %s248
        %s252 = smul.addr %s251, 8
        %s253 = scalar_lea.vmem %s0, %s252
        %p254 = scmp.lt.s32.totalorder %s25, 0
        %s255 = scalar_select %p254, %s25, 0
        %s256 = smul.addr %s255, 4
        %s257 = scalar_lea.vmem %s2, %s256
        %s258 = smul.u32 8, %s25
        %p259 = scmp.lt.s32.totalorder %s258, 7
        %s260 = scalar_select %p259, %s258, 7
        %s261 = smul.addr %s260, 4
        %s262 = scalar_lea.vmem %s3, %s261
        %s263 = smul.u32 8, %s25
        %p265 = scmp.eq.s32.totalorder %s25, 0
        // Predicated region
        $region37: #{forward.5} parent=35 // pred_check
          %p266 = pneg %p265
        $region38: #{forward.5} parent=35 // pred_check_branch
          %268 = sbr.rel (%p266) target = $region40
        $region39: #{forward.5} parent=35 // pred_region
          %v269 = vld [vmem:[%s253] sm:$0xff]
          %v270 = vmul.f32 %v269, %v269
          %vm271 = vcmask 261120
          %v272 = vsel %vm271, %v270, 0.0
          %273 = vadd.xlane.f32.xlu0 %v272
          %v274 = vpop.xlane.xlu0 %273
          %v275 = vrcp.pop 32.0
          %v276 = vmul.f32 %v274, %v275
          %v277 = vadd.f32 %v276, 1e-06
          %v278 = vrsqrt.pop %v277
          %v279 = vmul.f32 %v269, %v278
          %v280 = vld [vmem:[%s1] sm:$0x1]
          %v282 = vlaneseq
          %v283 = vshrl.u32 %v282, 7
          %v284 = vsub.s32 0, %v283
          %v285 = vrot.slane %v280, %v284
          %v287 = vmul.f32 %v279, %v285
          %v288 = vpack.c.bf16 %v287, %v287
          %vm289 = vcmask 257024
          %290 = vst.msk [vmem:[#allocation2] sm:$0xf] %vm289, %v288
          %291 = vst.msk [vmem:[#allocation3] sm:$0xff] %vm271, %v269
        $region40: #{forward.5} parent=35 // pred_fallthru
          _
        %v292 = vld [vmem:[#allocation2] sm:$0xf]
        %v293 = vld [vmem:[%s257] sm:$0xf]
        %v294 = vld [vmem:[%s257 + $0x4] sm:$0xf]
        %v295 = vld [vmem:[%s257 + $0x8] sm:$0xf]
        %v296 = vld [vmem:[%s257 + $0xc] sm:$0xf]
        %v301 = vunpack.c.l.b16 %v293
        %v302 = vunpack.c.l.b16 %v294
        %v303 = vunpack.c.l.b16 %v295
        %v304 = vunpack.c.l.b16 %v296
        %v305 = vpack.c.b16 %v302, %v301
        %v306 = vpack.c.b16 %v304, %v303
        %vm309 = vcmask 261120
        %v311 = vsel %vm309, %v292, 0
        %313 = vmatprep.subr.bf16.mxu0 0
        %314 = vmatpush1.bf16.msra.mxu0 %v305
        %315 = vmatprep.subr.bf16.mxu0 0
        %316 = vmatpush1.bf16.msra.mxu0 %v306
        %317 = vmatprep.subr.bf16.mxu0 0
        %318 = vmatpush1.bf16.msra.mxu0 0
        %319 = vmatprep.subr.bf16.mxu0 0
        %320 = vmatpush1.bf16.msra.mxu0 0
        %321 = vmatprep.subr.bf16.mxu0 0
        %322 = vmatpush1.bf16.msra.mxu0 0
        %323 = vmatprep.subr.bf16.mxu0 0
        %324 = vmatpush1.bf16.msra.mxu0 0
        %325 = vmatprep.subr.bf16.mxu0 0
        %326 = vmatpush1.bf16.msra.mxu0 0
        %327 = vmatprep.subr.bf16.mxu0 0
        %328 = vmatpush1.bf16.msra.mxu0 0
        %329 = vmatprep.subr.bf16.mxu0 0
        %330 = vmatpush1.bf16.msra.mxu0 0
        %331 = vmatprep.subr.bf16.mxu0 0
        %332 = vmatpush1.bf16.msra.mxu0 0
        %333 = vmatprep.subr.bf16.mxu0 0
        %334 = vmatpush1.bf16.msra.mxu0 0
        %335 = vmatprep.subr.bf16.mxu0 0
        %336 = vmatpush1.bf16.msra.mxu0 0
        %337 = vmatprep.subr.bf16.mxu0 0
        %338 = vmatpush1.bf16.msra.mxu0 0
        %339 = vmatprep.subr.bf16.mxu0 0
        %340 = vmatpush1.bf16.msra.mxu0 0
        %341 = vmatprep.subr.bf16.mxu0 0
        %342 = vmatpush1.bf16.msra.mxu0 0
        %343 = vmatprep.subr.bf16.mxu0 0
        %344 = vmatpush1.bf16.msra.mxu0 0
        %345 = vmatprep.mubr.bf16.mxu0 0
        %346 = vmatmul.mubr.bf16.gmra.mrb[0].mxu0 %v311
        %v347 = vpop.f32.mrb[0].mxu0
        %v348 = vadd.f32 0.0, %v347
        %v349 = vpop.f32.mrb[0].mxu0
        %v350 = vpop.f32.mrb[0].mxu0
        %v351 = vpop.f32.mrb[0].mxu0
        %352 = vdwg.mxu0
        %v353 = vmul.f32 %v348, %v348
        %v354 = vmul.f32 %v348, %v353
        %v355 = vmul.f32 %v354, 0.044715
        %v356 = vadd.f32 %v348, %v355
        %v357 = vmul.f32 %v356, 0.7978846
        %v358 = vtanh.pop %v357
        %v359 = vadd.f32 %v358, 1.0
        %v360 = vmul.f32 %v359, 0.5
        %v361 = vmul.f32 %v348, %v360
        %v362 = vld [vmem:[#allocation3] sm:$0xff]
        %v363 = vpack.c.bf16 %v361, %v361
        %v364 = vld [vmem:[%s262] sm:$0xf]
        %v365 = vld [vmem:[%s262 + $0x4] sm:$0xf]
        %v366 = vld [vmem:[%s262 + $0x8] sm:$0xf]
        %v367 = vld [vmem:[%s262 + $0xc] sm:$0xf]
        %v368 = vld [vmem:[%s262 + $0x10] sm:$0xf]
        %v369 = vld [vmem:[%s262 + $0x14] sm:$0xf]
        %v370 = vld [vmem:[%s262 + $0x18] sm:$0xf]
        %v371 = vld [vmem:[%s262 + $0x1c] sm:$0xf]
        %v380 = vunpack.c.l.b16 %v364
        %v381 = vunpack.c.l.b16 %v365
        %v382 = vunpack.c.l.b16 %v366
        %v383 = vunpack.c.l.b16 %v367
        %v384 = vunpack.c.l.b16 %v368
        %v385 = vunpack.c.l.b16 %v369
        %v386 = vunpack.c.l.b16 %v370
        %v387 = vunpack.c.l.b16 %v371
        %v388 = vpack.c.b16 %v381, %v380
        %v389 = vpack.c.b16 %v383, %v382
        %v390 = vpack.c.b16 %v385, %v384
        %v391 = vpack.c.b16 %v387, %v386
        %vm396 = vcmask 523264
        %v398 = vsel %vm396, %v363, 0
        %400 = vmatprep.subr.bf16.mxu0 0
        %401 = vmatpush1.bf16.msra.mxu0 %v388
        %402 = vmatprep.subr.bf16.mxu0 0
        %403 = vmatpush1.bf16.msra.mxu0 %v389
        %404 = vmatprep.subr.bf16.mxu0 0
        %405 = vmatpush1.bf16.msra.mxu0 %v390
        %406 = vmatprep.subr.bf16.mxu0 0
        %407 = vmatpush1.bf16.msra.mxu0 %v391
        %408 = vmatprep.subr.bf16.mxu0 0
        %409 = vmatpush1.bf16.msra.mxu0 0
        %410 = vmatprep.subr.bf16.mxu0 0
        %411 = vmatpush1.bf16.msra.mxu0 0
        %412 = vmatprep.subr.bf16.mxu0 0
        %413 = vmatpush1.bf16.msra.mxu0 0
        %414 = vmatprep.subr.bf16.mxu0 0
        %415 = vmatpush1.bf16.msra.mxu0 0
        %416 = vmatprep.subr.bf16.mxu0 0
        %417 = vmatpush1.bf16.msra.mxu0 0
        %418 = vmatprep.subr.bf16.mxu0 0
        %419 = vmatpush1.bf16.msra.mxu0 0
        %420 = vmatprep.subr.bf16.mxu0 0
        %421 = vmatpush1.bf16.msra.mxu0 0
        %422 = vmatprep.subr.bf16.mxu0 0
        %423 = vmatpush1.bf16.msra.mxu0 0
        %424 = vmatprep.subr.bf16.mxu0 0
        %425 = vmatpush1.bf16.msra.mxu0 0
        %426 = vmatprep.subr.bf16.mxu0 0
        %427 = vmatpush1.bf16.msra.mxu0 0
        %428 = vmatprep.subr.bf16.mxu0 0
        %429 = vmatpush1.bf16.msra.mxu0 0
        %430 = vmatprep.subr.bf16.mxu0 0
        %431 = vmatpush1.bf16.msra.mxu0 0
        %432 = vmatprep.mubr.bf16.mxu0 0
        %433 = vmatmul.mubr.bf16.gmra.mrb[0].mxu0 %v398
        %v434 = vpop.f32.mrb[0].mxu0
        %v435 = vadd.f32 0.0, %v434
        %v436 = vpop.f32.mrb[0].mxu0
        %v437 = vpop.f32.mrb[0].mxu0
        %v438 = vpop.f32.mrb[0].mxu0
        %439 = vdwg.mxu0
        %v440 = vadd.f32 %v362, %v435
        %441 = vst.msk [vmem:[#allocation3] sm:$0xff] %vm309, %v440
        // Predicated region
        $region41: #{forward.5} parent=35 // pred_check
          %p442 = pneg %p265
        $region42: #{forward.5} parent=35 // pred_check_branch
          %444 = sbr.rel (%p442) target = $region44
        $region43: #{forward.5} parent=35 // pred_region
          %v445 = vld [vmem:[#allocation3] sm:$0xff]
          %446 = vst.msk [vmem:[%s246] sm:$0xff] %vm309, %v445
        $region44: #{forward.5} parent=35 // pred_fallthru
          _
        %s447 = sand.u32 %s148, 1
        %s448 = scalar_lea.sflag [#allocation5], %s447
        %s449 = sand.u32 %s148, 1
        %s450 = smul.addr %s449, 8
        %s451 = scalar_lea.vmem [#allocation4], %s450
        // Predicated region
        $region45: #{forward.5} parent=35 // pred_check
          %p452 = pneg %p158
        $region46: #{forward.5} parent=35 // pred_check_branch
          %454 = sbr.rel (%p452) target = $region48
        $region47: #{forward.5} parent=35 // pred_region
          %s456 = ssub.s32 128, 128
          %457 = vsyncadd %s448, %s456
          %s458 = sadd.s32 %s24, %s23
          %s459 = smul.addr %s458, 128
          %s460 = scalar_lea.hbm %s4, %s459
          %s462 = sshll.u32 %s451, 4
          %s463 = int_to_ptr.vmem [resolvable:$true] %s462
          %465 = dma.vmem_to_hbm [thread:$0]  %s463, 128, %s460, %s448
        $region48: #{forward.5} parent=35 // pred_fallthru
          _
      $region36: #{forward.5} parent=5 // pred_fallthru
        _
      %p466 = scmp.le.s32.totalorder 2, %s13
      // Predicated region
      $region49: #{forward.5} parent=5 // pred_check
        %p467 = pneg %p466
      $region50: #{forward.5} parent=5 // pred_check_branch
        %469 = sbr.rel (%p467) target = $region52
      $region51: #{forward.5} parent=5 // pred_region
        %s470 = ssub.s32 %s13, 2
        // Predicated region
        $region53: #{forward.5} parent=51 // pred_check
          %p471 = pneg %p164
        $region54: #{forward.5} parent=51 // pred_check_branch
          %473 = sbr.rel (%p471) target = $region56
        $region55: #{forward.5} parent=51 // pred_region
          %s474 = sand.u32 %s149, 1
          %s475 = scalar_lea.sflag [#allocation5], %s474
          %s476 = sand.u32 %s149, 1
          %s477 = smul.addr %s476, 8
          %s478 = scalar_lea.vmem [#allocation4], %s477
          %479 = dma.done %s475, 128
        $region56: #{forward.5} parent=51 // pred_fallthru
          _
      $region52: #{forward.5} parent=5 // pred_fallthru
        _
    $region6: #{forward.5} parent=1 // loop_footer
      %s17 = sadd.s32 1, %s13
    $region7: #{forward.5} parent=1 // loop_footer_branch
      %12 = sbr.rel target = $region3
    $region8: #{forward.5} parent=1 // loop_exit
      _
    %480 = vsyncpa [#allocation5], 1
    %s481 = scalar_lea.sflag [#allocation5], 1
    %482 = vsyncpa %s481, 1

// kernel: forward.5
$region0: #{forward.5}
  #allocation0 [shape = 'u32[]', space=smem, size = 0x4, offset = 0x4, fixed_abs, tag = 'smem constant byte address 0x4 - core index']
  #allocation1 [shape = 'u32[144,128]{1,0:T(1,128)}', space=vmem, size = 0x12000, scoped, tag = 'internal scratch']
  #allocation2 [shape = 'bf16[8,32]{1,0:T(8,128)(2,1)}', space=vmem, size = 0x800, scoped, tag = 'scratch operand']
  #allocation3 [shape = 'f32[8,32]{1,0:T(8,128)}', space=vmem, size = 0x1000, scoped, tag = 'scratch operand']
  %s0 = inlined_call_operand.vmem [shape: f32[2,8,32], index: 0, kind: input, shape index: {}]
  %s1 = inlined_call_operand.vmem [shape: f32[1,32], index: 1, kind: input, shape index: {}]
  %s2 = inlined_call_operand.vmem [shape: bf16[32,64], index: 2, kind: input, shape index: {}]
  %s3 = inlined_call_operand.vmem [shape: bf16[64,32], index: 3, kind: input, shape index: {}]
  %s4 = inlined_call_operand.hbm [shape: f32[2,8,32], index: 4, kind: output, shape index: {}]
  %s5 = sld [smem:[#allocation0]]
  $region57: #{forward.5} parent=0
    _
  %s7 = ssub.s32 1, %s5
  %s8 = scalar_select 0, %s7, %s5
  $region1: #{forward.5} parent=0
    #allocation4 [shape = 'u8[8192]{0}', space=vmem, size = 0x2000, scoped, tag = 'output window, operand 0']
    #allocation5 [shape = 's32[2]{0}', space=sflag, size = 0x8, scoped, tag = 'scoped memory for forward.5']
    %9 = vsyncpa [#allocation5], 0
    %s10 = scalar_lea.sflag [#allocation5], 1
    %11 = vsyncpa %s10, 0
    loop: start=0, step=1, limit=4
    $region2: #{forward.5} parent=1 // loop_pre_header
      _
    $region3: #{forward.5} parent=1 // loop_header
      %s13 = sphi 0, %s17
      %p14 = scmp.ge.s32.totalorder %s13, 4
      %s20 = sphi 0, %s39
      %s21 = sphi 0, %s35
      %s22 = sphi 0, %s31
      %s23 = sphi 0, %s20
      %s24 = sphi 0, %s21
      %s25 = sphi 0, %s22
      %s26 = sphi 0, %s23
      %s27 = sphi 0, %s24
      %s28 = sphi 0, %s25
      %s44 = sphi 0, %s46
      %s47 = sphi 0, %s44
      %s48 = sphi 0, %s47
      %s64 = sphi 0, %s48
      %s68 = sphi 0, %s68
      %s70 = sphi 0, %s68
      %s71 = sphi 0, %s70
      %s85 = sphi 0, %s71
      %s91 = sphi 0, %s93
      %s94 = sphi 0, %s91
      %s95 = sphi 0, %s94
      %s111 = sphi 0, %s95
      %s117 = sphi 0, %s119
      %s120 = sphi 0, %s117
      %s121 = sphi 0, %s120
      %s137 = sphi 0, %s121
      %s145 = sphi 0, %s147
      %s148 = sphi 0, %s145
      %s149 = sphi 0, %s148
      %s165 = sphi 0, %s149
    $region4: #{forward.5} parent=1 // loop_header_branch
      %16 = sbr.rel (%p14) target = $region8
    $region5: #{forward.5} parent=1 // loop_body
      %s18 = ssub.s32 %s13, 1
      %s19 = ssub.s32 %s13, 2
      %s29 = sadd.s32 1, %s22
      %p30 = scmp.ge.s32.totalorder %s29, 1
      %s31 = scalar_select %p30, 0, %s29
      %s32 = sadd.s32 1, %s21
      %s33 = scalar_select %p30, %s32, %s21
      %p34 = scmp.ge.s32.totalorder %s33, 1
      %s35 = scalar_select %p34, 0, %s33
      %s36 = sadd.s32 1, %s20
      %s37 = scalar_select %p34, %s36, %s20
      %p38 = scmp.ge.s32.totalorder %s37, 2
      %s39 = scalar_select %p38, 0, %s37
      %s40 = ssub.s32 %s20, %s39
      %s41 = ssub.s32 %s21, %s35
      %s42 = sor.u32 %s40, %s41
      %p43 = scmp.eq.s32.totalorder %s42, 0
      %s45 = sadd.s32 %s44, 1
      %s46 = scalar_select %p43, %s44, %s45
      %p49 = pneg %p43
      %p50 = scmp.eq.s32.totalorder %s13, 1
      %p51 = por %p49, %p50
      %p52 = scmp.ne.s32.totalorder %s44, %s47
      %p53 = scmp.eq.s32.totalorder %s13, 0
      %p54 = por %p52, %p53
      %p55 = scmp.ne.s32.totalorder %s44, %s47
      %p56 = scmp.eq.s32.totalorder %s18, 1
      %p57 = por %p55, %p56
      %p58 = scmp.ne.s32.totalorder %s47, %s48
      %p59 = scmp.eq.s32.totalorder %s18, 0
      %p60 = por %p58, %p59
      %p61 = scmp.ne.s32.totalorder %s47, %s48
      %p62 = scmp.eq.s32.totalorder %s19, 1
      %p63 = por %p61, %p62
      %p65 = scmp.ne.s32.totalorder %s48, %s64
      %p66 = scmp.eq.s32.totalorder %s19, 0
      %p67 = por %p65, %p66
      %s69 = sadd.s32 %s68, 1
      %p72 = scmp.eq.s32.totalorder %s13, 1
      %p73 = scmp.ne.s32.totalorder %s68, %s70
      %p74 = scmp.eq.s32.totalorder %s13, 0
      %p75 = por %p73, %p74
      %p76 = scmp.ne.s32.totalorder %s68, %s70
      %p77 = scmp.eq.s32.totalorder %s18, 1
      %p78 = por %p76, %p77
      %p79 = scmp.ne.s32.totalorder %s70, %s71
      %p80 = scmp.eq.s32.totalorder %s18, 0
      %p81 = por %p79, %p80
      %p82 = scmp.ne.s32.totalorder %s70, %s71
      %p83 = scmp.eq.s32.totalorder %s19, 1
      %p84 = por %p82, %p83
      %p86 = scmp.ne.s32.totalorder %s71, %s85
      %p87 = scmp.eq.s32.totalorder %s19, 0
      %p88 = por %p86, %p87
      %s89 = ssub.s32 %s22, %s31
      %p90 = scmp.eq.s32.totalorder %s89, 0
      %s92 = sadd.s32 %s91, 1
      %s93 = scalar_select %p90, %s91, %s92
      %p96 = pneg %p90
      %p97 = scmp.eq.s32.totalorder %s13, 1
      %p98 = por %p96, %p97
      %p99 = scmp.ne.s32.totalorder %s91, %s94
      %p100 = scmp.eq.s32.totalorder %s13, 0
      %p101 = por %p99, %p100
      %p102 = scmp.ne.s32.totalorder %s91, %s94
      %p103 = scmp.eq.s32.totalorder %s18, 1
      %p104 = por %p102, %p103
      %p105 = scmp.ne.s32.totalorder %s94, %s95
      %p106 = scmp.eq.s32.totalorder %s18, 0
      %p107 = por %p105, %p106
      %p108 = scmp.ne.s32.totalorder %s94, %s95
      %p109 = scmp.eq.s32.totalorder %s19, 1
      %p110 = por %p108, %p109
      %p112 = scmp.ne.s32.totalorder %s95, %s111
      %p113 = scmp.eq.s32.totalorder %s19, 0
      %p114 = por %p112, %p113
      %s115 = ssub.s32 %s22, %s31
      %p116 = scmp.eq.s32.totalorder %s115, 0
      %s118 = sadd.s32 %s117, 1
      %s119 = scalar_select %p116, %s117, %s118
      %p122 = pneg %p116
      %p123 = scmp.eq.s32.totalorder %s13, 1
      %p124 = por %p122, %p123
      %p125 = scmp.ne.s32.totalorder %s117, %s120
      %p126 = scmp.eq.s32.totalorder %s13, 0
      %p127 = por %p125, %p126
      %p128 = scmp.ne.s32.totalorder %s117, %s120
      %p129 = scmp.eq.s32.totalorder %s18, 1
      %p130 = por %p128, %p129
      %p131 = scmp.ne.s32.totalorder %s120, %s121
      %p132 = scmp.eq.s32.totalorder %s18, 0
      %p133 = por %p131, %p132
      %p134 = scmp.ne.s32.totalorder %s120, %s121
      %p135 = scmp.eq.s32.totalorder %s19, 1
      %p136 = por %p134, %p135
      %p138 = scmp.ne.s32.totalorder %s121, %s137
      %p139 = scmp.eq.s32.totalorder %s19, 0
      %p140 = por %p138, %p139
      %s141 = ssub.s32 %s20, %s39
      %s142 = ssub.s32 %s21, %s35
      %s143 = sor.u32 %s141, %s142
      %p144 = scmp.eq.s32.totalorder %s143, 0
      %s146 = sadd.s32 %s145, 1
      %s147 = scalar_select %p144, %s145, %s146
      %p150 = pneg %p144
      %p151 = scmp.eq.s32.totalorder %s13, 1
      %p152 = por %p150, %p151
      %p153 = scmp.ne.s32.totalorder %s145, %s148
      %p154 = scmp.eq.s32.totalorder %s13, 0
      %p155 = por %p153, %p154
      %p156 = scmp.ne.s32.totalorder %s145, %s148
      %p157 = scmp.eq.s32.totalorder %s18, 1
      %p158 = por %p156, %p157
      %p159 = scmp.ne.s32.totalorder %s148, %s149
      %p160 = scmp.eq.s32.totalorder %s18, 0
      %p161 = por %p159, %p160
      %p162 = scmp.ne.s32.totalorder %s148, %s149
      %p163 = scmp.eq.s32.totalorder %s19, 1
      %p164 = por %p162, %p163
      %p166 = scmp.ne.s32.totalorder %s149, %s165
      %p167 = scmp.eq.s32.totalorder %s19, 0
      %p168 = por %p166, %p167
      %p169 = scmp.le.s32.totalorder 1, %s13
      %p170 = scmp.lt.s32.totalorder %s13, 3
      %p171 = pnand %p169, %p170
      %p172 = pneg %p171
      // Predicated region
      $region9: #{forward.5} parent=5 // pred_check
        _
      $region10: #{forward.5} parent=5 // pred_check_branch
        %174 = sbr.rel (%p171) target = $region12
      $region11: #{forward.5} parent=5 // pred_region
        %s175 = ssub.s32 %s13, 1
        // Predicated region
        $region13: #{forward.5} parent=11 // pred_check
          %p176 = pneg %p81
        $region14: #{forward.5} parent=11 // pred_check_branch
          %178 = sbr.rel (%p176) target = $region16
        $region15: #{forward.5} parent=11 // pred_region
          _
        $region16: #{forward.5} parent=11 // pred_fallthru
          _
        // Predicated region
        $region17: #{forward.5} parent=11 // pred_check
          %p179 = pneg %p107
        $region18: #{forward.5} parent=11 // pred_check_branch
          %181 = sbr.rel (%p179) target = $region20
        $region19: #{forward.5} parent=11 // pred_region
          %p182 = scmp.lt.s32.totalorder %s25, 0
          %s183 = scalar_select %p182, %s25, 0
          %s184 = smul.addr %s183, 4
          %s185 = scalar_lea.vmem %s2, %s184
        $region20: #{forward.5} parent=11 // pred_fallthru
          _
        // Predicated region
        $region21: #{forward.5} parent=11 // pred_check
          %p186 = pneg %p133
        $region22: #{forward.5} parent=11 // pred_check_branch
          %188 = sbr.rel (%p186) target = $region24
        $region23: #{forward.5} parent=11 // pred_region
          %s189 = smul.u32 8, %s25
          %p190 = scmp.lt.s32.totalorder %s189, 7
          %s191 = scalar_select %p190, %s189, 7
          %s192 = smul.addr %s191, 4
          %s193 = scalar_lea.vmem %s3, %s192
          %s194 = smul.u32 8, %s25
        $region24: #{forward.5} parent=11 // pred_fallthru
          _
      $region12: #{forward.5} parent=5 // pred_fallthru
        _
      %p195 = scmp.lt.s32.totalorder %s13, 2
      // Predicated region
      $region25: #{forward.5} parent=5 // pred_check
        %p196 = pneg %p195
      $region26: #{forward.5} parent=5 // pred_check_branch
        %198 = sbr.rel (%p196) target = $region28
      $region27: #{forward.5} parent=5 // pred_region
        // Predicated region
        $region29: #{forward.5} parent=27 // pred_check
          %p199 = pneg %p54
        $region30: #{forward.5} parent=27 // pred_check_branch
          %201 = sbr.rel (%p199) target = $region32
        $region31: #{forward.5} parent=27 // pred_region
          %p202 = scmp.lt.s32.totalorder %s20, 1
          %s203 = scalar_select %p202, %s20, 1
          %p204 = scmp.lt.s32.totalorder %s21, 0
          %s205 = scalar_select %p204, %s21, 0
          %s206 = sadd.s32 %s205, %s203
          %s207 = smul.addr %s206, 8
          %s208 = scalar_lea.vmem %s0, %s207
        $region32: #{forward.5} parent=27 // pred_fallthru
          _
      $region28: #{forward.5} parent=5 // pred_fallthru
        _
      %p209 = scmp.le.s32.totalorder 1, %s13
      %p210 = scmp.lt.s32.totalorder %s13, 3
      %p211 = pnand %p209, %p210
      %p212 = pneg %p211
      // Predicated region
      $region33: #{forward.5} parent=5 // pred_check
        _
      $region34: #{forward.5} parent=5 // pred_check_branch
        %214 = sbr.rel (%p211) target = $region36
      $region35: #{forward.5} parent=5 // pred_region
        %s215 = ssub.s32 %s13, 1
        %p216 = scmp.lt.s32.totalorder %s23, 1
        %s217 = scalar_select %p216, %s23, 1
        %p218 = scmp.lt.s32.totalorder %s24, 0
        %s219 = scalar_select %p218, %s24, 0
        %s220 = sadd.s32 %s219, %s217
        %s221 = smul.addr %s220, 8
        %s222 = scalar_lea.vmem %s0, %s221
        %p223 = pneg %p60
        %p224 = pneg %p57
        %p225 = pneg %p81
        %p226 = pneg %p78
        %p227 = scmp.lt.s32.totalorder %s25, 0
        %s228 = scalar_select %p227, %s25, 0
        %s229 = smul.addr %s228, 4
        %s230 = scalar_lea.vmem %s2, %s229
        %p231 = pneg %p107
        %p232 = pneg %p104
        %s233 = smul.u32 8, %s25
        %p234 = scmp.lt.s32.totalorder %s233, 7
        %s235 = scalar_select %p234, %s233, 7
        %s236 = smul.addr %s235, 4
        %s237 = scalar_lea.vmem %s3, %s236
        %p238 = pneg %p133
        %p239 = pneg %p130
        %p240 = pneg %p161
        %p241 = pneg %p158
        %s242 = sand.u32 %s148, 1
        %s243 = scalar_lea.sflag [#allocation5], %s242
        %s244 = sand.u32 %s148, 1
        %s245 = smul.addr %s244, 8
        %s246 = scalar_lea.vmem [#allocation4], %s245
        %p247 = scmp.lt.s32.totalorder %s23, 1
        %s248 = scalar_select %p247, %s23, 1
        %p249 = scmp.lt.s32.totalorder %s24, 0
        %s250 = scalar_select %p249, %s24, 0
        %s251 = sadd.s32 %s250, %s248
        %s252 = smul.addr %s251, 8
        %s253 = scalar_lea.vmem %s0, %s252
        %p254 = scmp.lt.s32.totalorder %s25, 0
        %s255 = scalar_select %p254, %s25, 0
        %s256 = smul.addr %s255, 4
        %s257 = scalar_lea.vmem %s2, %s256
        %s258 = smul.u32 8, %s25
        %p259 = scmp.lt.s32.totalorder %s258, 7
        %s260 = scalar_select %p259, %s258, 7
        %s261 = smul.addr %s260, 4
        %s262 = scalar_lea.vmem %s3, %s261
        %s263 = smul.u32 8, %s25
        %p265 = scmp.eq.s32.totalorder %s25, 0
        // Predicated region
        $region37: #{forward.5} parent=35 // pred_check
          %p266 = pneg %p265
        $region38: #{forward.5} parent=35 // pred_check_branch
          %268 = sbr.rel (%p266) target = $region40
        $region39: #{forward.5} parent=35 // pred_region
          %v269 = vld [vmem:[%s253] sm:$0xff]
          %v270 = vmul.f32 %v269, %v269
          %vm271 = vcmask 261120
          %v272 = vsel %vm271, %v270, 0.0
          %273 = vadd.xlane.f32.xlu0 %v272
          %v274 = vpop.xlane.xlu0 %273
          %v275 = vrcp.pop 32.0
          %v276 = vmul.f32 %v274, %v275
          %v277 = vadd.f32 %v276, 1e-06
          %v278 = vrsqrt.pop %v277
          %v279 = vmul.f32 %v269, %v278
          %v280 = vld [vmem:[%s1] sm:$0x1]
          %v282 = vlaneseq
          %v283 = vshrl.u32 %v282, 7
          %v284 = vsub.s32 0, %v283
          %v285 = vrot.slane %v280, %v284
          %v287 = vmul.f32 %v279, %v285
          %v288 = vpack.c.bf16 %v287, %v287
          %vm289 = vcmask 257024
          %290 = vst.msk [vmem:[#allocation2] sm:$0xf] %vm289, %v288
          %291 = vst.msk [vmem:[#allocation3] sm:$0xff] %vm271, %v269
        $region40: #{forward.5} parent=35 // pred_fallthru
          _
        %v292 = vld [vmem:[#allocation2] sm:$0xf]
        %v293 = vld [vmem:[%s257] sm:$0xf]
        %v294 = vld [vmem:[%s257 + $0x4] sm:$0xf]
        %v295 = vld [vmem:[%s257 + $0x8] sm:$0xf]
        %v296 = vld [vmem:[%s257 + $0xc] sm:$0xf]
        %v301 = vunpack.c.l.b16 %v293
        %v302 = vunpack.c.l.b16 %v294
        %v303 = vunpack.c.l.b16 %v295
        %v304 = vunpack.c.l.b16 %v296
        %v305 = vpack.c.b16 %v302, %v301
        %v306 = vpack.c.b16 %v304, %v303
        %vm309 = vcmask 261120
        %v311 = vsel %vm309, %v292, 0
        %313 = vmatprep.subr.bf16.mxu0 0
        %314 = vmatpush1.bf16.msra.mxu0 %v305
        %315 = vmatprep.subr.bf16.mxu0 0
        %316 = vmatpush1.bf16.msra.mxu0 %v306
        %317 = vmatprep.subr.bf16.mxu0 0
        %318 = vmatpush1.bf16.msra.mxu0 0
        %319 = vmatprep.subr.bf16.mxu0 0
        %320 = vmatpush1.bf16.msra.mxu0 0
        %321 = vmatprep.subr.bf16.mxu0 0
        %322 = vmatpush1.bf16.msra.mxu0 0
        %323 = vmatprep.subr.bf16.mxu0 0
        %324 = vmatpush1.bf16.msra.mxu0 0
        %325 = vmatprep.subr.bf16.mxu0 0
        %326 = vmatpush1.bf16.msra.mxu0 0
        %327 = vmatprep.subr.bf16.mxu0 0
        %328 = vmatpush1.bf16.msra.mxu0 0
        %329 = vmatprep.subr.bf16.mxu0 0
        %330 = vmatpush1.bf16.msra.mxu0 0
        %331 = vmatprep.subr.bf16.mxu0 0
        %332 = vmatpush1.bf16.msra.mxu0 0
        %333 = vmatprep.subr.bf16.mxu0 0
        %334 = vmatpush1.bf16.msra.mxu0 0
        %335 = vmatprep.subr.bf16.mxu0 0
        %336 = vmatpush1.bf16.msra.mxu0 0
        %337 = vmatprep.subr.bf16.mxu0 0
        %338 = vmatpush1.bf16.msra.mxu0 0
        %339 = vmatprep.subr.bf16.mxu0 0
        %340 = vmatpush1.bf16.msra.mxu0 0
        %341 = vmatprep.subr.bf16.mxu0 0
        %342 = vmatpush1.bf16.msra.mxu0 0
        %343 = vmatprep.subr.bf16.mxu0 0
        %344 = vmatpush1.bf16.msra.mxu0 0
        %345 = vmatprep.mubr.bf16.mxu0 0
        %346 = vmatmul.mubr.bf16.gmra.mrb[0].mxu0 %v311
        %v347 = vpop.f32.mrb[0].mxu0
        %v348 = vadd.f32 0.0, %v347
        %v349 = vpop.f32.mrb[0].mxu0
        %v350 = vpop.f32.mrb[0].mxu0
        %v351 = vpop.f32.mrb[0].mxu0
        %352 = vdwg.mxu0
        %v353 = vmul.f32 %v348, %v348
        %v354 = vmul.f32 %v348, %v353
        %v355 = vmul.f32 %v354, 0.044715
        %v356 = vadd.f32 %v348, %v355
        %v357 = vmul.f32 %v356, 0.7978846
        %v358 = vtanh.pop %v357
        %v359 = vadd.f32 %v358, 1.0
        %v360 = vmul.f32 %v359, 0.5
        %v361 = vmul.f32 %v348, %v360
        %v362 = vld [vmem:[#allocation3] sm:$0xff]
        %v363 = vpack.c.bf16 %v361, %v361
        %v364 = vld [vmem:[%s262] sm:$0xf]
        %v365 = vld [vmem:[%s262 + $0x4] sm:$0xf]
        %v366 = vld [vmem:[%s262 + $0x8] sm:$0xf]
        %v367 = vld [vmem:[%s262 + $0xc] sm:$0xf]
        %v368 = vld [vmem:[%s262 + $0x10] sm:$0xf]
        %v369 = vld [vmem:[%s262 + $0x14] sm:$0xf]
        %v370 = vld [vmem:[%s262 + $0x18] sm:$0xf]
        %v371 = vld [vmem:[%s262 + $0x1c] sm:$0xf]
        %v380 = vunpack.c.l.b16 %v364
        %v381 = vunpack.c.l.b16 %v365
        %v382 = vunpack.c.l.b16 %v366
        %v383 = vunpack.c.l.b16 %v367
        %v384 = vunpack.c.l.b16 %v368
        %v385 = vunpack.c.l.b16 %v369
        %v386 = vunpack.c.l.b16 %v370
        %v387 = vunpack.c.l.b16 %v371
        %v388 = vpack.c.b16 %v381, %v380
        %v389 = vpack.c.b16 %v383, %v382
        %v390 = vpack.c.b16 %v385, %v384
        %v391 = vpack.c.b16 %v387, %v386
        %vm396 = vcmask 523264
        %v398 = vsel %vm396, %v363, 0
        %400 = vmatprep.subr.bf16.mxu0 0
        %401 = vmatpush1.bf16.msra.mxu0 %v388
        %402 = vmatprep.subr.bf16.mxu0 0
        %403 = vmatpush1.bf16.msra.mxu0 %v389
        %404 = vmatprep.subr.bf16.mxu0 0
        %405 = vmatpush1.bf16.msra.mxu0 %v390
        %406 = vmatprep.subr.bf16.mxu0 0
        %407 = vmatpush1.bf16.msra.mxu0 %v391
        %408 = vmatprep.subr.bf16.mxu0 0
        %409 = vmatpush1.bf16.msra.mxu0 0
        %410 = vmatprep.subr.bf16.mxu0 0
        %411 = vmatpush1.bf16.msra.mxu0 0
        %412 = vmatprep.subr.bf16.mxu0 0
        %413 = vmatpush1.bf16.msra.mxu0 0
        %414 = vmatprep.subr.bf16.mxu0 0
        %415 = vmatpush1.bf16.msra.mxu0 0
        %416 = vmatprep.subr.bf16.mxu0 0
        %417 = vmatpush1.bf16.msra.mxu0 0
        %418 = vmatprep.subr.bf16.mxu0 0
        %419 = vmatpush1.bf16.msra.mxu0 0
        %420 = vmatprep.subr.bf16.mxu0 0
        %421 = vmatpush1.bf16.msra.mxu0 0
        %422 = vmatprep.subr.bf16.mxu0 0
        %423 = vmatpush1.bf16.msra.mxu0 0
        %424 = vmatprep.subr.bf16.mxu0 0
        %425 = vmatpush1.bf16.msra.mxu0 0
        %426 = vmatprep.subr.bf16.mxu0 0
        %427 = vmatpush1.bf16.msra.mxu0 0
        %428 = vmatprep.subr.bf16.mxu0 0
        %429 = vmatpush1.bf16.msra.mxu0 0
        %430 = vmatprep.subr.bf16.mxu0 0
        %431 = vmatpush1.bf16.msra.mxu0 0
        %432 = vmatprep.mubr.bf16.mxu0 0
        %433 = vmatmul.mubr.bf16.gmra.mrb[0].mxu0 %v398
        %v434 = vpop.f32.mrb[0].mxu0
        %v435 = vadd.f32 0.0, %v434
        %v436 = vpop.f32.mrb[0].mxu0
        %v437 = vpop.f32.mrb[0].mxu0
        %v438 = vpop.f32.mrb[0].mxu0
        %439 = vdwg.mxu0
        %v440 = vadd.f32 %v362, %v435
        %441 = vst.msk [vmem:[#allocation3] sm:$0xff] %vm309, %v440
        // Predicated region
        $region41: #{forward.5} parent=35 // pred_check
          %p442 = pneg %p265
        $region42: #{forward.5} parent=35 // pred_check_branch
          %444 = sbr.rel (%p442) target = $region44
        $region43: #{forward.5} parent=35 // pred_region
          %v445 = vld [vmem:[#allocation3] sm:$0xff]
          %446 = vst.msk [vmem:[%s246] sm:$0xff] %vm309, %v445
        $region44: #{forward.5} parent=35 // pred_fallthru
          _
        %s447 = sand.u32 %s148, 1
        %s448 = scalar_lea.sflag [#allocation5], %s447
        %s449 = sand.u32 %s148, 1
        %s450 = smul.addr %s449, 8
        %s451 = scalar_lea.vmem [#allocation4], %s450
        // Predicated region
        $region45: #{forward.5} parent=35 // pred_check
          %p452 = pneg %p158
        $region46: #{forward.5} parent=35 // pred_check_branch
          %454 = sbr.rel (%p452) target = $region48
        $region47: #{forward.5} parent=35 // pred_region
          %s456 = ssub.s32 128, 128
          %457 = vsyncadd %s448, %s456
          %s458 = sadd.s32 %s24, %s23
          %s459 = smul.addr %s458, 128
          %s460 = scalar_lea.hbm %s4, %s459
          %s462 = sshll.u32 %s451, 4
          %s463 = int_to_ptr.vmem [resolvable:$true] %s462
          %465 = dma.vmem_to_hbm [thread:$0]  %s463, 128, %s460, %s448
        $region48: #{forward.5} parent=35 // pred_fallthru
          _
      $region36: #{forward.5} parent=5 // pred_fallthru
        _
      %p466 = scmp.le.s32.totalorder 2, %s13
      // Predicated region
      $region49: #{forward.5} parent=5 // pred_check
        %p467 = pneg %p466
      $region50: #{forward.5} parent=5 // pred_check_branch
        %469 = sbr.rel (%p467) target = $region52
      $region51: #{forward.5} parent=5 // pred_region
        %s470 = ssub.s32 %s13, 2
        // Predicated region
        $region53: #{forward.5} parent=51 // pred_check
          %p471 = pneg %p164
        $region54: #{forward.5} parent=51 // pred_check_branch
          %473 = sbr.rel (%p471) target = $region56
        $region55: #{forward.5} parent=51 // pred_region
          %s474 = sand.u32 %s149, 1
          %s475 = scalar_lea.sflag [#allocation5], %s474
          %s476 = sand.u32 %s149, 1
          %s477 = smul.addr %s476, 8
          %s478 = scalar_lea.vmem [#allocation4], %s477
          %479 = dma.done %s475, 128
        $region56: #{forward.5} parent=51 // pred_fallthru
          _
      $region52: #{forward.5} parent=5 // pred_fallthru
        _
    $region6: #{forward.5} parent=1 // loop_footer
      %s17 = sadd.s32 1, %s13
    $region7: #{forward.5} parent=1 // loop_footer_branch
      %12 = sbr.rel target = $region3
    $region8: #{forward.5} parent=1 // loop_exit
      _
    %480 = vsyncpa [#allocation5], 1
    %s481 = scalar_lea.sflag [#allocation5], 1
    %482 = vsyncpa %s481, 1

// kernel: forward.3
$region0: #{forward.3}
  #allocation0 [shape = 'u32[]', space=smem, size = 0x4, offset = 0x4, fixed_abs, tag = 'smem constant byte address 0x4 - core index']
  #allocation1 [shape = 'u32[144,128]{1,0:T(1,128)}', space=vmem, size = 0x12000, scoped, tag = 'internal scratch']
  %s0 = inlined_call_operand.vmem [shape: f32[2,8,32], index: 0, kind: input, shape index: {}]
  %s1 = inlined_call_operand.vmem [shape: f32[1,32], index: 1, kind: input, shape index: {}]
  %s2 = inlined_call_operand.vmem [shape: bf16[32,32], index: 2, kind: input, shape index: {}]
  %s3 = inlined_call_operand.vmem [shape: bf16[32,32], index: 3, kind: input, shape index: {}]
  %s4 = inlined_call_operand.vmem [shape: bf16[32,32], index: 4, kind: input, shape index: {}]
  %s5 = inlined_call_operand.vmem [shape: bf16[2,8,32], index: 5, kind: output, shape index: {0}]
  %s6 = inlined_call_operand.vmem [shape: bf16[2,8,32], index: 6, kind: output, shape index: {1}]
  %s7 = inlined_call_operand.vmem [shape: bf16[2,8,32], index: 7, kind: output, shape index: {2}]
  %8 = xla_tuple %s5, %s6, %s7
  %s9 = sld [smem:[#allocation0]]
  $region69: #{forward.3} parent=0
    _
  %s11 = ssub.s32 1, %s9
  %s12 = scalar_select 0, %s11, %s9
  loop: start=0, step=1, limit=4
  $region2: #{forward.3} parent=0 // loop_pre_header
    _
  $region3: #{forward.3} parent=0 // loop_header
    %s14 = sphi 0, %s18
    %p15 = scmp.ge.s32.totalorder %s14, 4
    %s21 = sphi 0, %s33
    %s22 = sphi 0, %s29
    %s23 = sphi 0, %s21
    %s24 = sphi 0, %s22
    %s25 = sphi 0, %s23
    %s26 = sphi 0, %s24
    %s38 = sphi 0, %s40
    %s41 = sphi 0, %s38
    %s42 = sphi 0, %s41
    %s58 = sphi 0, %s42
    %s62 = sphi 0, %s62
    %s64 = sphi 0, %s62
    %s65 = sphi 0, %s64
    %s79 = sphi 0, %s65
    %s83 = sphi 0, %s83
    %s85 = sphi 0, %s83
    %s86 = sphi 0, %s85
    %s100 = sphi 0, %s86
    %s104 = sphi 0, %s104
    %s106 = sphi 0, %s104
    %s107 = sphi 0, %s106
    %s121 = sphi 0, %s107
    %s125 = sphi 0, %s125
    %s127 = sphi 0, %s125
    %s128 = sphi 0, %s127
    %s142 = sphi 0, %s128
    %s150 = sphi 0, %s152
    %s153 = sphi 0, %s150
    %s154 = sphi 0, %s153
    %s170 = sphi 0, %s154
    %s178 = sphi 0, %s180
    %s181 = sphi 0, %s178
    %s182 = sphi 0, %s181
    %s198 = sphi 0, %s182
    %s206 = sphi 0, %s208
    %s209 = sphi 0, %s206
    %s210 = sphi 0, %s209
    %s226 = sphi 0, %s210
  $region4: #{forward.3} parent=0 // loop_header_branch
    %17 = sbr.rel (%p15) target = $region8
  $region5: #{forward.3} parent=0 // loop_body
    %s19 = ssub.s32 %s14, 1
    %s20 = ssub.s32 %s14, 2
    %s27 = sadd.s32 1, %s22
    %p28 = scmp.ge.s32.totalorder %s27, 1
    %s29 = scalar_select %p28, 0, %s27
    %s30 = sadd.s32 1, %s21
    %s31 = scalar_select %p28, %s30, %s21
    %p32 = scmp.ge.s32.totalorder %s31, 2
    %s33 = scalar_select %p32, 0, %s31
    %s34 = ssub.s32 %s21, %s33
    %s35 = ssub.s32 %s22, %s29
    %s36 = sor.u32 %s34, %s35
    %p37 = scmp.eq.s32.totalorder %s36, 0
    %s39 = sadd.s32 %s38, 1
    %s40 = scalar_select %p37, %s38, %s39
    %p43 = pneg %p37
    %p44 = scmp.eq.s32.totalorder %s14, 1
    %p45 = por %p43, %p44
    %p46 = scmp.ne.s32.totalorder %s38, %s41
    %p47 = scmp.eq.s32.totalorder %s14, 0
    %p48 = por %p46, %p47
    %p49 = scmp.ne.s32.totalorder %s38, %s41
    %p50 = scmp.eq.s32.totalorder %s19, 1
    %p51 = por %p49, %p50
    %p52 = scmp.ne.s32.totalorder %s41, %s42
    %p53 = scmp.eq.s32.totalorder %s19, 0
    %p54 = por %p52, %p53
    %p55 = scmp.ne.s32.totalorder %s41, %s42
    %p56 = scmp.eq.s32.totalorder %s20, 1
    %p57 = por %p55, %p56
    %p59 = scmp.ne.s32.totalorder %s42, %s58
    %p60 = scmp.eq.s32.totalorder %s20, 0
    %p61 = por %p59, %p60
    %s63 = sadd.s32 %s62, 1
    %p66 = scmp.eq.s32.totalorder %s14, 1
    %p67 = scmp.ne.s32.totalorder %s62, %s64
    %p68 = scmp.eq.s32.totalorder %s14, 0
    %p69 = por %p67, %p68
    %p70 = scmp.ne.s32.totalorder %s62, %s64
    %p71 = scmp.eq.s32.totalorder %s19, 1
    %p72 = por %p70, %p71
    %p73 = scmp.ne.s32.totalorder %s64, %s65
    %p74 = scmp.eq.s32.totalorder %s19, 0
    %p75 = por %p73, %p74
    %p76 = scmp.ne.s32.totalorder %s64, %s65
    %p77 = scmp.eq.s32.totalorder %s20, 1
    %p78 = por %p76, %p77
    %p80 = scmp.ne.s32.totalorder %s65, %s79
    %p81 = scmp.eq.s32.totalorder %s20, 0
    %p82 = por %p80, %p81
    %s84 = sadd.s32 %s83, 1
    %p87 = scmp.eq.s32.totalorder %s14, 1
    %p88 = scmp.ne.s32.totalorder %s83, %s85
    %p89 = scmp.eq.s32.totalorder %s14, 0
    %p90 = por %p88, %p89
    %p91 = scmp.ne.s32.totalorder %s83, %s85
    %p92 = scmp.eq.s32.totalorder %s19, 1
    %p93 = por %p91, %p92
    %p94 = scmp.ne.s32.totalorder %s85, %s86
    %p95 = scmp.eq.s32.totalorder %s19, 0
    %p96 = por %p94, %p95
    %p97 = scmp.ne.s32.totalorder %s85, %s86
    %p98 = scmp.eq.s32.totalorder %s20, 1
    %p99 = por %p97, %p98
    %p101 = scmp.ne.s32.totalorder %s86, %s100
    %p102 = scmp.eq.s32.totalorder %s20, 0
    %p103 = por %p101, %p102
    %s105 = sadd.s32 %s104, 1
    %p108 = scmp.eq.s32.totalorder %s14, 1
    %p109 = scmp.ne.s32.totalorder %s104, %s106
    %p110 = scmp.eq.s32.totalorder %s14, 0
    %p111 = por %p109, %p110
    %p112 = scmp.ne.s32.totalorder %s104, %s106
    %p113 = scmp.eq.s32.totalorder %s19, 1
    %p114 = por %p112, %p113
    %p115 = scmp.ne.s32.totalorder %s106, %s107
    %p116 = scmp.eq.s32.totalorder %s19, 0
    %p117 = por %p115, %p116
    %p118 = scmp.ne.s32.totalorder %s106, %s107
    %p119 = scmp.eq.s32.totalorder %s20, 1
    %p120 = por %p118, %p119
    %p122 = scmp.ne.s32.totalorder %s107, %s121
    %p123 = scmp.eq.s32.totalorder %s20, 0
    %p124 = por %p122, %p123
    %s126 = sadd.s32 %s125, 1
    %p129 = scmp.eq.s32.totalorder %s14, 1
    %p130 = scmp.ne.s32.totalorder %s125, %s127
    %p131 = scmp.eq.s32.totalorder %s14, 0
    %p132 = por %p130, %p131
    %p133 = scmp.ne.s32.totalorder %s125, %s127
    %p134 = scmp.eq.s32.totalorder %s19, 1
    %p135 = por %p133, %p134
    %p136 = scmp.ne.s32.totalorder %s127, %s128
    %p137 = scmp.eq.s32.totalorder %s19, 0
    %p138 = por %p136, %p137
    %p139 = scmp.ne.s32.totalorder %s127, %s128
    %p140 = scmp.eq.s32.totalorder %s20, 1
    %p141 = por %p139, %p140
    %p143 = scmp.ne.s32.totalorder %s128, %s142
    %p144 = scmp.eq.s32.totalorder %s20, 0
    %p145 = por %p143, %p144
    %s146 = ssub.s32 %s21, %s33
    %s147 = ssub.s32 %s22, %s29
    %s148 = sor.u32 %s146, %s147
    %p149 = scmp.eq.s32.totalorder %s148, 0
    %s151 = sadd.s32 %s150, 1
    %s152 = scalar_select %p149, %s150, %s151
    %p155 = pneg %p149
    %p156 = scmp.eq.s32.totalorder %s14, 1
    %p157 = por %p155, %p156
    %p158 = scmp.ne.s32.totalorder %s150, %s153
    %p159 = scmp.eq.s32.totalorder %s14, 0
    %p160 = por %p158, %p159
    %p161 = scmp.ne.s32.totalorder %s150, %s153
    %p162 = scmp.eq.s32.totalorder %s19, 1
    %p163 = por %p161, %p162
    %p164 = scmp.ne.s32.totalorder %s153, %s154
    %p165 = scmp.eq.s32.totalorder %s19, 0
    %p166 = por %p164, %p165
    %p167 = scmp.ne.s32.totalorder %s153, %s154
    %p168 = scmp.eq.s32.totalorder %s20, 1
    %p169 = por %p167, %p168
    %p171 = scmp.ne.s32.totalorder %s154, %s170
    %p172 = scmp.eq.s32.totalorder %s20, 0
    %p173 = por %p171, %p172
    %s174 = ssub.s32 %s21, %s33
    %s175 = ssub.s32 %s22, %s29
    %s176 = sor.u32 %s174, %s175
    %p177 = scmp.eq.s32.totalorder %s176, 0
    %s179 = sadd.s32 %s178, 1
    %s180 = scalar_select %p177, %s178, %s179
    %p183 = pneg %p177
    %p184 = scmp.eq.s32.totalorder %s14, 1
    %p185 = por %p183, %p184
    %p186 = scmp.ne.s32.totalorder %s178, %s181
    %p187 = scmp.eq.s32.totalorder %s14, 0
    %p188 = por %p186, %p187
    %p189 = scmp.ne.s32.totalorder %s178, %s181
    %p190 = scmp.eq.s32.totalorder %s19, 1
    %p191 = por %p189, %p190
    %p192 = scmp.ne.s32.totalorder %s181, %s182
    %p193 = scmp.eq.s32.totalorder %s19, 0
    %p194 = por %p192, %p193
    %p195 = scmp.ne.s32.totalorder %s181, %s182
    %p196 = scmp.eq.s32.totalorder %s20, 1
    %p197 = por %p195, %p196
    %p199 = scmp.ne.s32.totalorder %s182, %s198
    %p200 = scmp.eq.s32.totalorder %s20, 0
    %p201 = por %p199, %p200
    %s202 = ssub.s32 %s21, %s33
    %s203 = ssub.s32 %s22, %s29
    %s204 = sor.u32 %s202, %s203
    %p205 = scmp.eq.s32.totalorder %s204, 0
    %s207 = sadd.s32 %s206, 1
    %s208 = scalar_select %p205, %s206, %s207
    %p211 = pneg %p205
    %p212 = scmp.eq.s32.totalorder %s14, 1
    %p213 = por %p211, %p212
    %p214 = scmp.ne.s32.totalorder %s206, %s209
    %p215 = scmp.eq.s32.totalorder %s14, 0
    %p216 = por %p214, %p215
    %p217 = scmp.ne.s32.totalorder %s206, %s209
    %p218 = scmp.eq.s32.totalorder %s19, 1
    %p219 = por %p217, %p218
    %p220 = scmp.ne.s32.totalorder %s209, %s210
    %p221 = scmp.eq.s32.totalorder %s19, 0
    %p222 = por %p220, %p221
    %p223 = scmp.ne.s32.totalorder %s209, %s210
    %p224 = scmp.eq.s32.totalorder %s20, 1
    %p225 = por %p223, %p224
    %p227 = scmp.ne.s32.totalorder %s210, %s226
    %p228 = scmp.eq.s32.totalorder %s20, 0
    %p229 = por %p227, %p228
    %p230 = scmp.le.s32.totalorder 1, %s14
    %p231 = scmp.lt.s32.totalorder %s14, 3
    %p232 = pnand %p230, %p231
    %p233 = pneg %p232
    // Predicated region
    $region9: #{forward.3} parent=5 // pred_check
      _
    $region10: #{forward.3} parent=5 // pred_check_branch
      %235 = sbr.rel (%p232) target = $region12
    $region11: #{forward.3} parent=5 // pred_region
      %s236 = ssub.s32 %s14, 1
      // Predicated region
      $region13: #{forward.3} parent=11 // pred_check
        %p237 = pneg %p75
      $region14: #{forward.3} parent=11 // pred_check_branch
        %239 = sbr.rel (%p237) target = $region16
      $region15: #{forward.3} parent=11 // pred_region
        _
      $region16: #{forward.3} parent=11 // pred_fallthru
        _
      // Predicated region
      $region17: #{forward.3} parent=11 // pred_check
        %p240 = pneg %p96
      $region18: #{forward.3} parent=11 // pred_check_branch
        %242 = sbr.rel (%p240) target = $region20
      $region19: #{forward.3} parent=11 // pred_region
        _
      $region20: #{forward.3} parent=11 // pred_fallthru
        _
      // Predicated region
      $region21: #{forward.3} parent=11 // pred_check
        %p243 = pneg %p117
      $region22: #{forward.3} parent=11 // pred_check_branch
        %245 = sbr.rel (%p243) target = $region24
      $region23: #{forward.3} parent=11 // pred_region
        _
      $region24: #{forward.3} parent=11 // pred_fallthru
        _
      // Predicated region
      $region25: #{forward.3} parent=11 // pred_check
        %p246 = pneg %p138
      $region26: #{forward.3} parent=11 // pred_check_branch
        %248 = sbr.rel (%p246) target = $region28
      $region27: #{forward.3} parent=11 // pred_region
        _
      $region28: #{forward.3} parent=11 // pred_fallthru
        _
    $region12: #{forward.3} parent=5 // pred_fallthru
      _
    %p249 = scmp.lt.s32.totalorder %s14, 2
    // Predicated region
    $region29: #{forward.3} parent=5 // pred_check
      %p250 = pneg %p249
    $region30: #{forward.3} parent=5 // pred_check_branch
      %252 = sbr.rel (%p250) target = $region32
    $region31: #{forward.3} parent=5 // pred_region
      // Predicated region
      $region33: #{forward.3} parent=31 // pred_check
        %p253 = pneg %p48
      $region34: #{forward.3} parent=31 // pred_check_branch
        %255 = sbr.rel (%p253) target = $region36
      $region35: #{forward.3} parent=31 // pred_region
        %p256 = scmp.lt.s32.totalorder %s21, 1
        %s257 = scalar_select %p256, %s21, 1
        %p258 = scmp.lt.s32.totalorder %s22, 0
        %s259 = scalar_select %p258, %s22, 0
        %s260 = sadd.s32 %s259, %s257
        %s261 = smul.addr %s260, 8
        %s262 = scalar_lea.vmem %s0, %s261
      $region36: #{forward.3} parent=31 // pred_fallthru
        _
    $region32: #{forward.3} parent=5 // pred_fallthru
      _
    %p263 = scmp.le.s32.totalorder 1, %s14
    %p264 = scmp.lt.s32.totalorder %s14, 3
    %p265 = pnand %p263, %p264
    %p266 = pneg %p265
    // Predicated region
    $region37: #{forward.3} parent=5 // pred_check
      _
    $region38: #{forward.3} parent=5 // pred_check_branch
      %268 = sbr.rel (%p265) target = $region40
    $region39: #{forward.3} parent=5 // pred_region
      %s269 = ssub.s32 %s14, 1
      %p270 = scmp.lt.s32.totalorder %s23, 1
      %s271 = scalar_select %p270, %s23, 1
      %p272 = scmp.lt.s32.totalorder %s24, 0
      %s273 = scalar_select %p272, %s24, 0
      %s274 = sadd.s32 %s273, %s271
      %s275 = smul.addr %s274, 8
      %s276 = scalar_lea.vmem %s0, %s275
      %p277 = pneg %p54
      %p278 = pneg %p51
      %p279 = pneg %p75
      %p280 = pneg %p72
      %p281 = pneg %p96
      %p282 = pneg %p93
      %p283 = pneg %p117
      %p284 = pneg %p114
      %p285 = pneg %p138
      %p286 = pneg %p135
      %p287 = pneg %p166
      %p288 = pneg %p163
      %p289 = scmp.lt.s32.totalorder %s23, 1
      %s290 = scalar_select %p289, %s23, 1
      %p291 = scmp.lt.s32.totalorder %s24, 0
      %s292 = scalar_select %p291, %s24, 0
      %s293 = sadd.s32 %s292, %s290
      %s294 = smul.addr %s293, 4
      %s295 = scalar_lea.vmem %s5, %s294
      %p296 = pneg %p194
      %p297 = pneg %p191
      %p298 = scmp.lt.s32.totalorder %s23, 1
      %s299 = scalar_select %p298, %s23, 1
      %p300 = scmp.lt.s32.totalorder %s24, 0
      %s301 = scalar_select %p300, %s24, 0
      %s302 = sadd.s32 %s301, %s299
      %s303 = smul.addr %s302, 4
      %s304 = scalar_lea.vmem %s6, %s303
      %p305 = pneg %p222
      %p306 = pneg %p219
      %p307 = scmp.lt.s32.totalorder %s23, 1
      %s308 = scalar_select %p307, %s23, 1
      %p309 = scmp.lt.s32.totalorder %s24, 0
      %s310 = scalar_select %p309, %s24, 0
      %s311 = sadd.s32 %s310, %s308
      %s312 = smul.addr %s311, 4
      %s313 = scalar_lea.vmem %s7, %s312
      %p314 = scmp.lt.s32.totalorder %s23, 1
      %s315 = scalar_select %p314, %s23, 1
      %p316 = scmp.lt.s32.totalorder %s24, 0
      %s317 = scalar_select %p316, %s24, 0
      %s318 = sadd.s32 %s317, %s315
      %s319 = smul.addr %s318, 8
      %s320 = scalar_lea.vmem %s0, %s319
      %p321 = scmp.lt.s32.totalorder %s23, 1
      %s322 = scalar_select %p321, %s23, 1
      %p323 = scmp.lt.s32.totalorder %s24, 0
      %s324 = scalar_select %p323, %s24, 0
      %s325 = sadd.s32 %s324, %s322
      %s326 = smul.addr %s325, 4
      %s327 = scalar_lea.vmem %s5, %s326
      %p328 = scmp.lt.s32.totalorder %s23, 1
      %s329 = scalar_select %p328, %s23, 1
      %p330 = scmp.lt.s32.totalorder %s24, 0
      %s331 = scalar_select %p330, %s24, 0
      %s332 = sadd.s32 %s331, %s329
      %s333 = smul.addr %s332, 4
      %s334 = scalar_lea.vmem %s6, %s333
      %p335 = scmp.lt.s32.totalorder %s23, 1
      %s336 = scalar_select %p335, %s23, 1
      %p337 = scmp.lt.s32.totalorder %s24, 0
      %s338 = scalar_select %p337, %s24, 0
      %s339 = sadd.s32 %s338, %s336
      %s340 = smul.addr %s339, 4
      %s341 = scalar_lea.vmem %s7, %s340
      %v343 = vld [vmem:[%s320] sm:$0xff]
      %v344 = vmul.f32 %v343, %v343
      %vm345 = vcmask 261120
      %v346 = vsel %vm345, %v344, 0.0
      %347 = vadd.xlane.f32.xlu0 %v346
      %v348 = vpop.xlane.xlu0 %347
      %v349 = vrcp.pop 32.0
      %v350 = vmul.f32 %v348, %v349
      %v351 = vadd.f32 %v350, 1e-06
      %v352 = vrsqrt.pop %v351
      %v353 = vmul.f32 %v343, %v352
      %v354 = vld [vmem:[%s1] sm:$0x1]
      %v356 = vlaneseq
      %v357 = vshrl.u32 %v356, 7
      %v358 = vsub.s32 0, %v357
      %v359 = vrot.slane %v354, %v358
      %v361 = vmul.f32 %v353, %v359
      %v362 = vpack.c.bf16 %v361, %v361
      %v363 = vld [vmem:[%s2] sm:$0xf]
      %v364 = vld [vmem:[%s2 + $0x4] sm:$0xf]
      %v365 = vld [vmem:[%s2 + $0x8] sm:$0xf]
      %v366 = vld [vmem:[%s2 + $0xc] sm:$0xf]
      %v371 = vunpack.c.l.b16 %v363
      %v372 = vunpack.c.l.b16 %v364
      %v373 = vunpack.c.l.b16 %v365
      %v374 = vunpack.c.l.b16 %v366
      %v375 = vpack.c.b16 %v372, %v371
      %v376 = vpack.c.b16 %v374, %v373
      %v380 = vsel %vm345, %v362, 0
      %382 = vmatprep.subr.bf16.mxu0 0
      %383 = vmatpush1.bf16.msra.mxu0 %v375
      %384 = vmatprep.subr.bf16.mxu0 0
      %385 = vmatpush1.bf16.msra.mxu0 %v376
      %386 = vmatprep.subr.bf16.mxu0 0
      %387 = vmatpush1.bf16.msra.mxu0 0
      %388 = vmatprep.subr.bf16.mxu0 0
      %389 = vmatpush1.bf16.msra.mxu0 0
      %390 = vmatprep.subr.bf16.mxu0 0
      %391 = vmatpush1.bf16.msra.mxu0 0
      %392 = vmatprep.subr.bf16.mxu0 0
      %393 = vmatpush1.bf16.msra.mxu0 0
      %394 = vmatprep.subr.bf16.mxu0 0
      %395 = vmatpush1.bf16.msra.mxu0 0
      %396 = vmatprep.subr.bf16.mxu0 0
      %397 = vmatpush1.bf16.msra.mxu0 0
      %398 = vmatprep.subr.bf16.mxu0 0
      %399 = vmatpush1.bf16.msra.mxu0 0
      %400 = vmatprep.subr.bf16.mxu0 0
      %401 = vmatpush1.bf16.msra.mxu0 0
      %402 = vmatprep.subr.bf16.mxu0 0
      %403 = vmatpush1.bf16.msra.mxu0 0
      %404 = vmatprep.subr.bf16.mxu0 0
      %405 = vmatpush1.bf16.msra.mxu0 0
      %406 = vmatprep.subr.bf16.mxu0 0
      %407 = vmatpush1.bf16.msra.mxu0 0
      %408 = vmatprep.subr.bf16.mxu0 0
      %409 = vmatpush1.bf16.msra.mxu0 0
      %410 = vmatprep.subr.bf16.mxu0 0
      %411 = vmatpush1.bf16.msra.mxu0 0
      %412 = vmatprep.subr.bf16.mxu0 0
      %413 = vmatpush1.bf16.msra.mxu0 0
      %414 = vmatprep.mubr.bf16.mxu0 0
      %415 = vmatmul.mubr.bf16.gmra.mrb[0].mxu0 %v380
      %v416 = vpop.f32.mrb[0].mxu0
      %v417 = vadd.f32 0.0, %v416
      %v418 = vpop.f32.mrb[0].mxu0
      %v419 = vpop.f32.mrb[0].mxu0
      %v420 = vpop.f32.mrb[0].mxu0
      %421 = vdwg.mxu0
      %v422 = vmul.f32 %v417, 0.17677669
      %v423 = vpack.c.bf16 %v422, %v422
      %vm424 = vcmask 257024
      %425 = vst.msk [vmem:[%s327] sm:$0xf] %vm424, %v423
      %v426 = vld [vmem:[%s3] sm:$0xf]
      %v427 = vld [vmem:[%s3 + $0x4] sm:$0xf]
      %v428 = vld [vmem:[%s3 + $0x8] sm:$0xf]
      %v429 = vld [vmem:[%s3 + $0xc] sm:$0xf]
      %v434 = vunpack.c.l.b16 %v426
      %v435 = vunpack.c.l.b16 %v427
      %v436 = vunpack.c.l.b16 %v428
      %v437 = vunpack.c.l.b16 %v429
      %v438 = vpack.c.b16 %v435, %v434
      %v439 = vpack.c.b16 %v437, %v436
      %442 = vmatprep.subr.bf16.mxu0 0
      %443 = vmatpush1.bf16.msra.mxu0 %v438
      %444 = vmatprep.subr.bf16.mxu0 0
      %445 = vmatpush1.bf16.msra.mxu0 %v439
      %446 = vmatprep.subr.bf16.mxu0 0
      %447 = vmatpush1.bf16.msra.mxu0 0
      %448 = vmatprep.subr.bf16.mxu0 0
      %449 = vmatpush1.bf16.msra.mxu0 0
      %450 = vmatprep.subr.bf16.mxu0 0
      %451 = vmatpush1.bf16.msra.mxu0 0
      %452 = vmatprep.subr.bf16.mxu0 0
      %453 = vmatpush1.bf16.msra.mxu0 0
      %454 = vmatprep.subr.bf16.mxu0 0
      %455 = vmatpush1.bf16.msra.mxu0 0
      %456 = vmatprep.subr.bf16.mxu0 0
      %457 = vmatpush1.bf16.msra.mxu0 0
      %458 = vmatprep.subr.bf16.mxu0 0
      %459 = vmatpush1.bf16.msra.mxu0 0
      %460 = vmatprep.subr.bf16.mxu0 0
      %461 = vmatpush1.bf16.msra.mxu0 0
      %462 = vmatprep.subr.bf16.mxu0 0
      %463 = vmatpush1.bf16.msra.mxu0 0
      %464 = vmatprep.subr.bf16.mxu0 0
      %465 = vmatpush1.bf16.msra.mxu0 0
      %466 = vmatprep.subr.bf16.mxu0 0
      %467 = vmatpush1.bf16.msra.mxu0 0
      %468 = vmatprep.subr.bf16.mxu0 0
      %469 = vmatpush1.bf16.msra.mxu0 0
      %470 = vmatprep.subr.bf16.mxu0 0
      %471 = vmatpush1.bf16.msra.mxu0 0
      %472 = vmatprep.subr.bf16.mxu0 0
      %473 = vmatpush1.bf16.msra.mxu0 0
      %474 = vmatprep.mubr.bf16.mxu0 0
      %475 = vmatmul.mubr.bf16.gmra.mrb[0].mxu0 %v380
      %v476 = vpop.f32.mrb[0].mxu0
      %v477 = vadd.f32 0.0, %v476
      %v478 = vpop.f32.mrb[0].mxu0
      %v479 = vpop.f32.mrb[0].mxu0
      %v480 = vpop.f32.mrb[0].mxu0
      %481 = vdwg.mxu0
      %v482 = vpack.c.bf16 %v477, %v477
      %483 = vst.msk [vmem:[%s334] sm:$0xf] %vm424, %v482
      %v484 = vld [vmem:[%s4] sm:$0xf]
      %v485 = vld [vmem:[%s4 + $0x4] sm:$0xf]
      %v486 = vld [vmem:[%s4 + $0x8] sm:$0xf]
      %v487 = vld [vmem:[%s4 + $0xc] sm:$0xf]
      %v492 = vunpack.c.l.b16 %v484
      %v493 = vunpack.c.l.b16 %v485
      %v494 = vunpack.c.l.b16 %v486
      %v495 = vunpack.c.l.b16 %v487
      %v496 = vpack.c.b16 %v493, %v492
      %v497 = vpack.c.b16 %v495, %v494
      %500 = vmatprep.subr.bf16.mxu0 0
      %501 = vmatpush1.bf16.msra.mxu0 %v496
      %502 = vmatprep.subr.bf16.mxu0 0
      %503 = vmatpush1.bf16.msra.mxu0 %v497
      %504 = vmatprep.subr.bf16.mxu0 0
      %505 = vmatpush1.bf16.msra.mxu0 0
      %506 = vmatprep.subr.bf16.mxu0 0
      %507 = vmatpush1.bf16.msra.mxu0 0
      %508 = vmatprep.subr.bf16.mxu0 0
      %509 = vmatpush1.bf16.msra.mxu0 0
      %510 = vmatprep.subr.bf16.mxu0 0
      %511 = vmatpush1.bf16.msra.mxu0 0
      %512 = vmatprep.subr.bf16.mxu0 0
      %513 = vmatpush1.bf16.msra.mxu0 0
      %514 = vmatprep.subr.bf16.mxu0 0
      %515 = vmatpush1.bf16.msra.mxu0 0
      %516 = vmatprep.subr.bf16.mxu0 0
      %517 = vmatpush1.bf16.msra.mxu0 0
      %518 = vmatprep.subr.bf16.mxu0 0
      %519 = vmatpush1.bf16.msra.mxu0 0
      %520 = vmatprep.subr.bf16.mxu0 0
      %521 = vmatpush1.bf16.msra.mxu0 0
      %522 = vmatprep.subr.bf16.mxu0 0
      %523 = vmatpush1.bf16.msra.mxu0 0
      %524 = vmatprep.subr.bf16.mxu0 0
      %525 = vmatpush1.bf16.msra.mxu0 0
      %526 = vmatprep.subr.bf16.mxu0 0
      %527 = vmatpush1.bf16.msra.mxu0 0
      %528 = vmatprep.subr.bf16.mxu0 0
      %529 = vmatpush1.bf16.msra.mxu0 0
      %530 = vmatprep.subr.bf16.mxu0 0
      %531 = vmatpush1.bf16.msra.mxu0 0
      %532 = vmatprep.mubr.bf16.mxu0 0
      %533 = vmatmul.mubr.bf16.gmra.mrb[0].mxu0 %v380
      %v534 = vpop.f32.mrb[0].mxu0
      %v535 = vadd.f32 0.0, %v534
      %v536 = vpop.f32.mrb[0].mxu0
      %v537 = vpop.f32.mrb[0].mxu0
      %v538 = vpop.f32.mrb[0].mxu0
      %539 = vdwg.mxu0
      %v540 = vpack.c.bf16 %v535, %v535
      %541 = vst.msk [vmem:[%s341] sm:$0xf] %vm424, %v540
      %p542 = scmp.lt.s32.totalorder %s23, 1
      %s543 = scalar_select %p542, %s23, 1
      %p544 = scmp.lt.s32.totalorder %s24, 0
      %s545 = scalar_select %p544, %s24, 0
      %s546 = sadd.s32 %s545, %s543
      %s547 = smul.addr %s546, 4
      %s548 = scalar_lea.vmem %s5, %s547
      %p549 = scmp.lt.s32.totalorder %s23, 1
      %s550 = scalar_select %p549, %s23, 1
      %p551 = scmp.lt.s32.totalorder %s24, 0
      %s552 = scalar_select %p551, %s24, 0
      %s553 = sadd.s32 %s552, %s550
      %s554 = smul.addr %s553, 4
      %s555 = scalar_lea.vmem %s6, %s554
      %p556 = scmp.lt.s32.totalorder %s23, 1
      %s557 = scalar_select %p556, %s23, 1
      %p558 = scmp.lt.s32.totalorder %s24, 0
      %s559 = scalar_select %p558, %s24, 0
      %s560 = sadd.s32 %s559, %s557
      %s561 = smul.addr %s560, 4
      %s562 = scalar_lea.vmem %s7, %s561
      // Predicated region
      $region41: #{forward.3} parent=39 // pred_check
        %p563 = pneg %p163
      $region42: #{forward.3} parent=39 // pred_check_branch
        %565 = sbr.rel (%p563) target = $region44
      $region43: #{forward.3} parent=39 // pred_region
        _
      $region44: #{forward.3} parent=39 // pred_fallthru
        _
      // Predicated region
      $region45: #{forward.3} parent=39 // pred_check
        %p566 = pneg %p191
      $region46: #{forward.3} parent=39 // pred_check_branch
        %568 = sbr.rel (%p566) target = $region48
      $region47: #{forward.3} parent=39 // pred_region
        _
      $region48: #{forward.3} parent=39 // pred_fallthru
        _
      // Predicated region
      $region49: #{forward.3} parent=39 // pred_check
        %p569 = pneg %p219
      $region50: #{forward.3} parent=39 // pred_check_branch
        %571 = sbr.rel (%p569) target = $region52
      $region51: #{forward.3} parent=39 // pred_region
        _
      $region52: #{forward.3} parent=39 // pred_fallthru
        _
    $region40: #{forward.3} parent=5 // pred_fallthru
      _
    %p572 = scmp.le.s32.totalorder 2, %s14
    // Predicated region
    $region53: #{forward.3} parent=5 // pred_check
      %p573 = pneg %p572
    $region54: #{forward.3} parent=5 // pred_check_branch
      %575 = sbr.rel (%p573) target = $region56
    $region55: #{forward.3} parent=5 // pred_region
      %s576 = ssub.s32 %s14, 2
      // Predicated region
      $region57: #{forward.3} parent=55 // pred_check
        %p577 = pneg %p169
      $region58: #{forward.3} parent=55 // pred_check_branch
        %579 = sbr.rel (%p577) target = $region60
      $region59: #{forward.3} parent=55 // pred_region
        %p580 = scmp.lt.s32.totalorder %s25, 1
        %s581 = scalar_select %p580, %s25, 1
        %p582 = scmp.lt.s32.totalorder %s26, 0
        %s583 = scalar_select %p582, %s26, 0
        %s584 = sadd.s32 %s583, %s581
        %s585 = smul.addr %s584, 4
        %s586 = scalar_lea.vmem %s5, %s585
      $region60: #{forward.3} parent=55 // pred_fallthru
        _
      // Predicated region
      $region61: #{forward.3} parent=55 // pred_check
        %p587 = pneg %p197
      $region62: #{forward.3} parent=55 // pred_check_branch
        %589 = sbr.rel (%p587) target = $region64
      $region63: #{forward.3} parent=55 // pred_region
        %p590 = scmp.lt.s32.totalorder %s25, 1
        %s591 = scalar_select %p590, %s25, 1
        %p592 = scmp.lt.s32.totalorder %s26, 0
        %s593 = scalar_select %p592, %s26, 0
        %s594 = sadd.s32 %s593, %s591
        %s595 = smul.addr %s594, 4
        %s596 = scalar_lea.vmem %s6, %s595
      $region64: #{forward.3} parent=55 // pred_fallthru
        _
      // Predicated region
      $region65: #{forward.3} parent=55 // pred_check
        %p597 = pneg %p225
      $region66: #{forward.3} parent=55 // pred_check_branch
        %599 = sbr.rel (%p597) target = $region68
      $region67: #{forward.3} parent=55 // pred_region
        %p600 = scmp.lt.s32.totalorder %s25, 1
        %s601 = scalar_select %p600, %s25, 1
        %p602 = scmp.lt.s32.totalorder %s26, 0
        %s603 = scalar_select %p602, %s26, 0
        %s604 = sadd.s32 %s603, %s601
        %s605 = smul.addr %s604, 4
        %s606 = scalar_lea.vmem %s7, %s605
      $region68: #{forward.3} parent=55 // pred_fallthru
        _
    $region56: #{forward.3} parent=5 // pred_fallthru
      _
  $region6: #{forward.3} parent=0 // loop_footer
    %s18 = sadd.s32 1, %s14
  $region7: #{forward.3} parent=0 // loop_footer_branch
    %13 = sbr.rel target = $region3
  $region8: #{forward.3} parent=0 // loop_exit
    _

// kernel: forward.4
$region0: #{forward.4}
  #allocation0 [shape = 'u32[]', space=smem, size = 0x4, offset = 0x4, fixed_abs, tag = 'smem constant byte address 0x4 - core index']
  #allocation1 [shape = 'u32[144,128]{1,0:T(1,128)}', space=vmem, size = 0x12000, scoped, tag = 'internal scratch']
  #allocation2 [shape = 'f32[8,1]{1,0:T(8,128)}', space=vmem, size = 0x1000, scoped, tag = 'scratch operand']
  #allocation3 [shape = 'f32[8,1]{1,0:T(8,128)}', space=vmem, size = 0x1000, scoped, tag = 'scratch operand']
  #allocation4 [shape = 'f32[8,32]{1,0:T(8,128)}', space=vmem, size = 0x1000, scoped, tag = 'scratch operand']
  %s0 = inlined_call_operand.vmem [shape: bf16[2,8,32], index: 0, kind: input, shape index: {}]
  %s1 = inlined_call_operand.vmem [shape: bf16[2,8,32], index: 1, kind: input, shape index: {}]
  %s2 = inlined_call_operand.vmem [shape: bf16[2,8,32], index: 2, kind: input, shape index: {}]
  %s3 = inlined_call_operand.vmem [shape: f32[2,8,32], index: 3, kind: input, shape index: {}]
  %s4 = inlined_call_operand.vmem [shape: bf16[32,32], index: 4, kind: input, shape index: {}]
  %s5 = inlined_call_operand.vmem [shape: f32[2,8,32], index: 5, kind: output, shape index: {}]
  %s6 = sld [smem:[#allocation0]]
  $region69: #{forward.4} parent=0
    _
  %s8 = ssub.s32 1, %s6
  %s9 = scalar_select 0, %s8, %s6
  loop: start=0, step=1, limit=4
  $region2: #{forward.4} parent=0 // loop_pre_header
    _
  $region3: #{forward.4} parent=0 // loop_header
    %s11 = sphi 0, %s15
    %p12 = scmp.ge.s32.totalorder %s11, 4
    %s18 = sphi 0, %s37
    %s19 = sphi 0, %s33
    %s20 = sphi 0, %s29
    %s21 = sphi 0, %s18
    %s22 = sphi 0, %s19
    %s23 = sphi 0, %s20
    %s24 = sphi 0, %s21
    %s25 = sphi 0, %s22
    %s26 = sphi 0, %s23
    %s42 = sphi 0, %s44
    %s45 = sphi 0, %s42
    %s46 = sphi 0, %s45
    %s62 = sphi 0, %s46
    %s70 = sphi 0, %s72
    %s73 = sphi 0, %s70
    %s74 = sphi 0, %s73
    %s90 = sphi 0, %s74
    %s98 = sphi 0, %s100
    %s101 = sphi 0, %s98
    %s102 = sphi 0, %s101
    %s118 = sphi 0, %s102
    %s126 = sphi 0, %s128
    %s129 = sphi 0, %s126
    %s130 = sphi 0, %s129
    %s146 = sphi 0, %s130
    %s150 = sphi 0, %s150
    %s152 = sphi 0, %s150
    %s153 = sphi 0, %s152
    %s167 = sphi 0, %s153
    %s175 = sphi 0, %s177
    %s178 = sphi 0, %s175
    %s179 = sphi 0, %s178
    %s195 = sphi 0, %s179
  $region4: #{forward.4} parent=0 // loop_header_branch
    %14 = sbr.rel (%p12) target = $region8
  $region5: #{forward.4} parent=0 // loop_body
    %s16 = ssub.s32 %s11, 1
    %s17 = ssub.s32 %s11, 2
    %s27 = sadd.s32 1, %s20
    %p28 = scmp.ge.s32.totalorder %s27, 1
    %s29 = scalar_select %p28, 0, %s27
    %s30 = sadd.s32 1, %s19
    %s31 = scalar_select %p28, %s30, %s19
    %p32 = scmp.ge.s32.totalorder %s31, 1
    %s33 = scalar_select %p32, 0, %s31
    %s34 = sadd.s32 1, %s18
    %s35 = scalar_select %p32, %s34, %s18
    %p36 = scmp.ge.s32.totalorder %s35, 2
    %s37 = scalar_select %p36, 0, %s35
    %s38 = ssub.s32 %s18, %s37
    %s39 = ssub.s32 %s19, %s33
    %s40 = sor.u32 %s38, %s39
    %p41 = scmp.eq.s32.totalorder %s40, 0
    %s43 = sadd.s32 %s42, 1
    %s44 = scalar_select %p41, %s42, %s43
    %p47 = pneg %p41
    %p48 = scmp.eq.s32.totalorder %s11, 1
    %p49 = por %p47, %p48
    %p50 = scmp.ne.s32.totalorder %s42, %s45
    %p51 = scmp.eq.s32.totalorder %s11, 0
    %p52 = por %p50, %p51
    %p53 = scmp.ne.s32.totalorder %s42, %s45
    %p54 = scmp.eq.s32.totalorder %s16, 1
    %p55 = por %p53, %p54
    %p56 = scmp.ne.s32.totalorder %s45, %s46
    %p57 = scmp.eq.s32.totalorder %s16, 0
    %p58 = por %p56, %p57
    %p59 = scmp.ne.s32.totalorder %s45, %s46
    %p60 = scmp.eq.s32.totalorder %s17, 1
    %p61 = por %p59, %p60
    %p63 = scmp.ne.s32.totalorder %s46, %s62
    %p64 = scmp.eq.s32.totalorder %s17, 0
    %p65 = por %p63, %p64
    %s66 = ssub.s32 %s18, %s37
    %s67 = ssub.s32 %s20, %s29
    %s68 = sor.u32 %s66, %s67
    %p69 = scmp.eq.s32.totalorder %s68, 0
    %s71 = sadd.s32 %s70, 1
    %s72 = scalar_select %p69, %s70, %s71
    %p75 = pneg %p69
    %p76 = scmp.eq.s32.totalorder %s11, 1
    %p77 = por %p75, %p76
    %p78 = scmp.ne.s32.totalorder %s70, %s73
    %p79 = scmp.eq.s32.totalorder %s11, 0
    %p80 = por %p78, %p79
    %p81 = scmp.ne.s32.totalorder %s70, %s73
    %p82 = scmp.eq.s32.totalorder %s16, 1
    %p83 = por %p81, %p82
    %p84 = scmp.ne.s32.totalorder %s73, %s74
    %p85 = scmp.eq.s32.totalorder %s16, 0
    %p86 = por %p84, %p85
    %p87 = scmp.ne.s32.totalorder %s73, %s74
    %p88 = scmp.eq.s32.totalorder %s17, 1
    %p89 = por %p87, %p88
    %p91 = scmp.ne.s32.totalorder %s74, %s90
    %p92 = scmp.eq.s32.totalorder %s17, 0
    %p93 = por %p91, %p92
    %s94 = ssub.s32 %s18, %s37
    %s95 = ssub.s32 %s20, %s29
    %s96 = sor.u32 %s94, %s95
    %p97 = scmp.eq.s32.totalorder %s96, 0
    %s99 = sadd.s32 %s98, 1
    %s100 = scalar_select %p97, %s98, %s99
    %p103 = pneg %p97
    %p104 = scmp.eq.s32.totalorder %s11, 1
    %p105 = por %p103, %p104
    %p106 = scmp.ne.s32.totalorder %s98, %s101
    %p107 = scmp.eq.s32.totalorder %s11, 0
    %p108 = por %p106, %p107
    %p109 = scmp.ne.s32.totalorder %s98, %s101
    %p110 = scmp.eq.s32.totalorder %s16, 1
    %p111 = por %p109, %p110
    %p112 = scmp.ne.s32.totalorder %s101, %s102
    %p113 = scmp.eq.s32.totalorder %s16, 0
    %p114 = por %p112, %p113
    %p115 = scmp.ne.s32.totalorder %s101, %s102
    %p116 = scmp.eq.s32.totalorder %s17, 1
    %p117 = por %p115, %p116
    %p119 = scmp.ne.s32.totalorder %s102, %s118
    %p120 = scmp.eq.s32.totalorder %s17, 0
    %p121 = por %p119, %p120
    %s122 = ssub.s32 %s18, %s37
    %s123 = ssub.s32 %s19, %s33
    %s124 = sor.u32 %s122, %s123
    %p125 = scmp.eq.s32.totalorder %s124, 0
    %s127 = sadd.s32 %s126, 1
    %s128 = scalar_select %p125, %s126, %s127
    %p131 = pneg %p125
    %p132 = scmp.eq.s32.totalorder %s11, 1
    %p133 = por %p131, %p132
    %p134 = scmp.ne.s32.totalorder %s126, %s129
    %p135 = scmp.eq.s32.totalorder %s11, 0
    %p136 = por %p134, %p135
    %p137 = scmp.ne.s32.totalorder %s126, %s129
    %p138 = scmp.eq.s32.totalorder %s16, 1
    %p139 = por %p137, %p138
    %p140 = scmp.ne.s32.totalorder %s129, %s130
    %p141 = scmp.eq.s32.totalorder %s16, 0
    %p142 = por %p140, %p141
    %p143 = scmp.ne.s32.totalorder %s129, %s130
    %p144 = scmp.eq.s32.totalorder %s17, 1
    %p145 = por %p143, %p144
    %p147 = scmp.ne.s32.totalorder %s130, %s146
    %p148 = scmp.eq.s32.totalorder %s17, 0
    %p149 = por %p147, %p148
    %s151 = sadd.s32 %s150, 1
    %p154 = scmp.eq.s32.totalorder %s11, 1
    %p155 = scmp.ne.s32.totalorder %s150, %s152
    %p156 = scmp.eq.s32.totalorder %s11, 0
    %p157 = por %p155, %p156
    %p158 = scmp.ne.s32.totalorder %s150, %s152
    %p159 = scmp.eq.s32.totalorder %s16, 1
    %p160 = por %p158, %p159
    %p161 = scmp.ne.s32.totalorder %s152, %s153
    %p162 = scmp.eq.s32.totalorder %s16, 0
    %p163 = por %p161, %p162
    %p164 = scmp.ne.s32.totalorder %s152, %s153
    %p165 = scmp.eq.s32.totalorder %s17, 1
    %p166 = por %p164, %p165
    %p168 = scmp.ne.s32.totalorder %s153, %s167
    %p169 = scmp.eq.s32.totalorder %s17, 0
    %p170 = por %p168, %p169
    %s171 = ssub.s32 %s18, %s37
    %s172 = ssub.s32 %s19, %s33
    %s173 = sor.u32 %s171, %s172
    %p174 = scmp.eq.s32.totalorder %s173, 0
    %s176 = sadd.s32 %s175, 1
    %s177 = scalar_select %p174, %s175, %s176
    %p180 = pneg %p174
    %p181 = scmp.eq.s32.totalorder %s11, 1
    %p182 = por %p180, %p181
    %p183 = scmp.ne.s32.totalorder %s175, %s178
    %p184 = scmp.eq.s32.totalorder %s11, 0
    %p185 = por %p183, %p184
    %p186 = scmp.ne.s32.totalorder %s175, %s178
    %p187 = scmp.eq.s32.totalorder %s16, 1
    %p188 = por %p186, %p187
    %p189 = scmp.ne.s32.totalorder %s178, %s179
    %p190 = scmp.eq.s32.totalorder %s16, 0
    %p191 = por %p189, %p190
    %p192 = scmp.ne.s32.totalorder %s178, %s179
    %p193 = scmp.eq.s32.totalorder %s17, 1
    %p194 = por %p192, %p193
    %p196 = scmp.ne.s32.totalorder %s179, %s195
    %p197 = scmp.eq.s32.totalorder %s17, 0
    %p198 = por %p196, %p197
    %p199 = scmp.le.s32.totalorder 1, %s11
    %p200 = scmp.lt.s32.totalorder %s11, 3
    %p201 = pnand %p199, %p200
    %p202 = pneg %p201
    // Predicated region
    $region9: #{forward.4} parent=5 // pred_check
      _
    $region10: #{forward.4} parent=5 // pred_check_branch
      %204 = sbr.rel (%p201) target = $region12
    $region11: #{forward.4} parent=5 // pred_region
      %s205 = ssub.s32 %s11, 1
      // Predicated region
      $region13: #{forward.4} parent=11 // pred_check
        %p206 = pneg %p163
      $region14: #{forward.4} parent=11 // pred_check_branch
        %208 = sbr.rel (%p206) target = $region16
      $region15: #{forward.4} parent=11 // pred_region
        _
      $region16: #{forward.4} parent=11 // pred_fallthru
        _
    $region12: #{forward.4} parent=5 // pred_fallthru
      _
    %p209 = scmp.lt.s32.totalorder %s11, 2
    // Predicated region
    $region17: #{forward.4} parent=5 // pred_check
      %p210 = pneg %p209
    $region18: #{forward.4} parent=5 // pred_check_branch
      %212 = sbr.rel (%p210) target = $region20
    $region19: #{forward.4} parent=5 // pred_region
      // Predicated region
      $region21: #{forward.4} parent=19 // pred_check
        %p213 = pneg %p52
      $region22: #{forward.4} parent=19 // pred_check_branch
        %215 = sbr.rel (%p213) target = $region24
      $region23: #{forward.4} parent=19 // pred_region
        %p216 = scmp.lt.s32.totalorder %s18, 1
        %s217 = scalar_select %p216, %s18, 1
        %p218 = scmp.lt.s32.totalorder %s19, 0
        %s219 = scalar_select %p218, %s19, 0
        %s220 = sadd.s32 %s219, %s217
        %s221 = smul.addr %s220, 4
        %s222 = scalar_lea.vmem %s0, %s221
      $region24: #{forward.4} parent=19 // pred_fallthru
        _
      // Predicated region
      $region25: #{forward.4} parent=19 // pred_check
        %p223 = pneg %p80
      $region26: #{forward.4} parent=19 // pred_check_branch
        %225 = sbr.rel (%p223) target = $region28
      $region27: #{forward.4} parent=19 // pred_region
        %p226 = scmp.lt.s32.totalorder %s18, 1
        %s227 = scalar_select %p226, %s18, 1
        %p228 = scmp.lt.s32.totalorder %s20, 0
        %s229 = scalar_select %p228, %s20, 0
        %s230 = sadd.s32 %s229, %s227
        %s231 = smul.addr %s230, 4
        %s232 = scalar_lea.vmem %s1, %s231
      $region28: #{forward.4} parent=19 // pred_fallthru
        _
      // Predicated region
      $region29: #{forward.4} parent=19 // pred_check
        %p233 = pneg %p108
      $region30: #{forward.4} parent=19 // pred_check_branch
        %235 = sbr.rel (%p233) target = $region32
      $region31: #{forward.4} parent=19 // pred_region
        %p236 = scmp.lt.s32.totalorder %s18, 1
        %s237 = scalar_select %p236, %s18, 1
        %p238 = scmp.lt.s32.totalorder %s20, 0
        %s239 = scalar_select %p238, %s20, 0
        %s240 = sadd.s32 %s239, %s237
        %s241 = smul.addr %s240, 4
        %s242 = scalar_lea.vmem %s2, %s241
      $region32: #{forward.4} parent=19 // pred_fallthru
        _
      // Predicated region
      $region33: #{forward.4} parent=19 // pred_check
        %p243 = pneg %p136
      $region34: #{forward.4} parent=19 // pred_check_branch
        %245 = sbr.rel (%p243) target = $region36
      $region35: #{forward.4} parent=19 // pred_region
        %p246 = scmp.lt.s32.totalorder %s18, 1
        %s247 = scalar_select %p246, %s18, 1
        %p248 = scmp.lt.s32.totalorder %s19, 0
        %s249 = scalar_select %p248, %s19, 0
        %s250 = sadd.s32 %s249, %s247
        %s251 = smul.addr %s250, 8
        %s252 = scalar_lea.vmem %s3, %s251
      $region36: #{forward.4} parent=19 // pred_fallthru
        _
    $region20: #{forward.4} parent=5 // pred_fallthru
      _
    %p253 = scmp.le.s32.totalorder 1, %s11
    %p254 = scmp.lt.s32.totalorder %s11, 3
    %p255 = pnand %p253, %p254
    %p256 = pneg %p255
    // Predicated region
    $region37: #{forward.4} parent=5 // pred_check
      _
    $region38: #{forward.4} parent=5 // pred_check_branch
      %258 = sbr.rel (%p255) target = $region40
    $region39: #{forward.4} parent=5 // pred_region
      %s259 = ssub.s32 %s11, 1
      %p260 = scmp.lt.s32.totalorder %s21, 1
      %s261 = scalar_select %p260, %s21, 1
      %p262 = scmp.lt.s32.totalorder %s22, 0
      %s263 = scalar_select %p262, %s22, 0
      %s264 = sadd.s32 %s263, %s261
      %s265 = smul.addr %s264, 4
      %s266 = scalar_lea.vmem %s0, %s265
      %p267 = pneg %p58
      %p268 = pneg %p55
      %p269 = scmp.lt.s32.totalorder %s21, 1
      %s270 = scalar_select %p269, %s21, 1
      %p271 = scmp.lt.s32.totalorder %s23, 0
      %s272 = scalar_select %p271, %s23, 0
      %s273 = sadd.s32 %s272, %s270
      %s274 = smul.addr %s273, 4
      %s275 = scalar_lea.vmem %s1, %s274
      %p276 = pneg %p86
      %p277 = pneg %p83
      %p278 = scmp.lt.s32.totalorder %s21, 1
      %s279 = scalar_select %p278, %s21, 1
      %p280 = scmp.lt.s32.totalorder %s23, 0
      %s281 = scalar_select %p280, %s23, 0
      %s282 = sadd.s32 %s281, %s279
      %s283 = smul.addr %s282, 4
      %s284 = scalar_lea.vmem %s2, %s283
      %p285 = pneg %p114
      %p286 = pneg %p111
      %p287 = scmp.lt.s32.totalorder %s21, 1
      %s288 = scalar_select %p287, %s21, 1
      %p289 = scmp.lt.s32.totalorder %s22, 0
      %s290 = scalar_select %p289, %s22, 0
      %s291 = sadd.s32 %s290, %s288
      %s292 = smul.addr %s291, 8
      %s293 = scalar_lea.vmem %s3, %s292
      %p294 = pneg %p142
      %p295 = pneg %p139
      %p296 = pneg %p163
      %p297 = pneg %p160
      %p298 = pneg %p191
      %p299 = pneg %p188
      %p300 = scmp.lt.s32.totalorder %s21, 1
      %s301 = scalar_select %p300, %s21, 1
      %p302 = scmp.lt.s32.totalorder %s22, 0
      %s303 = scalar_select %p302, %s22, 0
      %s304 = sadd.s32 %s303, %s301
      %s305 = smul.addr %s304, 8
      %s306 = scalar_lea.vmem %s5, %s305
      %p307 = scmp.lt.s32.totalorder %s21, 1
      %s308 = scalar_select %p307, %s21, 1
      %p309 = scmp.lt.s32.totalorder %s22, 0
      %s310 = scalar_select %p309, %s22, 0
      %s311 = sadd.s32 %s310, %s308
      %s312 = smul.addr %s311, 4
      %s313 = scalar_lea.vmem %s0, %s312
      %p314 = scmp.lt.s32.totalorder %s21, 1
      %s315 = scalar_select %p314, %s21, 1
      %p316 = scmp.lt.s32.totalorder %s23, 0
      %s317 = scalar_select %p316, %s23, 0
      %s318 = sadd.s32 %s317, %s315
      %s319 = smul.addr %s318, 4
      %s320 = scalar_lea.vmem %s1, %s319
      %p321 = scmp.lt.s32.totalorder %s21, 1
      %s322 = scalar_select %p321, %s21, 1
      %p323 = scmp.lt.s32.totalorder %s23, 0
      %s324 = scalar_select %p323, %s23, 0
      %s325 = sadd.s32 %s324, %s322
      %s326 = smul.addr %s325, 4
      %s327 = scalar_lea.vmem %s2, %s326
      %p328 = scmp.lt.s32.totalorder %s21, 1
      %s329 = scalar_select %p328, %s21, 1
      %p330 = scmp.lt.s32.totalorder %s22, 0
      %s331 = scalar_select %p330, %s22, 0
      %s332 = sadd.s32 %s331, %s329
      %s333 = smul.addr %s332, 8
      %s334 = scalar_lea.vmem %s3, %s333
      %p335 = scmp.lt.s32.totalorder %s21, 1
      %s336 = scalar_select %p335, %s21, 1
      %p337 = scmp.lt.s32.totalorder %s22, 0
      %s338 = scalar_select %p337, %s22, 0
      %s339 = sadd.s32 %s338, %s336
      %s340 = smul.addr %s339, 8
      %s341 = scalar_lea.vmem %s5, %s340
      %s343 = smul.u32 %s22, 8
      %s344 = smul.u32 %s23, 8
      %p345 = scmp.eq.s32.totalorder %s23, 0
      // Predicated region
      $region41: #{forward.4} parent=39 // pred_check
        %p346 = pneg %p345
      $region42: #{forward.4} parent=39 // pred_check_branch
        %348 = sbr.rel (%p346) target = $region44
      $region43: #{forward.4} parent=39 // pred_region
        %vm349 = vcmask 7168
        %350 = vst.msk [vmem:[#allocation2] sm:$0xff] %vm349, -1e+30
        %351 = vst.msk [vmem:[#allocation3] sm:$0xff] %vm349, 0.0
        %vm352 = vcmask 261120
        %353 = vst.msk [vmem:[#allocation4] sm:$0xff] %vm352, 0.0
      $region44: #{forward.4} parent=39 // pred_fallthru
        _
      %s354 = sadd.s32 %s343, 7
      %p355 = scmp.le.s32.totalorder %s344, %s354
      %s356 = sadd.s32 %s344, 7
      %p357 = scmp.gt.s32.totalorder %s356, %s343
      %p358 = scmp.le.s32.totalorder %s356, %s343
      %p359 = pnand %p355, %p358
      %p360 = pneg %p359
      // Predicated region
      $region45: #{forward.4} parent=39 // pred_check
        _
      $region46: #{forward.4} parent=39 // pred_check_branch
        %362 = sbr.rel (%p359) target = $region48
      $region47: #{forward.4} parent=39 // pred_region
        %v363 = vld [vmem:[%s313] sm:$0xf]
        %v364 = vld [vmem:[%s320] sm:$0xf]
        %v365 = vld [vmem:[%s327] sm:$0xf]
        %vm366 = vcmask 261120
        %v368 = vsel %vm366, %v363, 0
        %v371 = vsel %vm366, %v364, 0
        %373 = vmatprep.subr.bf16.mxu0 0
        %374 = vmatpush1.bf16.xpose.msra.mxu0 %v371
        %375 = vmatprep.subr.bf16.mxu0 0
        %376 = vmatpush1.bf16.xpose.msra.mxu0 0
        %377 = vmatprep.subr.bf16.mxu0 0
        %378 = vmatpush1.bf16.xpose.msra.mxu0 0
        %379 = vmatprep.subr.bf16.mxu0 0
        %380 = vmatpush1.bf16.xpose.msra.mxu0 0
        %381 = vmatprep.subr.bf16.mxu0 0
        %382 = vmatpush1.bf16.xpose.msra.mxu0 0
        %383 = vmatprep.subr.bf16.mxu0 0
        %384 = vmatpush1.bf16.xpose.msra.mxu0 0
        %385 = vmatprep.subr.bf16.mxu0 0
        %386 = vmatpush1.bf16.xpose.msra.mxu0 0
        %387 = vmatprep.subr.bf16.mxu0 0
        %388 = vmatpush1.bf16.xpose.msra.mxu0 0
        %389 = vmatprep.subr.bf16.mxu0 0
        %390 = vmatpush1.bf16.xpose.msra.mxu0 0
        %391 = vmatprep.subr.bf16.mxu0 0
        %392 = vmatpush1.bf16.xpose.msra.mxu0 0
        %393 = vmatprep.subr.bf16.mxu0 0
        %394 = vmatpush1.bf16.xpose.msra.mxu0 0
        %395 = vmatprep.subr.bf16.mxu0 0
        %396 = vmatpush1.bf16.xpose.msra.mxu0 0
        %397 = vmatprep.subr.bf16.mxu0 0
        %398 = vmatpush1.bf16.xpose.msra.mxu0 0
        %399 = vmatprep.subr.bf16.mxu0 0
        %400 = vmatpush1.bf16.xpose.msra.mxu0 0
        %401 = vmatprep.subr.bf16.mxu0 0
        %402 = vmatpush1.bf16.xpose.msra.mxu0 0
        %403 = vmatprep.subr.bf16.mxu0 0
        %404 = vmatpush1.bf16.xpose.msra.mxu0 0
        %405 = vmatprep.mubr.bf16.mxu0 0
        %406 = vmatmul.mubr.bf16.gmra.mrb[0].mxu0 %v368
        %v407 = vpop.f32.mrb[0].mxu0
        %v408 = vadd.f32 0.0, %v407
        %v409 = vpop.f32.mrb[0].mxu0
        %v410 = vpop.f32.mrb[0].mxu0
        %v411 = vpop.f32.mrb[0].mxu0
        %412 = vdwg.mxu0
        %v413 = vld [vmem:[#allocation2] sm:$0xff]
        %vm414 = vcmask 64512
        %v415 = vsel %vm414, %v408, -inf
        %416 = vmax.xlane.f32.xlu0 %v415
        %v417 = vpop.xlane.xlu0 %416
        %v418 = vmax.f32 %v413, %v417
        %v419 = vsub.f32 %v413, %v418
        %v420 = vmul.f32 %v419, 1.442695
        %v421 = vpow.pop %v420
        %423 = vset.pattern.permute.xlu0 0
        %424 = vperm.xlu0 %423, %v418
        %v425 = vpop.permute.xlu0 %424
        %v427 = vsub.f32 %v408, %v425
        %v428 = vmul.f32 %v427, 1.442695
        %v429 = vpow.pop %v428
        %v430 = vld [vmem:[#allocation3] sm:$0xff]
        %v431 = vmul.f32 %v421, %v430
        %v432 = vsel %vm414, %v429, 0.0
        %433 = vadd.xlane.f32.xlu0 %v432
        %v434 = vpop.xlane.xlu0 %433
        %v435 = vadd.f32 %v431, %v434
        %vm436 = vcmask 7168
        %437 = vst.msk [vmem:[#allocation3] sm:$0xff] %vm436, %v435
        %v438 = vld [vmem:[#allocation4] sm:$0xff]
        %440 = vset.pattern.permute.xlu0 0
        %441 = vperm.xlu0 %440, %v421
        %v442 = vpop.permute.xlu0 %441
        %v444 = vmul.f32 %v442, %v438
        %v445 = vpack.c.bf16 %v429, %v429
        %v447 = vsel %vm414, %v445, 0
        %vm449 = vcmask 1043456
        %v451 = vsel %vm449, %v365, 0
        %453 = vmatprep.subr.bf16.mxu0 0
        %454 = vmatpush1.bf16.msra.mxu0 %v451
        %455 = vmatprep.subr.bf16.mxu0 0
        %456 = vmatpush1.bf16.msra.mxu0 0
        %457 = vmatprep.subr.bf16.mxu0 0
        %458 = vmatpush1.bf16.msra.mxu0 0
        %459 = vmatprep.subr.bf16.mxu0 0
        %460 = vmatpush1.bf16.msra.mxu0 0
        %461 = vmatprep.subr.bf16.mxu0 0
        %462 = vmatpush1.bf16.msra.mxu0 0
        %463 = vmatprep.subr.bf16.mxu0 0
        %464 = vmatpush1.bf16.msra.mxu0 0
        %465 = vmatprep.subr.bf16.mxu0 0
        %466 = vmatpush1.bf16.msra.mxu0 0
        %467 = vmatprep.subr.bf16.mxu0 0
        %468 = vmatpush1.bf16.msra.mxu0 0
        %469 = vmatprep.subr.bf16.mxu0 0
        %470 = vmatpush1.bf16.msra.mxu0 0
        %471 = vmatprep.subr.bf16.mxu0 0
        %472 = vmatpush1.bf16.msra.mxu0 0
        %473 = vmatprep.subr.bf16.mxu0 0
        %474 = vmatpush1.bf16.msra.mxu0 0
        %475 = vmatprep.subr.bf16.mxu0 0
        %476 = vmatpush1.bf16.msra.mxu0 0
        %477 = vmatprep.subr.bf16.mxu0 0
        %478 = vmatpush1.bf16.msra.mxu0 0
        %479 = vmatprep.subr.bf16.mxu0 0
        %480 = vmatpush1.bf16.msra.mxu0 0
        %481 = vmatprep.subr.bf16.mxu0 0
        %482 = vmatpush1.bf16.msra.mxu0 0
        %483 = vmatprep.subr.bf16.mxu0 0
        %484 = vmatpush1.bf16.msra.mxu0 0
        %485 = vmatprep.mubr.bf16.mxu0 0
        %486 = vmatmul.mubr.bf16.gmra.mrb[0].mxu0 %v447
        %v487 = vpop.f32.mrb[0].mxu0
        %v488 = vadd.f32 0.0, %v487
        %v489 = vpop.f32.mrb[0].mxu0
        %v490 = vpop.f32.mrb[0].mxu0
        %v491 = vpop.f32.mrb[0].mxu0
        %492 = vdwg.mxu0
        %v493 = vadd.f32 %v444, %v488
        %494 = vst.msk [vmem:[#allocation4] sm:$0xff] %vm366, %v493
        %495 = vst.msk [vmem:[#allocation2] sm:$0xff] %vm436, %v418
      $region48: #{forward.4} parent=39 // pred_fallthru
        _
      %p496 = pnand %p355, %p357
      %p497 = pneg %p496
      // Predicated region
      $region49: #{forward.4} parent=39 // pred_check
        _
      $region50: #{forward.4} parent=39 // pred_check_branch
        %499 = sbr.rel (%p496) target = $region52
      $region51: #{forward.4} parent=39 // pred_region
        %v500 = vld [vmem:[%s313] sm:$0xf]
        %v501 = vld [vmem:[%s320] sm:$0xf]
        %v502 = vld [vmem:[%s327] sm:$0xf]
        %vm503 = vcmask 261120
        %v505 = vsel %vm503, %v500, 0
        %v508 = vsel %vm503, %v501, 0
        %510 = vmatprep.subr.bf16.mxu0 0
        %511 = vmatpush1.bf16.xpose.msra.mxu0 %v508
        %512 = vmatprep.subr.bf16.mxu0 0
        %513 = vmatpush1.bf16.xpose.msra.mxu0 0
        %514 = vmatprep.subr.bf16.mxu0 0
        %515 = vmatpush1.bf16.xpose.msra.mxu0 0
        %516 = vmatprep.subr.bf16.mxu0 0
        %517 = vmatpush1.bf16.xpose.msra.mxu0 0
        %518 = vmatprep.subr.bf16.mxu0 0
        %519 = vmatpush1.bf16.xpose.msra.mxu0 0
        %520 = vmatprep.subr.bf16.mxu0 0
        %521 = vmatpush1.bf16.xpose.msra.mxu0 0
        %522 = vmatprep.subr.bf16.mxu0 0
        %523 = vmatpush1.bf16.xpose.msra.mxu0 0
        %524 = vmatprep.subr.bf16.mxu0 0
        %525 = vmatpush1.bf16.xpose.msra.mxu0 0
        %526 = vmatprep.subr.bf16.mxu0 0
        %527 = vmatpush1.bf16.xpose.msra.mxu0 0
        %528 = vmatprep.subr.bf16.mxu0 0
        %529 = vmatpush1.bf16.xpose.msra.mxu0 0
        %530 = vmatprep.subr.bf16.mxu0 0
        %531 = vmatpush1.bf16.xpose.msra.mxu0 0
        %532 = vmatprep.subr.bf16.mxu0 0
        %533 = vmatpush1.bf16.xpose.msra.mxu0 0
        %534 = vmatprep.subr.bf16.mxu0 0
        %535 = vmatpush1.bf16.xpose.msra.mxu0 0
        %536 = vmatprep.subr.bf16.mxu0 0
        %537 = vmatpush1.bf16.xpose.msra.mxu0 0
        %538 = vmatprep.subr.bf16.mxu0 0
        %539 = vmatpush1.bf16.xpose.msra.mxu0 0
        %540 = vmatprep.subr.bf16.mxu0 0
        %541 = vmatpush1.bf16.xpose.msra.mxu0 0
        %542 = vmatprep.mubr.bf16.mxu0 0
        %543 = vmatmul.mubr.bf16.gmra.mrb[0].mxu0 %v505
        %v544 = vpop.f32.mrb[0].mxu0
        %v545 = vadd.f32 0.0, %v544
        %v546 = vpop.f32.mrb[0].mxu0
        %v547 = vpop.f32.mrb[0].mxu0
        %v548 = vpop.f32.mrb[0].mxu0
        %549 = vdwg.mxu0
        %v550 = vlaneseq
        %v551 = vshrl.u32 %v550, 7
        %v552 = vstv %s343
        %v553 = vadd.s32 %v552, %v551
        %v554 = vlaneseq
        %v555 = vand.u32 %v554, 127
        %v556 = vstv %s344
        %v557 = vadd.s32 %v556, %v555
        %vm558 = vcmp.le.s32.totalorder %v557, %v553
        %v559 = vsel %vm558, %v545, -1e+30
        %v560 = vld [vmem:[#allocation2] sm:$0xff]
        %vm561 = vcmask 64512
        %v562 = vsel %vm561, %v559, -inf
        %563 = vmax.xlane.f32.xlu0 %v562
        %v564 = vpop.xlane.xlu0 %563
        %v565 = vmax.f32 %v560, %v564
        %v566 = vsub.f32 %v560, %v565
        %v567 = vmul.f32 %v566, 1.442695
        %v568 = vpow.pop %v567
        %570 = vset.pattern.permute.xlu0 0
        %571 = vperm.xlu0 %570, %v565
        %v572 = vpop.permute.xlu0 %571
        %v574 = vsub.f32 %v559, %v572
        %v575 = vmul.f32 %v574, 1.442695
        %v576 = vpow.pop %v575
        %v577 = vld [vmem:[#allocation3] sm:$0xff]
        %v578 = vmul.f32 %v568, %v577
        %v579 = vsel %vm561, %v576, 0.0
        %580 = vadd.xlane.f32.xlu0 %v579
        %v581 = vpop.xlane.xlu0 %580
        %v582 = vadd.f32 %v578, %v581
        %vm583 = vcmask 7168
        %584 = vst.msk [vmem:[#allocation3] sm:$0xff] %vm583, %v582
        %v585 = vld [vmem:[#allocation4] sm:$0xff]
        %587 = vset.pattern.permute.xlu0 0
        %588 = vperm.xlu0 %587, %v568
        %v589 = vpop.permute.xlu0 %588
        %v591 = vmul.f32 %v589, %v585
        %v592 = vpack.c.bf16 %v576, %v576
        %v594 = vsel %vm561, %v592, 0
        %vm596 = vcmask 1043456
        %v598 = vsel %vm596, %v502, 0
        %600 = vmatprep.subr.bf16.mxu0 0
        %601 = vmatpush1.bf16.msra.mxu0 %v598
        %602 = vmatprep.subr.bf16.mxu0 0
        %603 = vmatpush1.bf16.msra.mxu0 0
        %604 = vmatprep.subr.bf16.mxu0 0
        %605 = vmatpush1.bf16.msra.mxu0 0
        %606 = vmatprep.subr.bf16.mxu0 0
        %607 = vmatpush1.bf16.msra.mxu0 0
        %608 = vmatprep.subr.bf16.mxu0 0
        %609 = vmatpush1.bf16.msra.mxu0 0
        %610 = vmatprep.subr.bf16.mxu0 0
        %611 = vmatpush1.bf16.msra.mxu0 0
        %612 = vmatprep.subr.bf16.mxu0 0
        %613 = vmatpush1.bf16.msra.mxu0 0
        %614 = vmatprep.subr.bf16.mxu0 0
        %615 = vmatpush1.bf16.msra.mxu0 0
        %616 = vmatprep.subr.bf16.mxu0 0
        %617 = vmatpush1.bf16.msra.mxu0 0
        %618 = vmatprep.subr.bf16.mxu0 0
        %619 = vmatpush1.bf16.msra.mxu0 0
        %620 = vmatprep.subr.bf16.mxu0 0
        %621 = vmatpush1.bf16.msra.mxu0 0
        %622 = vmatprep.subr.bf16.mxu0 0
        %623 = vmatpush1.bf16.msra.mxu0 0
        %624 = vmatprep.subr.bf16.mxu0 0
        %625 = vmatpush1.bf16.msra.mxu0 0
        %626 = vmatprep.subr.bf16.mxu0 0
        %627 = vmatpush1.bf16.msra.mxu0 0
        %628 = vmatprep.subr.bf16.mxu0 0
        %629 = vmatpush1.bf16.msra.mxu0 0
        %630 = vmatprep.subr.bf16.mxu0 0
        %631 = vmatpush1.bf16.msra.mxu0 0
        %632 = vmatprep.mubr.bf16.mxu0 0
        %633 = vmatmul.mubr.bf16.gmra.mrb[0].mxu0 %v594
        %v634 = vpop.f32.mrb[0].mxu0
        %v635 = vadd.f32 0.0, %v634
        %v636 = vpop.f32.mrb[0].mxu0
        %v637 = vpop.f32.mrb[0].mxu0
        %v638 = vpop.f32.mrb[0].mxu0
        %639 = vdwg.mxu0
        %v640 = vadd.f32 %v591, %v635
        %641 = vst.msk [vmem:[#allocation4] sm:$0xff] %vm503, %v640
        %642 = vst.msk [vmem:[#allocation2] sm:$0xff] %vm583, %v565
      $region52: #{forward.4} parent=39 // pred_fallthru
        _
      // Predicated region
      $region53: #{forward.4} parent=39 // pred_check
        %p643 = pneg %p345
      $region54: #{forward.4} parent=39 // pred_check_branch
        %645 = sbr.rel (%p643) target = $region56
      $region55: #{forward.4} parent=39 // pred_region
        %v646 = vld [vmem:[#allocation3] sm:$0xff]
        %v647 = vrcp.pop %v646
        %v648 = vld [vmem:[#allocation4] sm:$0xff]
        %650 = vset.pattern.permute.xlu0 0
        %651 = vperm.xlu0 %650, %v647
        %v652 = vpop.permute.xlu0 %651
        %v654 = vmul.f32 %v648, %v652
        %v655 = vpack.c.bf16 %v654, %v654
        %v656 = vld [vmem:[%s4] sm:$0xf]
        %v657 = vld [vmem:[%s4 + $0x4] sm:$0xf]
        %v658 = vld [vmem:[%s4 + $0x8] sm:$0xf]
        %v659 = vld [vmem:[%s4 + $0xc] sm:$0xf]
        %v664 = vunpack.c.l.b16 %v656
        %v665 = vunpack.c.l.b16 %v657
        %v666 = vunpack.c.l.b16 %v658
        %v667 = vunpack.c.l.b16 %v659
        %v668 = vpack.c.b16 %v665, %v664
        %v669 = vpack.c.b16 %v667, %v666
        %vm672 = vcmask 261120
        %v674 = vsel %vm672, %v655, 0
        %676 = vmatprep.subr.bf16.mxu0 0
        %677 = vmatpush1.bf16.msra.mxu0 %v668
        %678 = vmatprep.subr.bf16.mxu0 0
        %679 = vmatpush1.bf16.msra.mxu0 %v669
        %680 = vmatprep.subr.bf16.mxu0 0
        %681 = vmatpush1.bf16.msra.mxu0 0
        %682 = vmatprep.subr.bf16.mxu0 0
        %683 = vmatpush1.bf16.msra.mxu0 0
        %684 = vmatprep.subr.bf16.mxu0 0
        %685 = vmatpush1.bf16.msra.mxu0 0
        %686 = vmatprep.subr.bf16.mxu0 0
        %687 = vmatpush1.bf16.msra.mxu0 0
        %688 = vmatprep.subr.bf16.mxu0 0
        %689 = vmatpush1.bf16.msra.mxu0 0
        %690 = vmatprep.subr.bf16.mxu0 0
        %691 = vmatpush1.bf16.msra.mxu0 0
        %692 = vmatprep.subr.bf16.mxu0 0
        %693 = vmatpush1.bf16.msra.mxu0 0
        %694 = vmatprep.subr.bf16.mxu0 0
        %695 = vmatpush1.bf16.msra.mxu0 0
        %696 = vmatprep.subr.bf16.mxu0 0
        %697 = vmatpush1.bf16.msra.mxu0 0
        %698 = vmatprep.subr.bf16.mxu0 0
        %699 = vmatpush1.bf16.msra.mxu0 0
        %700 = vmatprep.subr.bf16.mxu0 0
        %701 = vmatpush1.bf16.msra.mxu0 0
        %702 = vmatprep.subr.bf16.mxu0 0
        %703 = vmatpush1.bf16.msra.mxu0 0
        %704 = vmatprep.subr.bf16.mxu0 0
        %705 = vmatpush1.bf16.msra.mxu0 0
        %706 = vmatprep.subr.bf16.mxu0 0
        %707 = vmatpush1.bf16.msra.mxu0 0
        %708 = vmatprep.mubr.bf16.mxu0 0
        %709 = vmatmul.mubr.bf16.gmra.mrb[0].mxu0 %v674
        %v710 = vpop.f32.mrb[0].mxu0
        %v711 = vadd.f32 0.0, %v710
        %v712 = vpop.f32.mrb[0].mxu0
        %v713 = vpop.f32.mrb[0].mxu0
        %v714 = vpop.f32.mrb[0].mxu0
        %715 = vdwg.mxu0
        %v716 = vld [vmem:[%s334] sm:$0xff]
        %v717 = vadd.f32 %v716, %v711
        %718 = vst.msk [vmem:[%s341] sm:$0xff] %vm672, %v717
      $region56: #{forward.4} parent=39 // pred_fallthru
        _
      %p719 = scmp.lt.s32.totalorder %s21, 1
      %s720 = scalar_select %p719, %s21, 1
      %p721 = scmp.lt.s32.totalorder %s22, 0
      %s722 = scalar_select %p721, %s22, 0
      %s723 = sadd.s32 %s722, %s720
      %s724 = smul.addr %s723, 8
      %s725 = scalar_lea.vmem %s5, %s724
      // Predicated region
      $region57: #{forward.4} parent=39 // pred_check
        %p726 = pneg %p188
      $region58: #{forward.4} parent=39 // pred_check_branch
        %728 = sbr.rel (%p726) target = $region60
      $region59: #{forward.4} parent=39 // pred_region
        _
      $region60: #{forward.4} parent=39 // pred_fallthru
        _
    $region40: #{forward.4} parent=5 // pred_fallthru
      _
    %p729 = scmp.le.s32.totalorder 2, %s11
    // Predicated region
    $region61: #{forward.4} parent=5 // pred_check
      %p730 = pneg %p729
    $region62: #{forward.4} parent=5 // pred_check_branch
      %732 = sbr.rel (%p730) target = $region64
    $region63: #{forward.4} parent=5 // pred_region
      %s733 = ssub.s32 %s11, 2
      // Predicated region
      $region65: #{forward.4} parent=63 // pred_check
        %p734 = pneg %p194
      $region66: #{forward.4} parent=63 // pred_check_branch
        %736 = sbr.rel (%p734) target = $region68
      $region67: #{forward.4} parent=63 // pred_region
        %p737 = scmp.lt.s32.totalorder %s24, 1
        %s738 = scalar_select %p737, %s24, 1
        %p739 = scmp.lt.s32.totalorder %s25, 0
        %s740 = scalar_select %p739, %s25, 0
        %s741 = sadd.s32 %s740, %s738
        %s742 = smul.addr %s741, 8
        %s743 = scalar_lea.vmem %s5, %s742
      $region68: #{forward.4} parent=63 // pred_fallthru
        _
    $region64: #{forward.4} parent=5 // pred_fallthru
      _
  $region6: #{forward.4} parent=0 // loop_footer
    %s15 = sadd.s32 1, %s11
  $region7: #{forward.4} parent=0 // loop_footer_branch
    %10 = sbr.rel target = $region3
  $region8: #{forward.4} parent=0 // loop_exit
    _

</llo_original>
